<compile_context>
chip_gen: v7x
topology: tpu7x:2x2x1
jax: 0.10.0
libtpu: 0.0.40
codegen_flags: <defaults>
</compile_context>

<pallas_src>
import functools

import jax
import jax.numpy as jnp
from jax.experimental import pallas as pl
from jax.experimental.pallas import tpu as pltpu

LANE = 128
SUBLANE = 8


def _round_up(n, m):
    return ((n + m - 1) // m) * m


def _vmem_capacity_bytes():
    """Per-TensorCore VMEM capacity; conservative fallback = v7x (64 MiB)."""
    try:
        return int(pltpu.get_tpu_info().vmem_capacity_bytes)
    except Exception:
        return 64 << 20


def _fnn_kernel(x_ref, *refs):
    # refs = (w1_ref, b1_ref, ..., w10_ref, b10_ref, o_ref)
    o_ref = refs[-1]
    wb_refs = refs[:-1]
    n_layers = len(wb_refs) // 2

    h = x_ref[...]
    for i in range(n_layers):
        w_ref = wb_refs[2 * i]          # (in_pad, out_pad), param dtype (bf16)
        b_ref = wb_refs[2 * i + 1]      # (1, out_pad)
        # Feed the MXU in the stored (bf16) dtype, accumulate in f32.
        h = jnp.dot(h.astype(w_ref.dtype), w_ref[...],
                    preferred_element_type=jnp.float32)
        h = h + b_ref[...].astype(jnp.float32)
        if i != n_layers - 1:           # no ReLU after the last layer
            h = jnp.maximum(h, 0.0)
    o_ref[...] = h.astype(o_ref.dtype)


def _const_spec(shape, single_buffer):
    """BlockSpec for a VMEM-resident (constant index_map) parameter."""
    if single_buffer:
        # No need to double-buffer a block whose index never changes.
        return pl.BlockSpec(shape, lambda i: (0, 0),
                            pipeline_mode=pl.Buffered(1))
    return pl.BlockSpec(shape, lambda i: (0, 0))


def fnn_forward(x, weights, biases, output_size, block_b=None,
                single_buffer_params=True):
    """x: (B, input_size); weights[i]: (in_pad_i, out_pad_i) padded, pre-transposed;
    biases[i]: (1, out_pad_i) padded. Returns (B, output_size)."""
    B, in_size = x.shape
    in_pad = weights[0].shape[0]
    out_pad = weights[-1].shape[1]
    max_feat = max(max(w.shape[1] for w in weights), in_pad)

    x_item = jnp.dtype(x.dtype).itemsize
    param_bytes = sum(int(a.size) * jnp.dtype(a.dtype).itemsize
                      for pair in zip(weights, biases) for a in pair)
    param_bufs = 1 if single_buffer_params else 2

    vmem_cap = _vmem_capacity_bytes()
    vmem_budget = vmem_cap - (8 << 20)           # headroom for compiler temps

    def footprint(tb):
        return (param_bufs * param_bytes          # resident parameters
                + 2 * tb * in_pad * x_item        # double-buffered x tile
                + 2 * tb * out_pad * x_item       # double-buffered out tile
                + 4 * tb * max_feat * 4           # f32 layer intermediates (+slack)
                + (2 << 20))                      # misc

    b_ceil = _round_up(B, SUBLANE)
    if block_b is None:
        block_b = SUBLANE
        for cand in (1024, 512, 256, 128, 64, 32, 16, 8):
            tb_c = min(cand, b_ceil)
            if footprint(tb_c) <= vmem_budget:
                block_b = tb_c
                break
        # v7x megacore: keep >=2 batch tiles (each >=256 rows) so both
        # TensorCores get work; each core holds its own resident param copy.
        if b_ceil >= 512 and b_ceil // block_b < 2:
            block_b = _round_up(pl.cdiv(b_ceil, 2), SUBLANE)
    tb = block_b
    b_pad = _round_up(B, tb)

    # Pad batch and input-feature dims (padding lanes stay exactly zero
    # through every layer because padded weight rows/cols and biases are zero).
    x_p = jnp.pad(x, ((0, b_pad - B), (0, in_pad - in_size)))

    flat_inputs = [x_p]
    in_specs = [pl.BlockSpec((tb, in_pad), lambda i: (i, 0))]
    for w, b in zip(weights, biases):
        flat_inputs.append(w)
        in_specs.append(_const_spec(w.shape, single_buffer_params))
        flat_inputs.append(b)
        in_specs.append(_const_spec(b.shape, single_buffer_params))
    out_specs = pl.BlockSpec((tb, out_pad), lambda i: (i, 0))

    vmem_limit = int(min(max(footprint(tb), 8 << 20), vmem_budget))

    flops = 2 * b_pad * sum(w.shape[0] * w.shape[1] for w in weights)
    bytes_accessed = (param_bytes + int(x_p.size) * x_item
                      + b_pad * out_pad * x_item)

    out_padded = pl.pallas_call(
        _fnn_kernel,
        out_shape=jax.ShapeDtypeStruct((b_pad, out_pad), x.dtype),
        grid=(b_pad // tb,),
        in_specs=in_specs,
        out_specs=out_specs,
        compiler_params=pltpu.CompilerParams(
            dimension_semantics=("parallel",),
            vmem_limit_bytes=vmem_limit),
        cost_estimate=pl.CostEstimate(flops=flops, transcendentals=0,
                                      bytes_accessed=bytes_accessed),
    )(*flat_inputs)

    return out_padded[:B, :output_size]


def init_params(key, input_size, hidden_size, output_size):
    """Raw parameters in PyTorch nn.Linear layout: W_i (out_i, in_i), b_i (out_i,)."""
    sizes = [input_size] + [hidden_size] * 9 + [output_size]
    raw_w, raw_b = [], []
    for i in range(10):
        fan_in, fan_out = sizes[i], sizes[i + 1]
        key, kw, kb = jax.random.split(key, 3)
        bound = 1.0 / (fan_in ** 0.5)
        raw_w.append(jax.random.uniform(kw, (fan_out, fan_in), jnp.float32,
                                        -bound, bound))
        raw_b.append(jax.random.uniform(kb, (fan_out,), jnp.float32,
                                        -bound, bound))
    return raw_w, raw_b


def pack_params(raw_w, raw_b, dtype=jnp.bfloat16):
    """One-time packing: transpose to (in, out), cast to MXU dtype, zero-pad to 128."""
    weights, biases = [], []
    for w, b in zip(raw_w, raw_b):
        fan_out, fan_in = w.shape
        in_pad = _round_up(fan_in, LANE)
        out_pad = _round_up(fan_out, LANE)
        wp = jnp.zeros((in_pad, out_pad), dtype).at[:fan_in, :fan_out].set(
            jnp.transpose(w).astype(dtype))
        bp = jnp.zeros((1, out_pad), dtype).at[:, :fan_out].set(
            b.astype(dtype).reshape(1, -1))
        weights.append(wp)
        biases.append(bp)
    return weights, biases


def reference_forward(x, raw_w, raw_b, param_dtype=jnp.bfloat16):
    """Pure-JAX reference mirroring the kernel numerics: params and the
    activations fed to each matmul are cast to param_dtype, f32 accumulation."""
    h = x.astype(jnp.float32)
    n = len(raw_w)
    for i, (w, b) in enumerate(zip(raw_w, raw_b)):
        lhs = h.astype(param_dtype).astype(jnp.float32)
        rhs = jnp.transpose(w).astype(param_dtype).astype(jnp.float32)
        h = lhs @ rhs + b.astype(param_dtype).astype(jnp.float32)
        if i != n - 1:
            h = jnp.maximum(h, 0.0)
    return h


if __name__ == "__main__":
    input_size, hidden_size, output_size = 16, 32, 8
    batch = 8

    key = jax.random.PRNGKey(0)
    key, kx = jax.random.split(key)
    x = jax.random.normal(kx, (batch, input_size), jnp.float32)

    raw_w, raw_b = init_params(key, input_size, hidden_size, output_size)
    param_dtype = jnp.bfloat16            # MXU-native on v5e/v6e/v7x
    weights, biases = pack_params(raw_w, raw_b, dtype=param_dtype)

    fwd = jax.jit(functools.partial(fnn_forward, output_size=output_size))
    try:
        out = jax.block_until_ready(fwd(x, weights, biases))
    except Exception:
        # Fallback for jax versions where pl.Buffered(1) is not accepted on the
        # top-level pallas_call pipeline: keep default double-buffered params.
        fwd = jax.jit(functools.partial(fnn_forward, output_size=output_size,
                                        single_buffer_params=False))
        out = jax.block_until_ready(fwd(x, weights, biases))

    ref = reference_forward(x, raw_w, raw_b, param_dtype=param_dtype)
    assert out.shape == (batch, output_size)
    assert jnp.allclose(out, ref, atol=2e-3, rtol=2e-2), "mismatch vs reference"

    print("KERNEL_OK")
</pallas_src>

<mosaic_0001>
module attributes {stable_mosaic.version = 11 : i64} {
  func.func @_fnn_kernel(%arg0: i32, %arg1: memref<8x128xf32, #tpu.memory_space<vmem>>, %arg2: memref<128x128xbf16, #tpu.memory_space<vmem>>, %arg3: memref<1x128xbf16, #tpu.memory_space<vmem>>, %arg4: memref<128x128xbf16, #tpu.memory_space<vmem>>, %arg5: memref<1x128xbf16, #tpu.memory_space<vmem>>, %arg6: memref<128x128xbf16, #tpu.memory_space<vmem>>, %arg7: memref<1x128xbf16, #tpu.memory_space<vmem>>, %arg8: memref<128x128xbf16, #tpu.memory_space<vmem>>, %arg9: memref<1x128xbf16, #tpu.memory_space<vmem>>, %arg10: memref<128x128xbf16, #tpu.memory_space<vmem>>, %arg11: memref<1x128xbf16, #tpu.memory_space<vmem>>, %arg12: memref<128x128xbf16, #tpu.memory_space<vmem>>, %arg13: memref<1x128xbf16, #tpu.memory_space<vmem>>, %arg14: memref<128x128xbf16, #tpu.memory_space<vmem>>, %arg15: memref<1x128xbf16, #tpu.memory_space<vmem>>, %arg16: memref<128x128xbf16, #tpu.memory_space<vmem>>, %arg17: memref<1x128xbf16, #tpu.memory_space<vmem>>, %arg18: memref<128x128xbf16, #tpu.memory_space<vmem>>, %arg19: memref<1x128xbf16, #tpu.memory_space<vmem>>, %arg20: memref<128x128xbf16, #tpu.memory_space<vmem>>, %arg21: memref<1x128xbf16, #tpu.memory_space<vmem>>, %arg22: memref<8x128xf32, #tpu.memory_space<vmem>>) attributes {dimension_semantics = [#tpu.dimension_semantics<parallel>], iteration_bounds = array<i64: 1>, scalar_prefetch = 0 : i64, scratch_operands = 0 : i64, tpu.core_type = #tpu.core_type<tc>, window_params = [{transform_indices = @transform_0, window_bounds = array<i64: 8, 128>}, {pipeline_mode = #tpu.pipeline_mode<synchronous>, transform_indices = @transform_1, window_bounds = array<i64: 128, 128>}, {pipeline_mode = #tpu.pipeline_mode<synchronous>, transform_indices = @transform_2, window_bounds = array<i64: 1, 128>}, {pipeline_mode = #tpu.pipeline_mode<synchronous>, transform_indices = @transform_3, window_bounds = array<i64: 128, 128>}, {pipeline_mode = #tpu.pipeline_mode<synchronous>, transform_indices = @transform_4, window_bounds = array<i64: 1, 128>}, {pipeline_mode = #tpu.pipeline_mode<synchronous>, transform_indices = @transform_5, window_bounds = array<i64: 128, 128>}, {pipeline_mode = #tpu.pipeline_mode<synchronous>, transform_indices = @transform_6, window_bounds = array<i64: 1, 128>}, {pipeline_mode = #tpu.pipeline_mode<synchronous>, transform_indices = @transform_7, window_bounds = array<i64: 128, 128>}, {pipeline_mode = #tpu.pipeline_mode<synchronous>, transform_indices = @transform_8, window_bounds = array<i64: 1, 128>}, {pipeline_mode = #tpu.pipeline_mode<synchronous>, transform_indices = @transform_9, window_bounds = array<i64: 128, 128>}, {pipeline_mode = #tpu.pipeline_mode<synchronous>, transform_indices = @transform_10, window_bounds = array<i64: 1, 128>}, {pipeline_mode = #tpu.pipeline_mode<synchronous>, transform_indices = @transform_11, window_bounds = array<i64: 128, 128>}, {pipeline_mode = #tpu.pipeline_mode<synchronous>, transform_indices = @transform_12, window_bounds = array<i64: 1, 128>}, {pipeline_mode = #tpu.pipeline_mode<synchronous>, transform_indices = @transform_13, window_bounds = array<i64: 128, 128>}, {pipeline_mode = #tpu.pipeline_mode<synchronous>, transform_indices = @transform_14, window_bounds = array<i64: 1, 128>}, {pipeline_mode = #tpu.pipeline_mode<synchronous>, transform_indices = @transform_15, window_bounds = array<i64: 128, 128>}, {pipeline_mode = #tpu.pipeline_mode<synchronous>, transform_indices = @transform_16, window_bounds = array<i64: 1, 128>}, {pipeline_mode = #tpu.pipeline_mode<synchronous>, transform_indices = @transform_17, window_bounds = array<i64: 128, 128>}, {pipeline_mode = #tpu.pipeline_mode<synchronous>, transform_indices = @transform_18, window_bounds = array<i64: 1, 128>}, {pipeline_mode = #tpu.pipeline_mode<synchronous>, transform_indices = @transform_19, window_bounds = array<i64: 128, 128>}, {pipeline_mode = #tpu.pipeline_mode<synchronous>, transform_indices = @transform_20, window_bounds = array<i64: 1, 128>}, {transform_indices = @transform_21, window_bounds = array<i64: 8, 128>}]} {
    %c0 = arith.constant 0 : index
    %c0_0 = arith.constant 0 : index
    %0 = vector.load %arg1[%c0, %c0_0] : memref<8x128xf32, #tpu.memory_space<vmem>>, vector<8x128xf32>
    %1 = arith.truncf %0 : vector<8x128xf32> to vector<8x128xbf16>
    %c0_1 = arith.constant 0 : index
    %c0_2 = arith.constant 0 : index
    %2 = vector.load %arg2[%c0_1, %c0_2] : memref<128x128xbf16, #tpu.memory_space<vmem>>, vector<128x128xbf16>
    %cst = arith.constant dense<0.000000e+00> : vector<8x128xf32>
    %3 = tpu.matmul %1, %2, %cst {dimension_numbers = #tpu.dot_dimension_numbers<[1], [0], [0], [1], [0, 0, 1, 1], [], []>} : vector<8x128xbf16>, vector<128x128xbf16>, vector<8x128xf32> -> vector<8x128xf32>
    %c0_3 = arith.constant 0 : index
    %c0_4 = arith.constant 0 : index
    %4 = vector.load %arg3[%c0_3, %c0_4] : memref<1x128xbf16, #tpu.memory_space<vmem>>, vector<1x128xbf16>
    %5 = arith.extf %4 : vector<1x128xbf16> to vector<1x128xf32>
    %6 = vector.broadcast %5 : vector<1x128xf32> to vector<8x128xf32>
    %7 = arith.addf %3, %6 : vector<8x128xf32>
    %cst_5 = arith.constant 0.000000e+00 : f32
    %8 = vector.broadcast %cst_5 : f32 to vector<8x128xf32>
    %9 = arith.maximumf %7, %8 : vector<8x128xf32>
    %10 = arith.truncf %9 : vector<8x128xf32> to vector<8x128xbf16>
    %c0_6 = arith.constant 0 : index
    %c0_7 = arith.constant 0 : index
    %11 = vector.load %arg4[%c0_6, %c0_7] : memref<128x128xbf16, #tpu.memory_space<vmem>>, vector<128x128xbf16>
    %cst_8 = arith.constant dense<0.000000e+00> : vector<8x128xf32>
    %12 = tpu.matmul %10, %11, %cst_8 {dimension_numbers = #tpu.dot_dimension_numbers<[1], [0], [0], [1], [0, 0, 1, 1], [], []>} : vector<8x128xbf16>, vector<128x128xbf16>, vector<8x128xf32> -> vector<8x128xf32>
    %c0_9 = arith.constant 0 : index
    %c0_10 = arith.constant 0 : index
    %13 = vector.load %arg5[%c0_9, %c0_10] : memref<1x128xbf16, #tpu.memory_space<vmem>>, vector<1x128xbf16>
    %14 = arith.extf %13 : vector<1x128xbf16> to vector<1x128xf32>
    %15 = vector.broadcast %14 : vector<1x128xf32> to vector<8x128xf32>
    %16 = arith.addf %12, %15 : vector<8x128xf32>
    %cst_11 = arith.constant 0.000000e+00 : f32
    %17 = vector.broadcast %cst_11 : f32 to vector<8x128xf32>
    %18 = arith.maximumf %16, %17 : vector<8x128xf32>
    %19 = arith.truncf %18 : vector<8x128xf32> to vector<8x128xbf16>
    %c0_12 = arith.constant 0 : index
    %c0_13 = arith.constant 0 : index
    %20 = vector.load %arg6[%c0_12, %c0_13] : memref<128x128xbf16, #tpu.memory_space<vmem>>, vector<128x128xbf16>
    %cst_14 = arith.constant dense<0.000000e+00> : vector<8x128xf32>
    %21 = tpu.matmul %19, %20, %cst_14 {dimension_numbers = #tpu.dot_dimension_numbers<[1], [0], [0], [1], [0, 0, 1, 1], [], []>} : vector<8x128xbf16>, vector<128x128xbf16>, vector<8x128xf32> -> vector<8x128xf32>
    %c0_15 = arith.constant 0 : index
    %c0_16 = arith.constant 0 : index
    %22 = vector.load %arg7[%c0_15, %c0_16] : memref<1x128xbf16, #tpu.memory_space<vmem>>, vector<1x128xbf16>
    %23 = arith.extf %22 : vector<1x128xbf16> to vector<1x128xf32>
    %24 = vector.broadcast %23 : vector<1x128xf32> to vector<8x128xf32>
    %25 = arith.addf %21, %24 : vector<8x128xf32>
    %cst_17 = arith.constant 0.000000e+00 : f32
    %26 = vector.broadcast %cst_17 : f32 to vector<8x128xf32>
    %27 = arith.maximumf %25, %26 : vector<8x128xf32>
    %28 = arith.truncf %27 : vector<8x128xf32> to vector<8x128xbf16>
    %c0_18 = arith.constant 0 : index
    %c0_19 = arith.constant 0 : index
    %29 = vector.load %arg8[%c0_18, %c0_19] : memref<128x128xbf16, #tpu.memory_space<vmem>>, vector<128x128xbf16>
    %cst_20 = arith.constant dense<0.000000e+00> : vector<8x128xf32>
    %30 = tpu.matmul %28, %29, %cst_20 {dimension_numbers = #tpu.dot_dimension_numbers<[1], [0], [0], [1], [0, 0, 1, 1], [], []>} : vector<8x128xbf16>, vector<128x128xbf16>, vector<8x128xf32> -> vector<8x128xf32>
    %c0_21 = arith.constant 0 : index
    %c0_22 = arith.constant 0 : index
    %31 = vector.load %arg9[%c0_21, %c0_22] : memref<1x128xbf16, #tpu.memory_space<vmem>>, vector<1x128xbf16>
    %32 = arith.extf %31 : vector<1x128xbf16> to vector<1x128xf32>
    %33 = vector.broadcast %32 : vector<1x128xf32> to vector<8x128xf32>
    %34 = arith.addf %30, %33 : vector<8x128xf32>
    %cst_23 = arith.constant 0.000000e+00 : f32
    %35 = vector.broadcast %cst_23 : f32 to vector<8x128xf32>
    %36 = arith.maximumf %34, %35 : vector<8x128xf32>
    %37 = arith.truncf %36 : vector<8x128xf32> to vector<8x128xbf16>
    %c0_24 = arith.constant 0 : index
    %c0_25 = arith.constant 0 : index
    %38 = vector.load %arg10[%c0_24, %c0_25] : memref<128x128xbf16, #tpu.memory_space<vmem>>, vector<128x128xbf16>
    %cst_26 = arith.constant dense<0.000000e+00> : vector<8x128xf32>
    %39 = tpu.matmul %37, %38, %cst_26 {dimension_numbers = #tpu.dot_dimension_numbers<[1], [0], [0], [1], [0, 0, 1, 1], [], []>} : vector<8x128xbf16>, vector<128x128xbf16>, vector<8x128xf32> -> vector<8x128xf32>
    %c0_27 = arith.constant 0 : index
    %c0_28 = arith.constant 0 : index
    %40 = vector.load %arg11[%c0_27, %c0_28] : memref<1x128xbf16, #tpu.memory_space<vmem>>, vector<1x128xbf16>
    %41 = arith.extf %40 : vector<1x128xbf16> to vector<1x128xf32>
    %42 = vector.broadcast %41 : vector<1x128xf32> to vector<8x128xf32>
    %43 = arith.addf %39, %42 : vector<8x128xf32>
    %cst_29 = arith.constant 0.000000e+00 : f32
    %44 = vector.broadcast %cst_29 : f32 to vector<8x128xf32>
    %45 = arith.maximumf %43, %44 : vector<8x128xf32>
    %46 = arith.truncf %45 : vector<8x128xf32> to vector<8x128xbf16>
    %c0_30 = arith.constant 0 : index
    %c0_31 = arith.constant 0 : index
    %47 = vector.load %arg12[%c0_30, %c0_31] : memref<128x128xbf16, #tpu.memory_space<vmem>>, vector<128x128xbf16>
    %cst_32 = arith.constant dense<0.000000e+00> : vector<8x128xf32>
    %48 = tpu.matmul %46, %47, %cst_32 {dimension_numbers = #tpu.dot_dimension_numbers<[1], [0], [0], [1], [0, 0, 1, 1], [], []>} : vector<8x128xbf16>, vector<128x128xbf16>, vector<8x128xf32> -> vector<8x128xf32>
    %c0_33 = arith.constant 0 : index
    %c0_34 = arith.constant 0 : index
    %49 = vector.load %arg13[%c0_33, %c0_34] : memref<1x128xbf16, #tpu.memory_space<vmem>>, vector<1x128xbf16>
    %50 = arith.extf %49 : vector<1x128xbf16> to vector<1x128xf32>
    %51 = vector.broadcast %50 : vector<1x128xf32> to vector<8x128xf32>
    %52 = arith.addf %48, %51 : vector<8x128xf32>
    %cst_35 = arith.constant 0.000000e+00 : f32
    %53 = vector.broadcast %cst_35 : f32 to vector<8x128xf32>
    %54 = arith.maximumf %52, %53 : vector<8x128xf32>
    %55 = arith.truncf %54 : vector<8x128xf32> to vector<8x128xbf16>
    %c0_36 = arith.constant 0 : index
    %c0_37 = arith.constant 0 : index
    %56 = vector.load %arg14[%c0_36, %c0_37] : memref<128x128xbf16, #tpu.memory_space<vmem>>, vector<128x128xbf16>
    %cst_38 = arith.constant dense<0.000000e+00> : vector<8x128xf32>
    %57 = tpu.matmul %55, %56, %cst_38 {dimension_numbers = #tpu.dot_dimension_numbers<[1], [0], [0], [1], [0, 0, 1, 1], [], []>} : vector<8x128xbf16>, vector<128x128xbf16>, vector<8x128xf32> -> vector<8x128xf32>
    %c0_39 = arith.constant 0 : index
    %c0_40 = arith.constant 0 : index
    %58 = vector.load %arg15[%c0_39, %c0_40] : memref<1x128xbf16, #tpu.memory_space<vmem>>, vector<1x128xbf16>
    %59 = arith.extf %58 : vector<1x128xbf16> to vector<1x128xf32>
    %60 = vector.broadcast %59 : vector<1x128xf32> to vector<8x128xf32>
    %61 = arith.addf %57, %60 : vector<8x128xf32>
    %cst_41 = arith.constant 0.000000e+00 : f32
    %62 = vector.broadcast %cst_41 : f32 to vector<8x128xf32>
    %63 = arith.maximumf %61, %62 : vector<8x128xf32>
    %64 = arith.truncf %63 : vector<8x128xf32> to vector<8x128xbf16>
    %c0_42 = arith.constant 0 : index
    %c0_43 = arith.constant 0 : index
    %65 = vector.load %arg16[%c0_42, %c0_43] : memref<128x128xbf16, #tpu.memory_space<vmem>>, vector<128x128xbf16>
    %cst_44 = arith.constant dense<0.000000e+00> : vector<8x128xf32>
    %66 = tpu.matmul %64, %65, %cst_44 {dimension_numbers = #tpu.dot_dimension_numbers<[1], [0], [0], [1], [0, 0, 1, 1], [], []>} : vector<8x128xbf16>, vector<128x128xbf16>, vector<8x128xf32> -> vector<8x128xf32>
    %c0_45 = arith.constant 0 : index
    %c0_46 = arith.constant 0 : index
    %67 = vector.load %arg17[%c0_45, %c0_46] : memref<1x128xbf16, #tpu.memory_space<vmem>>, vector<1x128xbf16>
    %68 = arith.extf %67 : vector<1x128xbf16> to vector<1x128xf32>
    %69 = vector.broadcast %68 : vector<1x128xf32> to vector<8x128xf32>
    %70 = arith.addf %66, %69 : vector<8x128xf32>
    %cst_47 = arith.constant 0.000000e+00 : f32
    %71 = vector.broadcast %cst_47 : f32 to vector<8x128xf32>
    %72 = arith.maximumf %70, %71 : vector<8x128xf32>
    %73 = arith.truncf %72 : vector<8x128xf32> to vector<8x128xbf16>
    %c0_48 = arith.constant 0 : index
    %c0_49 = arith.constant 0 : index
    %74 = vector.load %arg18[%c0_48, %c0_49] : memref<128x128xbf16, #tpu.memory_space<vmem>>, vector<128x128xbf16>
    %cst_50 = arith.constant dense<0.000000e+00> : vector<8x128xf32>
    %75 = tpu.matmul %73, %74, %cst_50 {dimension_numbers = #tpu.dot_dimension_numbers<[1], [0], [0], [1], [0, 0, 1, 1], [], []>} : vector<8x128xbf16>, vector<128x128xbf16>, vector<8x128xf32> -> vector<8x128xf32>
    %c0_51 = arith.constant 0 : index
    %c0_52 = arith.constant 0 : index
    %76 = vector.load %arg19[%c0_51, %c0_52] : memref<1x128xbf16, #tpu.memory_space<vmem>>, vector<1x128xbf16>
    %77 = arith.extf %76 : vector<1x128xbf16> to vector<1x128xf32>
    %78 = vector.broadcast %77 : vector<1x128xf32> to vector<8x128xf32>
    %79 = arith.addf %75, %78 : vector<8x128xf32>
    %cst_53 = arith.constant 0.000000e+00 : f32
    %80 = vector.broadcast %cst_53 : f32 to vector<8x128xf32>
    %81 = arith.maximumf %79, %80 : vector<8x128xf32>
    %82 = arith.truncf %81 : vector<8x128xf32> to vector<8x128xbf16>
    %c0_54 = arith.constant 0 : index
    %c0_55 = arith.constant 0 : index
    %83 = vector.load %arg20[%c0_54, %c0_55] : memref<128x128xbf16, #tpu.memory_space<vmem>>, vector<128x128xbf16>
    %cst_56 = arith.constant dense<0.000000e+00> : vector<8x128xf32>
    %84 = tpu.matmul %82, %83, %cst_56 {dimension_numbers = #tpu.dot_dimension_numbers<[1], [0], [0], [1], [0, 0, 1, 1], [], []>} : vector<8x128xbf16>, vector<128x128xbf16>, vector<8x128xf32> -> vector<8x128xf32>
    %c0_57 = arith.constant 0 : index
    %c0_58 = arith.constant 0 : index
    %85 = vector.load %arg21[%c0_57, %c0_58] : memref<1x128xbf16, #tpu.memory_space<vmem>>, vector<1x128xbf16>
    %86 = arith.extf %85 : vector<1x128xbf16> to vector<1x128xf32>
    %87 = vector.broadcast %86 : vector<1x128xf32> to vector<8x128xf32>
    %88 = arith.addf %84, %87 : vector<8x128xf32>
    %c0_59 = arith.constant 0 : index
    %c0_60 = arith.constant 0 : index
    %89 = vector.load %arg22[%c0_59, %c0_60] : memref<8x128xf32, #tpu.memory_space<vmem>>, vector<8x128xf32>
    tpu.vector_store %arg22[%c0_59, %c0_60], %88 {strides = array<i32>} : memref<8x128xf32, #tpu.memory_space<vmem>>, vector<8x128xf32>,
    return
  }
  func.func @transform_0(%arg0: i32) -> (i32, i32) {
    %c0_i32 = arith.constant 0 : i32
    %c0_i32_0 = arith.constant 0 : i32
    return %arg0, %c0_i32 : i32, i32
  }
  func.func @transform_1(%arg0: i32) -> (i32, i32) {
    %c0_i32 = arith.constant 0 : i32
    %c0_i32_0 = arith.constant 0 : i32
    %c0_i32_1 = arith.constant 0 : i32
    return %c0_i32, %c0_i32_0 : i32, i32
  }
  func.func @transform_2(%arg0: i32) -> (i32, i32) {
    %c0_i32 = arith.constant 0 : i32
    %c0_i32_0 = arith.constant 0 : i32
    %c0_i32_1 = arith.constant 0 : i32
    return %c0_i32, %c0_i32_0 : i32, i32
  }
  func.func @transform_3(%arg0: i32) -> (i32, i32) {
    %c0_i32 = arith.constant 0 : i32
    %c0_i32_0 = arith.constant 0 : i32
    %c0_i32_1 = arith.constant 0 : i32
    return %c0_i32, %c0_i32_0 : i32, i32
  }
  func.func @transform_4(%arg0: i32) -> (i32, i32) {
    %c0_i32 = arith.constant 0 : i32
    %c0_i32_0 = arith.constant 0 : i32
    %c0_i32_1 = arith.constant 0 : i32
    return %c0_i32, %c0_i32_0 : i32, i32
  }
  func.func @transform_5(%arg0: i32) -> (i32, i32) {
    %c0_i32 = arith.constant 0 : i32
    %c0_i32_0 = arith.constant 0 : i32
    %c0_i32_1 = arith.constant 0 : i32
    return %c0_i32, %c0_i32_0 : i32, i32
  }
  func.func @transform_6(%arg0: i32) -> (i32, i32) {
    %c0_i32 = arith.constant 0 : i32
    %c0_i32_0 = arith.constant 0 : i32
    %c0_i32_1 = arith.constant 0 : i32
    return %c0_i32, %c0_i32_0 : i32, i32
  }
  func.func @transform_7(%arg0: i32) -> (i32, i32) {
    %c0_i32 = arith.constant 0 : i32
    %c0_i32_0 = arith.constant 0 : i32
    %c0_i32_1 = arith.constant 0 : i32
    return %c0_i32, %c0_i32_0 : i32, i32
  }
  func.func @transform_8(%arg0: i32) -> (i32, i32) {
    %c0_i32 = arith.constant 0 : i32
    %c0_i32_0 = arith.constant 0 : i32
    %c0_i32_1 = arith.constant 0 : i32
    return %c0_i32, %c0_i32_0 : i32, i32
  }
  func.func @transform_9(%arg0: i32) -> (i32, i32) {
    %c0_i32 = arith.constant 0 : i32
    %c0_i32_0 = arith.constant 0 : i32
    %c0_i32_1 = arith.constant 0 : i32
    return %c0_i32, %c0_i32_0 : i32, i32
  }
  func.func @transform_10(%arg0: i32) -> (i32, i32) {
    %c0_i32 = arith.constant 0 : i32
    %c0_i32_0 = arith.constant 0 : i32
    %c0_i32_1 = arith.constant 0 : i32
    return %c0_i32, %c0_i32_0 : i32, i32
  }
  func.func @transform_11(%arg0: i32) -> (i32, i32) {
    %c0_i32 = arith.constant 0 : i32
    %c0_i32_0 = arith.constant 0 : i32
    %c0_i32_1 = arith.constant 0 : i32
    return %c0_i32, %c0_i32_0 : i32, i32
  }
  func.func @transform_12(%arg0: i32) -> (i32, i32) {
    %c0_i32 = arith.constant 0 : i32
    %c0_i32_0 = arith.constant 0 : i32
    %c0_i32_1 = arith.constant 0 : i32
    return %c0_i32, %c0_i32_0 : i32, i32
  }
  func.func @transform_13(%arg0: i32) -> (i32, i32) {
    %c0_i32 = arith.constant 0 : i32
    %c0_i32_0 = arith.constant 0 : i32
    %c0_i32_1 = arith.constant 0 : i32
    return %c0_i32, %c0_i32_0 : i32, i32
  }
  func.func @transform_14(%arg0: i32) -> (i32, i32) {
    %c0_i32 = arith.constant 0 : i32
    %c0_i32_0 = arith.constant 0 : i32
    %c0_i32_1 = arith.constant 0 : i32
    return %c0_i32, %c0_i32_0 : i32, i32
  }
  func.func @transform_15(%arg0: i32) -> (i32, i32) {
    %c0_i32 = arith.constant 0 : i32
    %c0_i32_0 = arith.constant 0 : i32
    %c0_i32_1 = arith.constant 0 : i32
    return %c0_i32, %c0_i32_0 : i32, i32
  }
  func.func @transform_16(%arg0: i32) -> (i32, i32) {
    %c0_i32 = arith.constant 0 : i32
    %c0_i32_0 = arith.constant 0 : i32
    %c0_i32_1 = arith.constant 0 : i32
    return %c0_i32, %c0_i32_0 : i32, i32
  }
  func.func @transform_17(%arg0: i32) -> (i32, i32) {
    %c0_i32 = arith.constant 0 : i32
    %c0_i32_0 = arith.constant 0 : i32
    %c0_i32_1 = arith.constant 0 : i32
    return %c0_i32, %c0_i32_0 : i32, i32
  }
  func.func @transform_18(%arg0: i32) -> (i32, i32) {
    %c0_i32 = arith.constant 0 : i32
    %c0_i32_0 = arith.constant 0 : i32
    %c0_i32_1 = arith.constant 0 : i32
    return %c0_i32, %c0_i32_0 : i32, i32
  }
  func.func @transform_19(%arg0: i32) -> (i32, i32) {
    %c0_i32 = arith.constant 0 : i32
    %c0_i32_0 = arith.constant 0 : i32
    %c0_i32_1 = arith.constant 0 : i32
    return %c0_i32, %c0_i32_0 : i32, i32
  }
  func.func @transform_20(%arg0: i32) -> (i32, i32) {
    %c0_i32 = arith.constant 0 : i32
    %c0_i32_0 = arith.constant 0 : i32
    %c0_i32_1 = arith.constant 0 : i32
    return %c0_i32, %c0_i32_0 : i32, i32
  }
  func.func @transform_21(%arg0: i32) -> (i32, i32) {
    %c0_i32 = arith.constant 0 : i32
    %c0_i32_0 = arith.constant 0 : i32
    return %arg0, %c0_i32 : i32, i32
  }
}

module attributes {stable_mosaic.version = 11 : i64} {
  func.func @_fnn_kernel(%arg0: i32, %arg1: memref<8x128xf32, #tpu.memory_space<vmem>>, %arg2: memref<128x128xbf16, #tpu.memory_space<vmem>>, %arg3: memref<1x128xbf16, #tpu.memory_space<vmem>>, %arg4: memref<128x128xbf16, #tpu.memory_space<vmem>>, %arg5: memref<1x128xbf16, #tpu.memory_space<vmem>>, %arg6: memref<128x128xbf16, #tpu.memory_space<vmem>>, %arg7: memref<1x128xbf16, #tpu.memory_space<vmem>>, %arg8: memref<128x128xbf16, #tpu.memory_space<vmem>>, %arg9: memref<1x128xbf16, #tpu.memory_space<vmem>>, %arg10: memref<128x128xbf16, #tpu.memory_space<vmem>>, %arg11: memref<1x128xbf16, #tpu.memory_space<vmem>>, %arg12: memref<128x128xbf16, #tpu.memory_space<vmem>>, %arg13: memref<1x128xbf16, #tpu.memory_space<vmem>>, %arg14: memref<128x128xbf16, #tpu.memory_space<vmem>>, %arg15: memref<1x128xbf16, #tpu.memory_space<vmem>>, %arg16: memref<128x128xbf16, #tpu.memory_space<vmem>>, %arg17: memref<1x128xbf16, #tpu.memory_space<vmem>>, %arg18: memref<128x128xbf16, #tpu.memory_space<vmem>>, %arg19: memref<1x128xbf16, #tpu.memory_space<vmem>>, %arg20: memref<128x128xbf16, #tpu.memory_space<vmem>>, %arg21: memref<1x128xbf16, #tpu.memory_space<vmem>>, %arg22: memref<8x128xf32, #tpu.memory_space<vmem>>) attributes {dimension_semantics = [#tpu.dimension_semantics<parallel>], iteration_bounds = array<i64: 1>, scalar_prefetch = 0 : i64, scratch_operands = 0 : i64, tpu.core_type = #tpu.core_type<tc>, window_params = [{transform_indices = @transform_0, window_bounds = array<i64: 8, 128>}, {pipeline_mode = #tpu.pipeline_mode<synchronous>, transform_indices = @transform_1, window_bounds = array<i64: 128, 128>}, {pipeline_mode = #tpu.pipeline_mode<synchronous>, transform_indices = @transform_2, window_bounds = array<i64: 1, 128>}, {pipeline_mode = #tpu.pipeline_mode<synchronous>, transform_indices = @transform_3, window_bounds = array<i64: 128, 128>}, {pipeline_mode = #tpu.pipeline_mode<synchronous>, transform_indices = @transform_4, window_bounds = array<i64: 1, 128>}, {pipeline_mode = #tpu.pipeline_mode<synchronous>, transform_indices = @transform_5, window_bounds = array<i64: 128, 128>}, {pipeline_mode = #tpu.pipeline_mode<synchronous>, transform_indices = @transform_6, window_bounds = array<i64: 1, 128>}, {pipeline_mode = #tpu.pipeline_mode<synchronous>, transform_indices = @transform_7, window_bounds = array<i64: 128, 128>}, {pipeline_mode = #tpu.pipeline_mode<synchronous>, transform_indices = @transform_8, window_bounds = array<i64: 1, 128>}, {pipeline_mode = #tpu.pipeline_mode<synchronous>, transform_indices = @transform_9, window_bounds = array<i64: 128, 128>}, {pipeline_mode = #tpu.pipeline_mode<synchronous>, transform_indices = @transform_10, window_bounds = array<i64: 1, 128>}, {pipeline_mode = #tpu.pipeline_mode<synchronous>, transform_indices = @transform_11, window_bounds = array<i64: 128, 128>}, {pipeline_mode = #tpu.pipeline_mode<synchronous>, transform_indices = @transform_12, window_bounds = array<i64: 1, 128>}, {pipeline_mode = #tpu.pipeline_mode<synchronous>, transform_indices = @transform_13, window_bounds = array<i64: 128, 128>}, {pipeline_mode = #tpu.pipeline_mode<synchronous>, transform_indices = @transform_14, window_bounds = array<i64: 1, 128>}, {pipeline_mode = #tpu.pipeline_mode<synchronous>, transform_indices = @transform_15, window_bounds = array<i64: 128, 128>}, {pipeline_mode = #tpu.pipeline_mode<synchronous>, transform_indices = @transform_16, window_bounds = array<i64: 1, 128>}, {pipeline_mode = #tpu.pipeline_mode<synchronous>, transform_indices = @transform_17, window_bounds = array<i64: 128, 128>}, {pipeline_mode = #tpu.pipeline_mode<synchronous>, transform_indices = @transform_18, window_bounds = array<i64: 1, 128>}, {pipeline_mode = #tpu.pipeline_mode<synchronous>, transform_indices = @transform_19, window_bounds = array<i64: 128, 128>}, {pipeline_mode = #tpu.pipeline_mode<synchronous>, transform_indices = @transform_20, window_bounds = array<i64: 1, 128>}, {transform_indices = @transform_21, window_bounds = array<i64: 8, 128>}]} {
    %c0 = arith.constant 0 : index
    %c0_0 = arith.constant 0 : index
    %0 = vector.load %arg1[%c0, %c0_0] : memref<8x128xf32, #tpu.memory_space<vmem>>, vector<8x128xf32>
    %1 = arith.truncf %0 : vector<8x128xf32> to vector<8x128xbf16>
    %c0_1 = arith.constant 0 : index
    %c0_2 = arith.constant 0 : index
    %2 = vector.load %arg2[%c0_1, %c0_2] : memref<128x128xbf16, #tpu.memory_space<vmem>>, vector<128x128xbf16>
    %cst = arith.constant dense<0.000000e+00> : vector<8x128xf32>
    %3 = tpu.matmul %1, %2, %cst {dimension_numbers = #tpu.dot_dimension_numbers<[1], [0], [0], [1], [0, 0, 1, 1], [], []>} : vector<8x128xbf16>, vector<128x128xbf16>, vector<8x128xf32> -> vector<8x128xf32>
    %c0_3 = arith.constant 0 : index
    %c0_4 = arith.constant 0 : index
    %4 = vector.load %arg3[%c0_3, %c0_4] : memref<1x128xbf16, #tpu.memory_space<vmem>>, vector<1x128xbf16>
    %5 = arith.extf %4 : vector<1x128xbf16> to vector<1x128xf32>
    %6 = vector.broadcast %5 : vector<1x128xf32> to vector<8x128xf32>
    %7 = arith.addf %3, %6 : vector<8x128xf32>
    %cst_5 = arith.constant 0.000000e+00 : f32
    %8 = vector.broadcast %cst_5 : f32 to vector<8x128xf32>
    %9 = arith.maximumf %7, %8 : vector<8x128xf32>
    %10 = arith.truncf %9 : vector<8x128xf32> to vector<8x128xbf16>
    %c0_6 = arith.constant 0 : index
    %c0_7 = arith.constant 0 : index
    %11 = vector.load %arg4[%c0_6, %c0_7] : memref<128x128xbf16, #tpu.memory_space<vmem>>, vector<128x128xbf16>
    %cst_8 = arith.constant dense<0.000000e+00> : vector<8x128xf32>
    %12 = tpu.matmul %10, %11, %cst_8 {dimension_numbers = #tpu.dot_dimension_numbers<[1], [0], [0], [1], [0, 0, 1, 1], [], []>} : vector<8x128xbf16>, vector<128x128xbf16>, vector<8x128xf32> -> vector<8x128xf32>
    %c0_9 = arith.constant 0 : index
    %c0_10 = arith.constant 0 : index
    %13 = vector.load %arg5[%c0_9, %c0_10] : memref<1x128xbf16, #tpu.memory_space<vmem>>, vector<1x128xbf16>
    %14 = arith.extf %13 : vector<1x128xbf16> to vector<1x128xf32>
    %15 = vector.broadcast %14 : vector<1x128xf32> to vector<8x128xf32>
    %16 = arith.addf %12, %15 : vector<8x128xf32>
    %cst_11 = arith.constant 0.000000e+00 : f32
    %17 = vector.broadcast %cst_11 : f32 to vector<8x128xf32>
    %18 = arith.maximumf %16, %17 : vector<8x128xf32>
    %19 = arith.truncf %18 : vector<8x128xf32> to vector<8x128xbf16>
    %c0_12 = arith.constant 0 : index
    %c0_13 = arith.constant 0 : index
    %20 = vector.load %arg6[%c0_12, %c0_13] : memref<128x128xbf16, #tpu.memory_space<vmem>>, vector<128x128xbf16>
    %cst_14 = arith.constant dense<0.000000e+00> : vector<8x128xf32>
    %21 = tpu.matmul %19, %20, %cst_14 {dimension_numbers = #tpu.dot_dimension_numbers<[1], [0], [0], [1], [0, 0, 1, 1], [], []>} : vector<8x128xbf16>, vector<128x128xbf16>, vector<8x128xf32> -> vector<8x128xf32>
    %c0_15 = arith.constant 0 : index
    %c0_16 = arith.constant 0 : index
    %22 = vector.load %arg7[%c0_15, %c0_16] : memref<1x128xbf16, #tpu.memory_space<vmem>>, vector<1x128xbf16>
    %23 = arith.extf %22 : vector<1x128xbf16> to vector<1x128xf32>
    %24 = vector.broadcast %23 : vector<1x128xf32> to vector<8x128xf32>
    %25 = arith.addf %21, %24 : vector<8x128xf32>
    %cst_17 = arith.constant 0.000000e+00 : f32
    %26 = vector.broadcast %cst_17 : f32 to vector<8x128xf32>
    %27 = arith.maximumf %25, %26 : vector<8x128xf32>
    %28 = arith.truncf %27 : vector<8x128xf32> to vector<8x128xbf16>
    %c0_18 = arith.constant 0 : index
    %c0_19 = arith.constant 0 : index
    %29 = vector.load %arg8[%c0_18, %c0_19] : memref<128x128xbf16, #tpu.memory_space<vmem>>, vector<128x128xbf16>
    %cst_20 = arith.constant dense<0.000000e+00> : vector<8x128xf32>
    %30 = tpu.matmul %28, %29, %cst_20 {dimension_numbers = #tpu.dot_dimension_numbers<[1], [0], [0], [1], [0, 0, 1, 1], [], []>} : vector<8x128xbf16>, vector<128x128xbf16>, vector<8x128xf32> -> vector<8x128xf32>
    %c0_21 = arith.constant 0 : index
    %c0_22 = arith.constant 0 : index
    %31 = vector.load %arg9[%c0_21, %c0_22] : memref<1x128xbf16, #tpu.memory_space<vmem>>, vector<1x128xbf16>
    %32 = arith.extf %31 : vector<1x128xbf16> to vector<1x128xf32>
    %33 = vector.broadcast %32 : vector<1x128xf32> to vector<8x128xf32>
    %34 = arith.addf %30, %33 : vector<8x128xf32>
    %cst_23 = arith.constant 0.000000e+00 : f32
    %35 = vector.broadcast %cst_23 : f32 to vector<8x128xf32>
    %36 = arith.maximumf %34, %35 : vector<8x128xf32>
    %37 = arith.truncf %36 : vector<8x128xf32> to vector<8x128xbf16>
    %c0_24 = arith.constant 0 : index
    %c0_25 = arith.constant 0 : index
    %38 = vector.load %arg10[%c0_24, %c0_25] : memref<128x128xbf16, #tpu.memory_space<vmem>>, vector<128x128xbf16>
    %cst_26 = arith.constant dense<0.000000e+00> : vector<8x128xf32>
    %39 = tpu.matmul %37, %38, %cst_26 {dimension_numbers = #tpu.dot_dimension_numbers<[1], [0], [0], [1], [0, 0, 1, 1], [], []>} : vector<8x128xbf16>, vector<128x128xbf16>, vector<8x128xf32> -> vector<8x128xf32>
    %c0_27 = arith.constant 0 : index
    %c0_28 = arith.constant 0 : index
    %40 = vector.load %arg11[%c0_27, %c0_28] : memref<1x128xbf16, #tpu.memory_space<vmem>>, vector<1x128xbf16>
    %41 = arith.extf %40 : vector<1x128xbf16> to vector<1x128xf32>
    %42 = vector.broadcast %41 : vector<1x128xf32> to vector<8x128xf32>
    %43 = arith.addf %39, %42 : vector<8x128xf32>
    %cst_29 = arith.constant 0.000000e+00 : f32
    %44 = vector.broadcast %cst_29 : f32 to vector<8x128xf32>
    %45 = arith.maximumf %43, %44 : vector<8x128xf32>
    %46 = arith.truncf %45 : vector<8x128xf32> to vector<8x128xbf16>
    %c0_30 = arith.constant 0 : index
    %c0_31 = arith.constant 0 : index
    %47 = vector.load %arg12[%c0_30, %c0_31] : memref<128x128xbf16, #tpu.memory_space<vmem>>, vector<128x128xbf16>
    %cst_32 = arith.constant dense<0.000000e+00> : vector<8x128xf32>
    %48 = tpu.matmul %46, %47, %cst_32 {dimension_numbers = #tpu.dot_dimension_numbers<[1], [0], [0], [1], [0, 0, 1, 1], [], []>} : vector<8x128xbf16>, vector<128x128xbf16>, vector<8x128xf32> -> vector<8x128xf32>
    %c0_33 = arith.constant 0 : index
    %c0_34 = arith.constant 0 : index
    %49 = vector.load %arg13[%c0_33, %c0_34] : memref<1x128xbf16, #tpu.memory_space<vmem>>, vector<1x128xbf16>
    %50 = arith.extf %49 : vector<1x128xbf16> to vector<1x128xf32>
    %51 = vector.broadcast %50 : vector<1x128xf32> to vector<8x128xf32>
    %52 = arith.addf %48, %51 : vector<8x128xf32>
    %cst_35 = arith.constant 0.000000e+00 : f32
    %53 = vector.broadcast %cst_35 : f32 to vector<8x128xf32>
    %54 = arith.maximumf %52, %53 : vector<8x128xf32>
    %55 = arith.truncf %54 : vector<8x128xf32> to vector<8x128xbf16>
    %c0_36 = arith.constant 0 : index
    %c0_37 = arith.constant 0 : index
    %56 = vector.load %arg14[%c0_36, %c0_37] : memref<128x128xbf16, #tpu.memory_space<vmem>>, vector<128x128xbf16>
    %cst_38 = arith.constant dense<0.000000e+00> : vector<8x128xf32>
    %57 = tpu.matmul %55, %56, %cst_38 {dimension_numbers = #tpu.dot_dimension_numbers<[1], [0], [0], [1], [0, 0, 1, 1], [], []>} : vector<8x128xbf16>, vector<128x128xbf16>, vector<8x128xf32> -> vector<8x128xf32>
    %c0_39 = arith.constant 0 : index
    %c0_40 = arith.constant 0 : index
    %58 = vector.load %arg15[%c0_39, %c0_40] : memref<1x128xbf16, #tpu.memory_space<vmem>>, vector<1x128xbf16>
    %59 = arith.extf %58 : vector<1x128xbf16> to vector<1x128xf32>
    %60 = vector.broadcast %59 : vector<1x128xf32> to vector<8x128xf32>
    %61 = arith.addf %57, %60 : vector<8x128xf32>
    %cst_41 = arith.constant 0.000000e+00 : f32
    %62 = vector.broadcast %cst_41 : f32 to vector<8x128xf32>
    %63 = arith.maximumf %61, %62 : vector<8x128xf32>
    %64 = arith.truncf %63 : vector<8x128xf32> to vector<8x128xbf16>
    %c0_42 = arith.constant 0 : index
    %c0_43 = arith.constant 0 : index
    %65 = vector.load %arg16[%c0_42, %c0_43] : memref<128x128xbf16, #tpu.memory_space<vmem>>, vector<128x128xbf16>
    %cst_44 = arith.constant dense<0.000000e+00> : vector<8x128xf32>
    %66 = tpu.matmul %64, %65, %cst_44 {dimension_numbers = #tpu.dot_dimension_numbers<[1], [0], [0], [1], [0, 0, 1, 1], [], []>} : vector<8x128xbf16>, vector<128x128xbf16>, vector<8x128xf32> -> vector<8x128xf32>
    %c0_45 = arith.constant 0 : index
    %c0_46 = arith.constant 0 : index
    %67 = vector.load %arg17[%c0_45, %c0_46] : memref<1x128xbf16, #tpu.memory_space<vmem>>, vector<1x128xbf16>
    %68 = arith.extf %67 : vector<1x128xbf16> to vector<1x128xf32>
    %69 = vector.broadcast %68 : vector<1x128xf32> to vector<8x128xf32>
    %70 = arith.addf %66, %69 : vector<8x128xf32>
    %cst_47 = arith.constant 0.000000e+00 : f32
    %71 = vector.broadcast %cst_47 : f32 to vector<8x128xf32>
    %72 = arith.maximumf %70, %71 : vector<8x128xf32>
    %73 = arith.truncf %72 : vector<8x128xf32> to vector<8x128xbf16>
    %c0_48 = arith.constant 0 : index
    %c0_49 = arith.constant 0 : index
    %74 = vector.load %arg18[%c0_48, %c0_49] : memref<128x128xbf16, #tpu.memory_space<vmem>>, vector<128x128xbf16>
    %cst_50 = arith.constant dense<0.000000e+00> : vector<8x128xf32>
    %75 = tpu.matmul %73, %74, %cst_50 {dimension_numbers = #tpu.dot_dimension_numbers<[1], [0], [0], [1], [0, 0, 1, 1], [], []>} : vector<8x128xbf16>, vector<128x128xbf16>, vector<8x128xf32> -> vector<8x128xf32>
    %c0_51 = arith.constant 0 : index
    %c0_52 = arith.constant 0 : index
    %76 = vector.load %arg19[%c0_51, %c0_52] : memref<1x128xbf16, #tpu.memory_space<vmem>>, vector<1x128xbf16>
    %77 = arith.extf %76 : vector<1x128xbf16> to vector<1x128xf32>
    %78 = vector.broadcast %77 : vector<1x128xf32> to vector<8x128xf32>
    %79 = arith.addf %75, %78 : vector<8x128xf32>
    %cst_53 = arith.constant 0.000000e+00 : f32
    %80 = vector.broadcast %cst_53 : f32 to vector<8x128xf32>
    %81 = arith.maximumf %79, %80 : vector<8x128xf32>
    %82 = arith.truncf %81 : vector<8x128xf32> to vector<8x128xbf16>
    %c0_54 = arith.constant 0 : index
    %c0_55 = arith.constant 0 : index
    %83 = vector.load %arg20[%c0_54, %c0_55] : memref<128x128xbf16, #tpu.memory_space<vmem>>, vector<128x128xbf16>
    %cst_56 = arith.constant dense<0.000000e+00> : vector<8x128xf32>
    %84 = tpu.matmul %82, %83, %cst_56 {dimension_numbers = #tpu.dot_dimension_numbers<[1], [0], [0], [1], [0, 0, 1, 1], [], []>} : vector<8x128xbf16>, vector<128x128xbf16>, vector<8x128xf32> -> vector<8x128xf32>
    %c0_57 = arith.constant 0 : index
    %c0_58 = arith.constant 0 : index
    %85 = vector.load %arg21[%c0_57, %c0_58] : memref<1x128xbf16, #tpu.memory_space<vmem>>, vector<1x128xbf16>
    %86 = arith.extf %85 : vector<1x128xbf16> to vector<1x128xf32>
    %87 = vector.broadcast %86 : vector<1x128xf32> to vector<8x128xf32>
    %88 = arith.addf %84, %87 : vector<8x128xf32>
    %c0_59 = arith.constant 0 : index
    %c0_60 = arith.constant 0 : index
    %89 = vector.load %arg22[%c0_59, %c0_60] : memref<8x128xf32, #tpu.memory_space<vmem>>, vector<8x128xf32>
    tpu.vector_store %arg22[%c0_59, %c0_60], %88 {strides = array<i32>} : memref<8x128xf32, #tpu.memory_space<vmem>>, vector<8x128xf32>,
    return
  }
  func.func @transform_0(%arg0: i32) -> (i32, i32) {
    %c0_i32 = arith.constant 0 : i32
    %c0_i32_0 = arith.constant 0 : i32
    return %arg0, %c0_i32 : i32, i32
  }
  func.func @transform_1(%arg0: i32) -> (i32, i32) {
    %c0_i32 = arith.constant 0 : i32
    %c0_i32_0 = arith.constant 0 : i32
    %c0_i32_1 = arith.constant 0 : i32
    return %c0_i32, %c0_i32_0 : i32, i32
  }
  func.func @transform_2(%arg0: i32) -> (i32, i32) {
    %c0_i32 = arith.constant 0 : i32
    %c0_i32_0 = arith.constant 0 : i32
    %c0_i32_1 = arith.constant 0 : i32
    return %c0_i32, %c0_i32_0 : i32, i32
  }
  func.func @transform_3(%arg0: i32) -> (i32, i32) {
    %c0_i32 = arith.constant 0 : i32
    %c0_i32_0 = arith.constant 0 : i32
    %c0_i32_1 = arith.constant 0 : i32
    return %c0_i32, %c0_i32_0 : i32, i32
  }
  func.func @transform_4(%arg0: i32) -> (i32, i32) {
    %c0_i32 = arith.constant 0 : i32
    %c0_i32_0 = arith.constant 0 : i32
    %c0_i32_1 = arith.constant 0 : i32
    return %c0_i32, %c0_i32_0 : i32, i32
  }
  func.func @transform_5(%arg0: i32) -> (i32, i32) {
    %c0_i32 = arith.constant 0 : i32
    %c0_i32_0 = arith.constant 0 : i32
    %c0_i32_1 = arith.constant 0 : i32
    return %c0_i32, %c0_i32_0 : i32, i32
  }
  func.func @transform_6(%arg0: i32) -> (i32, i32) {
    %c0_i32 = arith.constant 0 : i32
    %c0_i32_0 = arith.constant 0 : i32
    %c0_i32_1 = arith.constant 0 : i32
    return %c0_i32, %c0_i32_0 : i32, i32
  }
  func.func @transform_7(%arg0: i32) -> (i32, i32) {
    %c0_i32 = arith.constant 0 : i32
    %c0_i32_0 = arith.constant 0 : i32
    %c0_i32_1 = arith.constant 0 : i32
    return %c0_i32, %c0_i32_0 : i32, i32
  }
  func.func @transform_8(%arg0: i32) -> (i32, i32) {
    %c0_i32 = arith.constant 0 : i32
    %c0_i32_0 = arith.constant 0 : i32
    %c0_i32_1 = arith.constant 0 : i32
    return %c0_i32, %c0_i32_0 : i32, i32
  }
  func.func @transform_9(%arg0: i32) -> (i32, i32) {
    %c0_i32 = arith.constant 0 : i32
    %c0_i32_0 = arith.constant 0 : i32
    %c0_i32_1 = arith.constant 0 : i32
    return %c0_i32, %c0_i32_0 : i32, i32
  }
  func.func @transform_10(%arg0: i32) -> (i32, i32) {
    %c0_i32 = arith.constant 0 : i32
    %c0_i32_0 = arith.constant 0 : i32
    %c0_i32_1 = arith.constant 0 : i32
    return %c0_i32, %c0_i32_0 : i32, i32
  }
  func.func @transform_11(%arg0: i32) -> (i32, i32) {
    %c0_i32 = arith.constant 0 : i32
    %c0_i32_0 = arith.constant 0 : i32
    %c0_i32_1 = arith.constant 0 : i32
    return %c0_i32, %c0_i32_0 : i32, i32
  }
  func.func @transform_12(%arg0: i32) -> (i32, i32) {
    %c0_i32 = arith.constant 0 : i32
    %c0_i32_0 = arith.constant 0 : i32
    %c0_i32_1 = arith.constant 0 : i32
    return %c0_i32, %c0_i32_0 : i32, i32
  }
  func.func @transform_13(%arg0: i32) -> (i32, i32) {
    %c0_i32 = arith.constant 0 : i32
    %c0_i32_0 = arith.constant 0 : i32
    %c0_i32_1 = arith.constant 0 : i32
    return %c0_i32, %c0_i32_0 : i32, i32
  }
  func.func @transform_14(%arg0: i32) -> (i32, i32) {
    %c0_i32 = arith.constant 0 : i32
    %c0_i32_0 = arith.constant 0 : i32
    %c0_i32_1 = arith.constant 0 : i32
    return %c0_i32, %c0_i32_0 : i32, i32
  }
  func.func @transform_15(%arg0: i32) -> (i32, i32) {
    %c0_i32 = arith.constant 0 : i32
    %c0_i32_0 = arith.constant 0 : i32
    %c0_i32_1 = arith.constant 0 : i32
    return %c0_i32, %c0_i32_0 : i32, i32
  }
  func.func @transform_16(%arg0: i32) -> (i32, i32) {
    %c0_i32 = arith.constant 0 : i32
    %c0_i32_0 = arith.constant 0 : i32
    %c0_i32_1 = arith.constant 0 : i32
    return %c0_i32, %c0_i32_0 : i32, i32
  }
  func.func @transform_17(%arg0: i32) -> (i32, i32) {
    %c0_i32 = arith.constant 0 : i32
    %c0_i32_0 = arith.constant 0 : i32
    %c0_i32_1 = arith.constant 0 : i32
    return %c0_i32, %c0_i32_0 : i32, i32
  }
  func.func @transform_18(%arg0: i32) -> (i32, i32) {
    %c0_i32 = arith.constant 0 : i32
    %c0_i32_0 = arith.constant 0 : i32
    %c0_i32_1 = arith.constant 0 : i32
    return %c0_i32, %c0_i32_0 : i32, i32
  }
  func.func @transform_19(%arg0: i32) -> (i32, i32) {
    %c0_i32 = arith.constant 0 : i32
    %c0_i32_0 = arith.constant 0 : i32
    %c0_i32_1 = arith.constant 0 : i32
    return %c0_i32, %c0_i32_0 : i32, i32
  }
  func.func @transform_20(%arg0: i32) -> (i32, i32) {
    %c0_i32 = arith.constant 0 : i32
    %c0_i32_0 = arith.constant 0 : i32
    %c0_i32_1 = arith.constant 0 : i32
    return %c0_i32, %c0_i32_0 : i32, i32
  }
  func.func @transform_21(%arg0: i32) -> (i32, i32) {
    %c0_i32 = arith.constant 0 : i32
    %c0_i32_0 = arith.constant 0 : i32
    return %arg0, %c0_i32 : i32, i32
  }
}

</mosaic_0001>

<llo_original>
// kernel: fnn_forward.1
$region0: #{fnn_forward.1}
  #allocation0 [shape = 'u32[]', space=smem, size = 0x4, offset = 0x4, fixed_abs, tag = 'smem constant byte address 0x4 - core index']
  #allocation1 [shape = 'u32[144,128]{1,0:T(1,128)}', space=vmem, size = 0x12000, scoped, tag = 'internal scratch']
  %s0 = inlined_call_operand.vmem [shape: f32[8,128], index: 0, kind: input, shape index: {}]
  %s1 = inlined_call_operand.hbm [shape: bf16[128,128], index: 1, kind: input, shape index: {}]
  %s2 = inlined_call_operand.vmem [shape: bf16[1,128], index: 2, kind: input, shape index: {}]
  %s3 = inlined_call_operand.hbm [shape: bf16[128,128], index: 3, kind: input, shape index: {}]
  %s4 = inlined_call_operand.vmem [shape: bf16[1,128], index: 4, kind: input, shape index: {}]
  %s5 = inlined_call_operand.hbm [shape: bf16[128,128], index: 5, kind: input, shape index: {}]
  %s6 = inlined_call_operand.vmem [shape: bf16[1,128], index: 6, kind: input, shape index: {}]
  %s7 = inlined_call_operand.hbm [shape: bf16[128,128], index: 7, kind: input, shape index: {}]
  %s8 = inlined_call_operand.vmem [shape: bf16[1,128], index: 8, kind: input, shape index: {}]
  %s9 = inlined_call_operand.hbm [shape: bf16[128,128], index: 9, kind: input, shape index: {}]
  %s10 = inlined_call_operand.vmem [shape: bf16[1,128], index: 10, kind: input, shape index: {}]
  %s11 = inlined_call_operand.hbm [shape: bf16[128,128], index: 11, kind: input, shape index: {}]
  %s12 = inlined_call_operand.vmem [shape: bf16[1,128], index: 12, kind: input, shape index: {}]
  %s13 = inlined_call_operand.hbm [shape: bf16[128,128], index: 13, kind: input, shape index: {}]
  %s14 = inlined_call_operand.vmem [shape: bf16[1,128], index: 14, kind: input, shape index: {}]
  %s15 = inlined_call_operand.hbm [shape: bf16[128,128], index: 15, kind: input, shape index: {}]
  %s16 = inlined_call_operand.vmem [shape: bf16[1,128], index: 16, kind: input, shape index: {}]
  %s17 = inlined_call_operand.hbm [shape: bf16[128,128], index: 17, kind: input, shape index: {}]
  %s18 = inlined_call_operand.vmem [shape: bf16[1,128], index: 18, kind: input, shape index: {}]
  %s19 = inlined_call_operand.hbm [shape: bf16[128,128], index: 19, kind: input, shape index: {}]
  %s20 = inlined_call_operand.vmem [shape: bf16[1,128], index: 20, kind: input, shape index: {}]
  %s21 = inlined_call_operand.hbm [shape: f32[8,128], index: 21, kind: output, shape index: {}]
  %s22 = sld [smem:[#allocation0]]
  $region134: #{fnn_forward.1} parent=0
    _
  %s24 = ssub.s32 1, %s22
  %s25 = scalar_select 0, %s24, %s22
  $region1: #{fnn_forward.1} parent=0
    #allocation2 [shape = 'u8[32768]{0}', space=vmem, size = 0x8000, scoped, tag = 'input window, operand 1, single buffered']
    #allocation3 [shape = 's32[1]{0}', space=sflag, size = 0x4, scoped, tag = 'scoped memory for fnn_forward.1']
    #allocation4 [shape = 's32[1]{0}', space=sflag, size = 0x4, scoped, tag = 'scoped memory for fnn_forward.1']
    #allocation5 [shape = 'u8[32768]{0}', space=vmem, size = 0x8000, scoped, tag = 'input window, operand 3, single buffered']
    #allocation6 [shape = 's32[1]{0}', space=sflag, size = 0x4, scoped, tag = 'scoped memory for fnn_forward.1']
    #allocation7 [shape = 'u8[32768]{0}', space=vmem, size = 0x8000, scoped, tag = 'input window, operand 5, single buffered']
    #allocation8 [shape = 'u8[32768]{0}', space=vmem, size = 0x8000, scoped, tag = 'input window, operand 7, single buffered']
    #allocation9 [shape = 's32[1]{0}', space=sflag, size = 0x4, scoped, tag = 'scoped memory for fnn_forward.1']
    #allocation10 [shape = 'u8[32768]{0}', space=vmem, size = 0x8000, scoped, tag = 'input window, operand 9, single buffered']
    #allocation11 [shape = 'u8[32768]{0}', space=vmem, size = 0x8000, scoped, tag = 'input window, operand 11, single buffered']
    #allocation12 [shape = 's32[1]{0}', space=sflag, size = 0x4, scoped, tag = 'scoped memory for fnn_forward.1']
    #allocation13 [shape = 'u8[32768]{0}', space=vmem, size = 0x8000, scoped, tag = 'input window, operand 13, single buffered']
    #allocation14 [shape = 'u8[32768]{0}', space=vmem, size = 0x8000, scoped, tag = 'input window, operand 15, single buffered']
    #allocation15 [shape = 's32[1]{0}', space=sflag, size = 0x4, scoped, tag = 'scoped memory for fnn_forward.1']
    #allocation16 [shape = 'u8[32768]{0}', space=vmem, size = 0x8000, scoped, tag = 'input window, operand 17, single buffered']
    #allocation17 [shape = 'u8[32768]{0}', space=vmem, size = 0x8000, scoped, tag = 'input window, operand 19, single buffered']
    #allocation18 [shape = 's32[1]{0}', space=sflag, size = 0x4, scoped, tag = 'scoped memory for fnn_forward.1']
    #allocation19 [shape = 'u8[4096]{0}', space=vmem, size = 0x1000, scoped, tag = 'output window, operand 0, single buffered']
    %26 = vsyncpa [#allocation3], 0
    %27 = vsyncpa [#allocation6], 0
    %28 = vsyncpa [#allocation9], 0
    %29 = vsyncpa [#allocation12], 0
    %30 = vsyncpa [#allocation15], 0
    %31 = vsyncpa [#allocation18], 0
    %32 = vsyncpa [#allocation4], 0
    // Predicated region
    $region2: #{fnn_forward.1} parent=1 // pred_check
      _
    $region3: #{fnn_forward.1} parent=1 // pred_check_branch
      %34 = sbr.rel (0) target = $region5
    $region4: #{fnn_forward.1} parent=1 // pred_region
      _
    $region5: #{fnn_forward.1} parent=1 // pred_fallthru
      _
    // Predicated region
    $region6: #{fnn_forward.1} parent=1 // pred_check
      _
    $region7: #{fnn_forward.1} parent=1 // pred_check_branch
      %36 = sbr.rel (0) target = $region9
    $region8: #{fnn_forward.1} parent=1 // pred_region
      %s38 = ssub.s32 1024, 1024
      %39 = vsyncadd [#allocation3], %s38
      %s40 = sshll.u32 [#allocation2], 4
      %s41 = int_to_ptr.vmem [resolvable:$true] %s40
      %46 = dma.hbm_to_vmem [thread:$0]  %s1, 1024, %s41, [#allocation3], 64, 64, 4
    $region9: #{fnn_forward.1} parent=1 // pred_fallthru
      _
    // Predicated region
    $region10: #{fnn_forward.1} parent=1 // pred_check
      _
    $region11: #{fnn_forward.1} parent=1 // pred_check_branch
      %48 = sbr.rel (0) target = $region13
    $region12: #{fnn_forward.1} parent=1 // pred_region
      _
    $region13: #{fnn_forward.1} parent=1 // pred_fallthru
      _
    // Predicated region
    $region14: #{fnn_forward.1} parent=1 // pred_check
      _
    $region15: #{fnn_forward.1} parent=1 // pred_check_branch
      %50 = sbr.rel (0) target = $region17
    $region16: #{fnn_forward.1} parent=1 // pred_region
      %s52 = ssub.s32 1024, 1024
      %53 = vsyncadd [#allocation6], %s52
      %s54 = sshll.u32 [#allocation5], 4
      %s55 = int_to_ptr.vmem [resolvable:$true] %s54
      %60 = dma.hbm_to_vmem [thread:$0]  %s3, 1024, %s55, [#allocation6], 64, 64, 4
    $region17: #{fnn_forward.1} parent=1 // pred_fallthru
      _
    // Predicated region
    $region18: #{fnn_forward.1} parent=1 // pred_check
      _
    $region19: #{fnn_forward.1} parent=1 // pred_check_branch
      %62 = sbr.rel (0) target = $region21
    $region20: #{fnn_forward.1} parent=1 // pred_region
      _
    $region21: #{fnn_forward.1} parent=1 // pred_fallthru
      _
    // Predicated region
    $region22: #{fnn_forward.1} parent=1 // pred_check
      _
    $region23: #{fnn_forward.1} parent=1 // pred_check_branch
      %64 = sbr.rel (0) target = $region25
    $region24: #{fnn_forward.1} parent=1 // pred_region
      %s66 = ssub.s32 1024, 1024
      %67 = vsyncadd [#allocation6], %s66
      %s68 = sshll.u32 [#allocation7], 4
      %s69 = int_to_ptr.vmem [resolvable:$true] %s68
      %74 = dma.hbm_to_vmem [thread:$0]  %s5, 1024, %s69, [#allocation6], 64, 64, 4
    $region25: #{fnn_forward.1} parent=1 // pred_fallthru
      _
    // Predicated region
    $region26: #{fnn_forward.1} parent=1 // pred_check
      _
    $region27: #{fnn_forward.1} parent=1 // pred_check_branch
      %76 = sbr.rel (0) target = $region29
    $region28: #{fnn_forward.1} parent=1 // pred_region
      _
    $region29: #{fnn_forward.1} parent=1 // pred_fallthru
      _
    // Predicated region
    $region30: #{fnn_forward.1} parent=1 // pred_check
      _
    $region31: #{fnn_forward.1} parent=1 // pred_check_branch
      %78 = sbr.rel (0) target = $region33
    $region32: #{fnn_forward.1} parent=1 // pred_region
      %s80 = ssub.s32 1024, 1024
      %81 = vsyncadd [#allocation9], %s80
      %s82 = sshll.u32 [#allocation8], 4
      %s83 = int_to_ptr.vmem [resolvable:$true] %s82
      %88 = dma.hbm_to_vmem [thread:$0]  %s7, 1024, %s83, [#allocation9], 64, 64, 4
    $region33: #{fnn_forward.1} parent=1 // pred_fallthru
      _
    // Predicated region
    $region34: #{fnn_forward.1} parent=1 // pred_check
      _
    $region35: #{fnn_forward.1} parent=1 // pred_check_branch
      %90 = sbr.rel (0) target = $region37
    $region36: #{fnn_forward.1} parent=1 // pred_region
      _
    $region37: #{fnn_forward.1} parent=1 // pred_fallthru
      _
    // Predicated region
    $region38: #{fnn_forward.1} parent=1 // pred_check
      _
    $region39: #{fnn_forward.1} parent=1 // pred_check_branch
      %92 = sbr.rel (0) target = $region41
    $region40: #{fnn_forward.1} parent=1 // pred_region
      %s94 = ssub.s32 1024, 1024
      %95 = vsyncadd [#allocation9], %s94
      %s96 = sshll.u32 [#allocation10], 4
      %s97 = int_to_ptr.vmem [resolvable:$true] %s96
      %102 = dma.hbm_to_vmem [thread:$0]  %s9, 1024, %s97, [#allocation9], 64, 64, 4
    $region41: #{fnn_forward.1} parent=1 // pred_fallthru
      _
    // Predicated region
    $region42: #{fnn_forward.1} parent=1 // pred_check
      _
    $region43: #{fnn_forward.1} parent=1 // pred_check_branch
      %104 = sbr.rel (0) target = $region45
    $region44: #{fnn_forward.1} parent=1 // pred_region
      _
    $region45: #{fnn_forward.1} parent=1 // pred_fallthru
      _
    // Predicated region
    $region46: #{fnn_forward.1} parent=1 // pred_check
      _
    $region47: #{fnn_forward.1} parent=1 // pred_check_branch
      %106 = sbr.rel (0) target = $region49
    $region48: #{fnn_forward.1} parent=1 // pred_region
      %s108 = ssub.s32 1024, 1024
      %109 = vsyncadd [#allocation12], %s108
      %s110 = sshll.u32 [#allocation11], 4
      %s111 = int_to_ptr.vmem [resolvable:$true] %s110
      %116 = dma.hbm_to_vmem [thread:$0]  %s11, 1024, %s111, [#allocation12], 64, 64, 4
    $region49: #{fnn_forward.1} parent=1 // pred_fallthru
      _
    // Predicated region
    $region50: #{fnn_forward.1} parent=1 // pred_check
      _
    $region51: #{fnn_forward.1} parent=1 // pred_check_branch
      %118 = sbr.rel (0) target = $region53
    $region52: #{fnn_forward.1} parent=1 // pred_region
      _
    $region53: #{fnn_forward.1} parent=1 // pred_fallthru
      _
    // Predicated region
    $region54: #{fnn_forward.1} parent=1 // pred_check
      _
    $region55: #{fnn_forward.1} parent=1 // pred_check_branch
      %120 = sbr.rel (0) target = $region57
    $region56: #{fnn_forward.1} parent=1 // pred_region
      %s122 = ssub.s32 1024, 1024
      %123 = vsyncadd [#allocation12], %s122
      %s124 = sshll.u32 [#allocation13], 4
      %s125 = int_to_ptr.vmem [resolvable:$true] %s124
      %130 = dma.hbm_to_vmem [thread:$0]  %s13, 1024, %s125, [#allocation12], 64, 64, 4
    $region57: #{fnn_forward.1} parent=1 // pred_fallthru
      _
    // Predicated region
    $region58: #{fnn_forward.1} parent=1 // pred_check
      _
    $region59: #{fnn_forward.1} parent=1 // pred_check_branch
      %132 = sbr.rel (0) target = $region61
    $region60: #{fnn_forward.1} parent=1 // pred_region
      _
    $region61: #{fnn_forward.1} parent=1 // pred_fallthru
      _
    // Predicated region
    $region62: #{fnn_forward.1} parent=1 // pred_check
      _
    $region63: #{fnn_forward.1} parent=1 // pred_check_branch
      %134 = sbr.rel (0) target = $region65
    $region64: #{fnn_forward.1} parent=1 // pred_region
      %s136 = ssub.s32 1024, 1024
      %137 = vsyncadd [#allocation15], %s136
      %s138 = sshll.u32 [#allocation14], 4
      %s139 = int_to_ptr.vmem [resolvable:$true] %s138
      %144 = dma.hbm_to_vmem [thread:$0]  %s15, 1024, %s139, [#allocation15], 64, 64, 4
    $region65: #{fnn_forward.1} parent=1 // pred_fallthru
      _
    // Predicated region
    $region66: #{fnn_forward.1} parent=1 // pred_check
      _
    $region67: #{fnn_forward.1} parent=1 // pred_check_branch
      %146 = sbr.rel (0) target = $region69
    $region68: #{fnn_forward.1} parent=1 // pred_region
      _
    $region69: #{fnn_forward.1} parent=1 // pred_fallthru
      _
    // Predicated region
    $region70: #{fnn_forward.1} parent=1 // pred_check
      _
    $region71: #{fnn_forward.1} parent=1 // pred_check_branch
      %148 = sbr.rel (0) target = $region73
    $region72: #{fnn_forward.1} parent=1 // pred_region
      %s150 = ssub.s32 1024, 1024
      %151 = vsyncadd [#allocation15], %s150
      %s152 = sshll.u32 [#allocation16], 4
      %s153 = int_to_ptr.vmem [resolvable:$true] %s152
      %158 = dma.hbm_to_vmem [thread:$0]  %s17, 1024, %s153, [#allocation15], 64, 64, 4
    $region73: #{fnn_forward.1} parent=1 // pred_fallthru
      _
    // Predicated region
    $region74: #{fnn_forward.1} parent=1 // pred_check
      _
    $region75: #{fnn_forward.1} parent=1 // pred_check_branch
      %160 = sbr.rel (0) target = $region77
    $region76: #{fnn_forward.1} parent=1 // pred_region
      _
    $region77: #{fnn_forward.1} parent=1 // pred_fallthru
      _
    // Predicated region
    $region78: #{fnn_forward.1} parent=1 // pred_check
      _
    $region79: #{fnn_forward.1} parent=1 // pred_check_branch
      %162 = sbr.rel (0) target = $region81
    $region80: #{fnn_forward.1} parent=1 // pred_region
      %s164 = ssub.s32 1024, 1024
      %165 = vsyncadd [#allocation18], %s164
      %s166 = sshll.u32 [#allocation17], 4
      %s167 = int_to_ptr.vmem [resolvable:$true] %s166
      %172 = dma.hbm_to_vmem [thread:$0]  %s19, 1024, %s167, [#allocation18], 64, 64, 4
    $region81: #{fnn_forward.1} parent=1 // pred_fallthru
      _
    // Predicated region
    $region82: #{fnn_forward.1} parent=1 // pred_check
      _
    $region83: #{fnn_forward.1} parent=1 // pred_check_branch
      %174 = sbr.rel (0) target = $region85
    $region84: #{fnn_forward.1} parent=1 // pred_region
      _
    $region85: #{fnn_forward.1} parent=1 // pred_fallthru
      _
    // Predicated region
    $region86: #{fnn_forward.1} parent=1 // pred_check
      _
    $region87: #{fnn_forward.1} parent=1 // pred_check_branch
      %176 = sbr.rel (0) target = $region89
    $region88: #{fnn_forward.1} parent=1 // pred_region
      %177 = dma.done [#allocation3], 1024
    $region89: #{fnn_forward.1} parent=1 // pred_fallthru
      _
    // Predicated region
    $region90: #{fnn_forward.1} parent=1 // pred_check
      _
    $region91: #{fnn_forward.1} parent=1 // pred_check_branch
      %179 = sbr.rel (0) target = $region93
    $region92: #{fnn_forward.1} parent=1 // pred_region
      %180 = dma.done [#allocation6], 1024
    $region93: #{fnn_forward.1} parent=1 // pred_fallthru
      _
    // Predicated region
    $region94: #{fnn_forward.1} parent=1 // pred_check
      _
    $region95: #{fnn_forward.1} parent=1 // pred_check_branch
      %182 = sbr.rel (0) target = $region97
    $region96: #{fnn_forward.1} parent=1 // pred_region
      %183 = dma.done [#allocation6], 1024
    $region97: #{fnn_forward.1} parent=1 // pred_fallthru
      _
    // Predicated region
    $region98: #{fnn_forward.1} parent=1 // pred_check
      _
    $region99: #{fnn_forward.1} parent=1 // pred_check_branch
      %185 = sbr.rel (0) target = $region101
    $region100: #{fnn_forward.1} parent=1 // pred_region
      %186 = dma.done [#allocation9], 1024
    $region101: #{fnn_forward.1} parent=1 // pred_fallthru
      _
    // Predicated region
    $region102: #{fnn_forward.1} parent=1 // pred_check
      _
    $region103: #{fnn_forward.1} parent=1 // pred_check_branch
      %188 = sbr.rel (0) target = $region105
    $region104: #{fnn_forward.1} parent=1 // pred_region
      %189 = dma.done [#allocation9], 1024
    $region105: #{fnn_forward.1} parent=1 // pred_fallthru
      _
    // Predicated region
    $region106: #{fnn_forward.1} parent=1 // pred_check
      _
    $region107: #{fnn_forward.1} parent=1 // pred_check_branch
      %191 = sbr.rel (0) target = $region109
    $region108: #{fnn_forward.1} parent=1 // pred_region
      %192 = dma.done [#allocation12], 1024
    $region109: #{fnn_forward.1} parent=1 // pred_fallthru
      _
    // Predicated region
    $region110: #{fnn_forward.1} parent=1 // pred_check
      _
    $region111: #{fnn_forward.1} parent=1 // pred_check_branch
      %194 = sbr.rel (0) target = $region113
    $region112: #{fnn_forward.1} parent=1 // pred_region
      %195 = dma.done [#allocation12], 1024
    $region113: #{fnn_forward.1} parent=1 // pred_fallthru
      _
    // Predicated region
    $region114: #{fnn_forward.1} parent=1 // pred_check
      _
    $region115: #{fnn_forward.1} parent=1 // pred_check_branch
      %197 = sbr.rel (0) target = $region117
    $region116: #{fnn_forward.1} parent=1 // pred_region
      %198 = dma.done [#allocation15], 1024
    $region117: #{fnn_forward.1} parent=1 // pred_fallthru
      _
    // Predicated region
    $region118: #{fnn_forward.1} parent=1 // pred_check
      _
    $region119: #{fnn_forward.1} parent=1 // pred_check_branch
      %200 = sbr.rel (0) target = $region121
    $region120: #{fnn_forward.1} parent=1 // pred_region
      %201 = dma.done [#allocation15], 1024
    $region121: #{fnn_forward.1} parent=1 // pred_fallthru
      _
    // Predicated region
    $region122: #{fnn_forward.1} parent=1 // pred_check
      _
    $region123: #{fnn_forward.1} parent=1 // pred_check_branch
      %203 = sbr.rel (0) target = $region125
    $region124: #{fnn_forward.1} parent=1 // pred_region
      %204 = dma.done [#allocation18], 1024
    $region125: #{fnn_forward.1} parent=1 // pred_fallthru
      _
    %v206 = vld [vmem:[%s0] sm:$0xff]
    %v207 = vpack.c.bf16 %v206, %v206
    %v208 = vld [vmem:[#allocation2] sm:$0xf]
    %v209 = vld [vmem:[#allocation2 + $0x4] sm:$0xf]
    %v210 = vld [vmem:[#allocation2 + $0x8] sm:$0xf]
    %v211 = vld [vmem:[#allocation2 + $0xc] sm:$0xf]
    %v212 = vld [vmem:[#allocation2 + $0x10] sm:$0xf]
    %v213 = vld [vmem:[#allocation2 + $0x14] sm:$0xf]
    %v214 = vld [vmem:[#allocation2 + $0x18] sm:$0xf]
    %v215 = vld [vmem:[#allocation2 + $0x1c] sm:$0xf]
    %v216 = vld [vmem:[#allocation2 + $0x20] sm:$0xf]
    %v217 = vld [vmem:[#allocation2 + $0x24] sm:$0xf]
    %v218 = vld [vmem:[#allocation2 + $0x28] sm:$0xf]
    %v219 = vld [vmem:[#allocation2 + $0x2c] sm:$0xf]
    %v220 = vld [vmem:[#allocation2 + $0x30] sm:$0xf]
    %v221 = vld [vmem:[#allocation2 + $0x34] sm:$0xf]
    %v222 = vld [vmem:[#allocation2 + $0x38] sm:$0xf]
    %v223 = vld [vmem:[#allocation2 + $0x3c] sm:$0xf]
    %v224 = vld [vmem:[%s2] sm:$0x1]
    %v225 = vunpack.c.l.bf16 %v224
    %v226 = vlaneseq
    %v227 = vshrl.u32 %v226, 7
    %v228 = vsub.s32 0, %v227
    %v229 = vrot.slane %v225, %v228
    %v246 = vunpack.c.l.b16 %v208
    %v247 = vunpack.c.l.b16 %v209
    %v248 = vunpack.c.l.b16 %v210
    %v249 = vunpack.c.l.b16 %v211
    %v250 = vunpack.c.l.b16 %v212
    %v251 = vunpack.c.l.b16 %v213
    %v252 = vunpack.c.l.b16 %v214
    %v253 = vunpack.c.l.b16 %v215
    %v254 = vunpack.c.l.b16 %v216
    %v255 = vunpack.c.l.b16 %v217
    %v256 = vunpack.c.l.b16 %v218
    %v257 = vunpack.c.l.b16 %v219
    %v258 = vunpack.c.l.b16 %v220
    %v259 = vunpack.c.l.b16 %v221
    %v260 = vunpack.c.l.b16 %v222
    %v261 = vunpack.c.l.b16 %v223
    %v262 = vpack.c.b16 %v247, %v246
    %v263 = vpack.c.b16 %v249, %v248
    %v264 = vpack.c.b16 %v251, %v250
    %v265 = vpack.c.b16 %v253, %v252
    %v266 = vpack.c.b16 %v255, %v254
    %v267 = vpack.c.b16 %v257, %v256
    %v268 = vpack.c.b16 %v259, %v258
    %v269 = vpack.c.b16 %v261, %v260
    %278 = vmatprep.subr.bf16.mxu0 0
    %279 = vmatpush1.bf16.msra.mxu0 %v262
    %280 = vmatprep.subr.bf16.mxu0 0
    %281 = vmatpush1.bf16.msra.mxu0 %v263
    %282 = vmatprep.subr.bf16.mxu0 0
    %283 = vmatpush1.bf16.msra.mxu0 %v264
    %284 = vmatprep.subr.bf16.mxu0 0
    %285 = vmatpush1.bf16.msra.mxu0 %v265
    %286 = vmatprep.subr.bf16.mxu0 0
    %287 = vmatpush1.bf16.msra.mxu0 %v266
    %288 = vmatprep.subr.bf16.mxu0 0
    %289 = vmatpush1.bf16.msra.mxu0 %v267
    %290 = vmatprep.subr.bf16.mxu0 0
    %291 = vmatpush1.bf16.msra.mxu0 %v268
    %292 = vmatprep.subr.bf16.mxu0 0
    %293 = vmatpush1.bf16.msra.mxu0 %v269
    %294 = vmatprep.subr.bf16.mxu0 0
    %295 = vmatpush1.bf16.msra.mxu0 0
    %296 = vmatprep.subr.bf16.mxu0 0
    %297 = vmatpush1.bf16.msra.mxu0 0
    %298 = vmatprep.subr.bf16.mxu0 0
    %299 = vmatpush1.bf16.msra.mxu0 0
    %300 = vmatprep.subr.bf16.mxu0 0
    %301 = vmatpush1.bf16.msra.mxu0 0
    %302 = vmatprep.subr.bf16.mxu0 0
    %303 = vmatpush1.bf16.msra.mxu0 0
    %304 = vmatprep.subr.bf16.mxu0 0
    %305 = vmatpush1.bf16.msra.mxu0 0
    %306 = vmatprep.subr.bf16.mxu0 0
    %307 = vmatpush1.bf16.msra.mxu0 0
    %308 = vmatprep.subr.bf16.mxu0 0
    %309 = vmatpush1.bf16.msra.mxu0 0
    %310 = vmatprep.mubr.bf16.mxu0 0
    %311 = vmatmul.mubr.bf16.gmra.mrb[0].mxu0 %v207
    %v312 = vpop.f32.mrb[0].mxu0
    %v313 = vadd.f32 %v229, %v312
    %v314 = vpop.f32.mrb[0].mxu0
    %v315 = vpop.f32.mrb[0].mxu0
    %v316 = vpop.f32.mrb[0].mxu0
    %317 = vdwg.mxu0
    %v318 = vmax.f32 %v313, 0.0
    %v319 = vpack.c.bf16 %v318, %v318
    %v320 = vld [vmem:[#allocation5] sm:$0xf]
    %v321 = vld [vmem:[#allocation5 + $0x4] sm:$0xf]
    %v322 = vld [vmem:[#allocation5 + $0x8] sm:$0xf]
    %v323 = vld [vmem:[#allocation5 + $0xc] sm:$0xf]
    %v324 = vld [vmem:[#allocation5 + $0x10] sm:$0xf]
    %v325 = vld [vmem:[#allocation5 + $0x14] sm:$0xf]
    %v326 = vld [vmem:[#allocation5 + $0x18] sm:$0xf]
    %v327 = vld [vmem:[#allocation5 + $0x1c] sm:$0xf]
    %v328 = vld [vmem:[#allocation5 + $0x20] sm:$0xf]
    %v329 = vld [vmem:[#allocation5 + $0x24] sm:$0xf]
    %v330 = vld [vmem:[#allocation5 + $0x28] sm:$0xf]
    %v331 = vld [vmem:[#allocation5 + $0x2c] sm:$0xf]
    %v332 = vld [vmem:[#allocation5 + $0x30] sm:$0xf]
    %v333 = vld [vmem:[#allocation5 + $0x34] sm:$0xf]
    %v334 = vld [vmem:[#allocation5 + $0x38] sm:$0xf]
    %v335 = vld [vmem:[#allocation5 + $0x3c] sm:$0xf]
    %v336 = vld [vmem:[%s4] sm:$0x1]
    %v337 = vunpack.c.l.bf16 %v336
    %v338 = vlaneseq
    %v339 = vshrl.u32 %v338, 7
    %v340 = vsub.s32 0, %v339
    %v341 = vrot.slane %v337, %v340
    %v358 = vunpack.c.l.b16 %v320
    %v359 = vunpack.c.l.b16 %v321
    %v360 = vunpack.c.l.b16 %v322
    %v361 = vunpack.c.l.b16 %v323
    %v362 = vunpack.c.l.b16 %v324
    %v363 = vunpack.c.l.b16 %v325
    %v364 = vunpack.c.l.b16 %v326
    %v365 = vunpack.c.l.b16 %v327
    %v366 = vunpack.c.l.b16 %v328
    %v367 = vunpack.c.l.b16 %v329
    %v368 = vunpack.c.l.b16 %v330
    %v369 = vunpack.c.l.b16 %v331
    %v370 = vunpack.c.l.b16 %v332
    %v371 = vunpack.c.l.b16 %v333
    %v372 = vunpack.c.l.b16 %v334
    %v373 = vunpack.c.l.b16 %v335
    %v374 = vpack.c.b16 %v359, %v358
    %v375 = vpack.c.b16 %v361, %v360
    %v376 = vpack.c.b16 %v363, %v362
    %v377 = vpack.c.b16 %v365, %v364
    %v378 = vpack.c.b16 %v367, %v366
    %v379 = vpack.c.b16 %v369, %v368
    %v380 = vpack.c.b16 %v371, %v370
    %v381 = vpack.c.b16 %v373, %v372
    %390 = vmatprep.subr.bf16.mxu0 0
    %391 = vmatpush1.bf16.msra.mxu0 %v374
    %392 = vmatprep.subr.bf16.mxu0 0
    %393 = vmatpush1.bf16.msra.mxu0 %v375
    %394 = vmatprep.subr.bf16.mxu0 0
    %395 = vmatpush1.bf16.msra.mxu0 %v376
    %396 = vmatprep.subr.bf16.mxu0 0
    %397 = vmatpush1.bf16.msra.mxu0 %v377
    %398 = vmatprep.subr.bf16.mxu0 0
    %399 = vmatpush1.bf16.msra.mxu0 %v378
    %400 = vmatprep.subr.bf16.mxu0 0
    %401 = vmatpush1.bf16.msra.mxu0 %v379
    %402 = vmatprep.subr.bf16.mxu0 0
    %403 = vmatpush1.bf16.msra.mxu0 %v380
    %404 = vmatprep.subr.bf16.mxu0 0
    %405 = vmatpush1.bf16.msra.mxu0 %v381
    %406 = vmatprep.subr.bf16.mxu0 0
    %407 = vmatpush1.bf16.msra.mxu0 0
    %408 = vmatprep.subr.bf16.mxu0 0
    %409 = vmatpush1.bf16.msra.mxu0 0
    %410 = vmatprep.subr.bf16.mxu0 0
    %411 = vmatpush1.bf16.msra.mxu0 0
    %412 = vmatprep.subr.bf16.mxu0 0
    %413 = vmatpush1.bf16.msra.mxu0 0
    %414 = vmatprep.subr.bf16.mxu0 0
    %415 = vmatpush1.bf16.msra.mxu0 0
    %416 = vmatprep.subr.bf16.mxu0 0
    %417 = vmatpush1.bf16.msra.mxu0 0
    %418 = vmatprep.subr.bf16.mxu0 0
    %419 = vmatpush1.bf16.msra.mxu0 0
    %420 = vmatprep.subr.bf16.mxu0 0
    %421 = vmatpush1.bf16.msra.mxu0 0
    %422 = vmatprep.mubr.bf16.mxu0 0
    %423 = vmatmul.mubr.bf16.gmra.mrb[0].mxu0 %v319
    %v424 = vpop.f32.mrb[0].mxu0
    %v425 = vadd.f32 %v341, %v424
    %v426 = vpop.f32.mrb[0].mxu0
    %v427 = vpop.f32.mrb[0].mxu0
    %v428 = vpop.f32.mrb[0].mxu0
    %429 = vdwg.mxu0
    %v430 = vmax.f32 %v425, 0.0
    %v431 = vpack.c.bf16 %v430, %v430
    %v432 = vld [vmem:[#allocation7] sm:$0xf]
    %v433 = vld [vmem:[#allocation7 + $0x4] sm:$0xf]
    %v434 = vld [vmem:[#allocation7 + $0x8] sm:$0xf]
    %v435 = vld [vmem:[#allocation7 + $0xc] sm:$0xf]
    %v436 = vld [vmem:[#allocation7 + $0x10] sm:$0xf]
    %v437 = vld [vmem:[#allocation7 + $0x14] sm:$0xf]
    %v438 = vld [vmem:[#allocation7 + $0x18] sm:$0xf]
    %v439 = vld [vmem:[#allocation7 + $0x1c] sm:$0xf]
    %v440 = vld [vmem:[#allocation7 + $0x20] sm:$0xf]
    %v441 = vld [vmem:[#allocation7 + $0x24] sm:$0xf]
    %v442 = vld [vmem:[#allocation7 + $0x28] sm:$0xf]
    %v443 = vld [vmem:[#allocation7 + $0x2c] sm:$0xf]
    %v444 = vld [vmem:[#allocation7 + $0x30] sm:$0xf]
    %v445 = vld [vmem:[#allocation7 + $0x34] sm:$0xf]
    %v446 = vld [vmem:[#allocation7 + $0x38] sm:$0xf]
    %v447 = vld [vmem:[#allocation7 + $0x3c] sm:$0xf]
    %v448 = vld [vmem:[%s6] sm:$0x1]
    %v449 = vunpack.c.l.bf16 %v448
    %v450 = vlaneseq
    %v451 = vshrl.u32 %v450, 7
    %v452 = vsub.s32 0, %v451
    %v453 = vrot.slane %v449, %v452
    %v470 = vunpack.c.l.b16 %v432
    %v471 = vunpack.c.l.b16 %v433
    %v472 = vunpack.c.l.b16 %v434
    %v473 = vunpack.c.l.b16 %v435
    %v474 = vunpack.c.l.b16 %v436
    %v475 = vunpack.c.l.b16 %v437
    %v476 = vunpack.c.l.b16 %v438
    %v477 = vunpack.c.l.b16 %v439
    %v478 = vunpack.c.l.b16 %v440
    %v479 = vunpack.c.l.b16 %v441
    %v480 = vunpack.c.l.b16 %v442
    %v481 = vunpack.c.l.b16 %v443
    %v482 = vunpack.c.l.b16 %v444
    %v483 = vunpack.c.l.b16 %v445
    %v484 = vunpack.c.l.b16 %v446
    %v485 = vunpack.c.l.b16 %v447
    %v486 = vpack.c.b16 %v471, %v470
    %v487 = vpack.c.b16 %v473, %v472
    %v488 = vpack.c.b16 %v475, %v474
    %v489 = vpack.c.b16 %v477, %v476
    %v490 = vpack.c.b16 %v479, %v478
    %v491 = vpack.c.b16 %v481, %v480
    %v492 = vpack.c.b16 %v483, %v482
    %v493 = vpack.c.b16 %v485, %v484
    %502 = vmatprep.subr.bf16.mxu0 0
    %503 = vmatpush1.bf16.msra.mxu0 %v486
    %504 = vmatprep.subr.bf16.mxu0 0
    %505 = vmatpush1.bf16.msra.mxu0 %v487
    %506 = vmatprep.subr.bf16.mxu0 0
    %507 = vmatpush1.bf16.msra.mxu0 %v488
    %508 = vmatprep.subr.bf16.mxu0 0
    %509 = vmatpush1.bf16.msra.mxu0 %v489
    %510 = vmatprep.subr.bf16.mxu0 0
    %511 = vmatpush1.bf16.msra.mxu0 %v490
    %512 = vmatprep.subr.bf16.mxu0 0
    %513 = vmatpush1.bf16.msra.mxu0 %v491
    %514 = vmatprep.subr.bf16.mxu0 0
    %515 = vmatpush1.bf16.msra.mxu0 %v492
    %516 = vmatprep.subr.bf16.mxu0 0
    %517 = vmatpush1.bf16.msra.mxu0 %v493
    %518 = vmatprep.subr.bf16.mxu0 0
    %519 = vmatpush1.bf16.msra.mxu0 0
    %520 = vmatprep.subr.bf16.mxu0 0
    %521 = vmatpush1.bf16.msra.mxu0 0
    %522 = vmatprep.subr.bf16.mxu0 0
    %523 = vmatpush1.bf16.msra.mxu0 0
    %524 = vmatprep.subr.bf16.mxu0 0
    %525 = vmatpush1.bf16.msra.mxu0 0
    %526 = vmatprep.subr.bf16.mxu0 0
    %527 = vmatpush1.bf16.msra.mxu0 0
    %528 = vmatprep.subr.bf16.mxu0 0
    %529 = vmatpush1.bf16.msra.mxu0 0
    %530 = vmatprep.subr.bf16.mxu0 0
    %531 = vmatpush1.bf16.msra.mxu0 0
    %532 = vmatprep.subr.bf16.mxu0 0
    %533 = vmatpush1.bf16.msra.mxu0 0
    %534 = vmatprep.mubr.bf16.mxu0 0
    %535 = vmatmul.mubr.bf16.gmra.mrb[0].mxu0 %v431
    %v536 = vpop.f32.mrb[0].mxu0
    %v537 = vadd.f32 %v453, %v536
    %v538 = vpop.f32.mrb[0].mxu0
    %v539 = vpop.f32.mrb[0].mxu0
    %v540 = vpop.f32.mrb[0].mxu0
    %541 = vdwg.mxu0
    %v542 = vmax.f32 %v537, 0.0
    %v543 = vpack.c.bf16 %v542, %v542
    %v544 = vld [vmem:[#allocation8] sm:$0xf]
    %v545 = vld [vmem:[#allocation8 + $0x4] sm:$0xf]
    %v546 = vld [vmem:[#allocation8 + $0x8] sm:$0xf]
    %v547 = vld [vmem:[#allocation8 + $0xc] sm:$0xf]
    %v548 = vld [vmem:[#allocation8 + $0x10] sm:$0xf]
    %v549 = vld [vmem:[#allocation8 + $0x14] sm:$0xf]
    %v550 = vld [vmem:[#allocation8 + $0x18] sm:$0xf]
    %v551 = vld [vmem:[#allocation8 + $0x1c] sm:$0xf]
    %v552 = vld [vmem:[#allocation8 + $0x20] sm:$0xf]
    %v553 = vld [vmem:[#allocation8 + $0x24] sm:$0xf]
    %v554 = vld [vmem:[#allocation8 + $0x28] sm:$0xf]
    %v555 = vld [vmem:[#allocation8 + $0x2c] sm:$0xf]
    %v556 = vld [vmem:[#allocation8 + $0x30] sm:$0xf]
    %v557 = vld [vmem:[#allocation8 + $0x34] sm:$0xf]
    %v558 = vld [vmem:[#allocation8 + $0x38] sm:$0xf]
    %v559 = vld [vmem:[#allocation8 + $0x3c] sm:$0xf]
    %v560 = vld [vmem:[%s8] sm:$0x1]
    %v561 = vunpack.c.l.bf16 %v560
    %v562 = vlaneseq
    %v563 = vshrl.u32 %v562, 7
    %v564 = vsub.s32 0, %v563
    %v565 = vrot.slane %v561, %v564
    %v582 = vunpack.c.l.b16 %v544
    %v583 = vunpack.c.l.b16 %v545
    %v584 = vunpack.c.l.b16 %v546
    %v585 = vunpack.c.l.b16 %v547
    %v586 = vunpack.c.l.b16 %v548
    %v587 = vunpack.c.l.b16 %v549
    %v588 = vunpack.c.l.b16 %v550
    %v589 = vunpack.c.l.b16 %v551
    %v590 = vunpack.c.l.b16 %v552
    %v591 = vunpack.c.l.b16 %v553
    %v592 = vunpack.c.l.b16 %v554
    %v593 = vunpack.c.l.b16 %v555
    %v594 = vunpack.c.l.b16 %v556
    %v595 = vunpack.c.l.b16 %v557
    %v596 = vunpack.c.l.b16 %v558
    %v597 = vunpack.c.l.b16 %v559
    %v598 = vpack.c.b16 %v583, %v582
    %v599 = vpack.c.b16 %v585, %v584
    %v600 = vpack.c.b16 %v587, %v586
    %v601 = vpack.c.b16 %v589, %v588
    %v602 = vpack.c.b16 %v591, %v590
    %v603 = vpack.c.b16 %v593, %v592
    %v604 = vpack.c.b16 %v595, %v594
    %v605 = vpack.c.b16 %v597, %v596
    %614 = vmatprep.subr.bf16.mxu0 0
    %615 = vmatpush1.bf16.msra.mxu0 %v598
    %616 = vmatprep.subr.bf16.mxu0 0
    %617 = vmatpush1.bf16.msra.mxu0 %v599
    %618 = vmatprep.subr.bf16.mxu0 0
    %619 = vmatpush1.bf16.msra.mxu0 %v600
    %620 = vmatprep.subr.bf16.mxu0 0
    %621 = vmatpush1.bf16.msra.mxu0 %v601
    %622 = vmatprep.subr.bf16.mxu0 0
    %623 = vmatpush1.bf16.msra.mxu0 %v602
    %624 = vmatprep.subr.bf16.mxu0 0
    %625 = vmatpush1.bf16.msra.mxu0 %v603
    %626 = vmatprep.subr.bf16.mxu0 0
    %627 = vmatpush1.bf16.msra.mxu0 %v604
    %628 = vmatprep.subr.bf16.mxu0 0
    %629 = vmatpush1.bf16.msra.mxu0 %v605
    %630 = vmatprep.subr.bf16.mxu0 0
    %631 = vmatpush1.bf16.msra.mxu0 0
    %632 = vmatprep.subr.bf16.mxu0 0
    %633 = vmatpush1.bf16.msra.mxu0 0
    %634 = vmatprep.subr.bf16.mxu0 0
    %635 = vmatpush1.bf16.msra.mxu0 0
    %636 = vmatprep.subr.bf16.mxu0 0
    %637 = vmatpush1.bf16.msra.mxu0 0
    %638 = vmatprep.subr.bf16.mxu0 0
    %639 = vmatpush1.bf16.msra.mxu0 0
    %640 = vmatprep.subr.bf16.mxu0 0
    %641 = vmatpush1.bf16.msra.mxu0 0
    %642 = vmatprep.subr.bf16.mxu0 0
    %643 = vmatpush1.bf16.msra.mxu0 0
    %644 = vmatprep.subr.bf16.mxu0 0
    %645 = vmatpush1.bf16.msra.mxu0 0
    %646 = vmatprep.mubr.bf16.mxu0 0
    %647 = vmatmul.mubr.bf16.gmra.mrb[0].mxu0 %v543
    %v648 = vpop.f32.mrb[0].mxu0
    %v649 = vadd.f32 %v565, %v648
    %v650 = vpop.f32.mrb[0].mxu0
    %v651 = vpop.f32.mrb[0].mxu0
    %v652 = vpop.f32.mrb[0].mxu0
    %653 = vdwg.mxu0
    %v654 = vmax.f32 %v649, 0.0
    %v655 = vpack.c.bf16 %v654, %v654
    %v656 = vld [vmem:[#allocation10] sm:$0xf]
    %v657 = vld [vmem:[#allocation10 + $0x4] sm:$0xf]
    %v658 = vld [vmem:[#allocation10 + $0x8] sm:$0xf]
    %v659 = vld [vmem:[#allocation10 + $0xc] sm:$0xf]
    %v660 = vld [vmem:[#allocation10 + $0x10] sm:$0xf]
    %v661 = vld [vmem:[#allocation10 + $0x14] sm:$0xf]
    %v662 = vld [vmem:[#allocation10 + $0x18] sm:$0xf]
    %v663 = vld [vmem:[#allocation10 + $0x1c] sm:$0xf]
    %v664 = vld [vmem:[#allocation10 + $0x20] sm:$0xf]
    %v665 = vld [vmem:[#allocation10 + $0x24] sm:$0xf]
    %v666 = vld [vmem:[#allocation10 + $0x28] sm:$0xf]
    %v667 = vld [vmem:[#allocation10 + $0x2c] sm:$0xf]
    %v668 = vld [vmem:[#allocation10 + $0x30] sm:$0xf]
    %v669 = vld [vmem:[#allocation10 + $0x34] sm:$0xf]
    %v670 = vld [vmem:[#allocation10 + $0x38] sm:$0xf]
    %v671 = vld [vmem:[#allocation10 + $0x3c] sm:$0xf]
    %v672 = vld [vmem:[%s10] sm:$0x1]
    %v673 = vunpack.c.l.bf16 %v672
    %v674 = vlaneseq
    %v675 = vshrl.u32 %v674, 7
    %v676 = vsub.s32 0, %v675
    %v677 = vrot.slane %v673, %v676
    %v694 = vunpack.c.l.b16 %v656
    %v695 = vunpack.c.l.b16 %v657
    %v696 = vunpack.c.l.b16 %v658
    %v697 = vunpack.c.l.b16 %v659
    %v698 = vunpack.c.l.b16 %v660
    %v699 = vunpack.c.l.b16 %v661
    %v700 = vunpack.c.l.b16 %v662
    %v701 = vunpack.c.l.b16 %v663
    %v702 = vunpack.c.l.b16 %v664
    %v703 = vunpack.c.l.b16 %v665
    %v704 = vunpack.c.l.b16 %v666
    %v705 = vunpack.c.l.b16 %v667
    %v706 = vunpack.c.l.b16 %v668
    %v707 = vunpack.c.l.b16 %v669
    %v708 = vunpack.c.l.b16 %v670
    %v709 = vunpack.c.l.b16 %v671
    %v710 = vpack.c.b16 %v695, %v694
    %v711 = vpack.c.b16 %v697, %v696
    %v712 = vpack.c.b16 %v699, %v698
    %v713 = vpack.c.b16 %v701, %v700
    %v714 = vpack.c.b16 %v703, %v702
    %v715 = vpack.c.b16 %v705, %v704
    %v716 = vpack.c.b16 %v707, %v706
    %v717 = vpack.c.b16 %v709, %v708
    %726 = vmatprep.subr.bf16.mxu0 0
    %727 = vmatpush1.bf16.msra.mxu0 %v710
    %728 = vmatprep.subr.bf16.mxu0 0
    %729 = vmatpush1.bf16.msra.mxu0 %v711
    %730 = vmatprep.subr.bf16.mxu0 0
    %731 = vmatpush1.bf16.msra.mxu0 %v712
    %732 = vmatprep.subr.bf16.mxu0 0
    %733 = vmatpush1.bf16.msra.mxu0 %v713
    %734 = vmatprep.subr.bf16.mxu0 0
    %735 = vmatpush1.bf16.msra.mxu0 %v714
    %736 = vmatprep.subr.bf16.mxu0 0
    %737 = vmatpush1.bf16.msra.mxu0 %v715
    %738 = vmatprep.subr.bf16.mxu0 0
    %739 = vmatpush1.bf16.msra.mxu0 %v716
    %740 = vmatprep.subr.bf16.mxu0 0
    %741 = vmatpush1.bf16.msra.mxu0 %v717
    %742 = vmatprep.subr.bf16.mxu0 0
    %743 = vmatpush1.bf16.msra.mxu0 0
    %744 = vmatprep.subr.bf16.mxu0 0
    %745 = vmatpush1.bf16.msra.mxu0 0
    %746 = vmatprep.subr.bf16.mxu0 0
    %747 = vmatpush1.bf16.msra.mxu0 0
    %748 = vmatprep.subr.bf16.mxu0 0
    %749 = vmatpush1.bf16.msra.mxu0 0
    %750 = vmatprep.subr.bf16.mxu0 0
    %751 = vmatpush1.bf16.msra.mxu0 0
    %752 = vmatprep.subr.bf16.mxu0 0
    %753 = vmatpush1.bf16.msra.mxu0 0
    %754 = vmatprep.subr.bf16.mxu0 0
    %755 = vmatpush1.bf16.msra.mxu0 0
    %756 = vmatprep.subr.bf16.mxu0 0
    %757 = vmatpush1.bf16.msra.mxu0 0
    %758 = vmatprep.mubr.bf16.mxu0 0
    %759 = vmatmul.mubr.bf16.gmra.mrb[0].mxu0 %v655
    %v760 = vpop.f32.mrb[0].mxu0
    %v761 = vadd.f32 %v677, %v760
    %v762 = vpop.f32.mrb[0].mxu0
    %v763 = vpop.f32.mrb[0].mxu0
    %v764 = vpop.f32.mrb[0].mxu0
    %765 = vdwg.mxu0
    %v766 = vmax.f32 %v761, 0.0
    %v767 = vpack.c.bf16 %v766, %v766
    %v768 = vld [vmem:[#allocation11] sm:$0xf]
    %v769 = vld [vmem:[#allocation11 + $0x4] sm:$0xf]
    %v770 = vld [vmem:[#allocation11 + $0x8] sm:$0xf]
    %v771 = vld [vmem:[#allocation11 + $0xc] sm:$0xf]
    %v772 = vld [vmem:[#allocation11 + $0x10] sm:$0xf]
    %v773 = vld [vmem:[#allocation11 + $0x14] sm:$0xf]
    %v774 = vld [vmem:[#allocation11 + $0x18] sm:$0xf]
    %v775 = vld [vmem:[#allocation11 + $0x1c] sm:$0xf]
    %v776 = vld [vmem:[#allocation11 + $0x20] sm:$0xf]
    %v777 = vld [vmem:[#allocation11 + $0x24] sm:$0xf]
    %v778 = vld [vmem:[#allocation11 + $0x28] sm:$0xf]
    %v779 = vld [vmem:[#allocation11 + $0x2c] sm:$0xf]
    %v780 = vld [vmem:[#allocation11 + $0x30] sm:$0xf]
    %v781 = vld [vmem:[#allocation11 + $0x34] sm:$0xf]
    %v782 = vld [vmem:[#allocation11 + $0x38] sm:$0xf]
    %v783 = vld [vmem:[#allocation11 + $0x3c] sm:$0xf]
    %v784 = vld [vmem:[%s12] sm:$0x1]
    %v785 = vunpack.c.l.bf16 %v784
    %v786 = vlaneseq
    %v787 = vshrl.u32 %v786, 7
    %v788 = vsub.s32 0, %v787
    %v789 = vrot.slane %v785, %v788
    %v806 = vunpack.c.l.b16 %v768
    %v807 = vunpack.c.l.b16 %v769
    %v808 = vunpack.c.l.b16 %v770
    %v809 = vunpack.c.l.b16 %v771
    %v810 = vunpack.c.l.b16 %v772
    %v811 = vunpack.c.l.b16 %v773
    %v812 = vunpack.c.l.b16 %v774
    %v813 = vunpack.c.l.b16 %v775
    %v814 = vunpack.c.l.b16 %v776
    %v815 = vunpack.c.l.b16 %v777
    %v816 = vunpack.c.l.b16 %v778
    %v817 = vunpack.c.l.b16 %v779
    %v818 = vunpack.c.l.b16 %v780
    %v819 = vunpack.c.l.b16 %v781
    %v820 = vunpack.c.l.b16 %v782
    %v821 = vunpack.c.l.b16 %v783
    %v822 = vpack.c.b16 %v807, %v806
    %v823 = vpack.c.b16 %v809, %v808
    %v824 = vpack.c.b16 %v811, %v810
    %v825 = vpack.c.b16 %v813, %v812
    %v826 = vpack.c.b16 %v815, %v814
    %v827 = vpack.c.b16 %v817, %v816
    %v828 = vpack.c.b16 %v819, %v818
    %v829 = vpack.c.b16 %v821, %v820
    %838 = vmatprep.subr.bf16.mxu0 0
    %839 = vmatpush1.bf16.msra.mxu0 %v822
    %840 = vmatprep.subr.bf16.mxu0 0
    %841 = vmatpush1.bf16.msra.mxu0 %v823
    %842 = vmatprep.subr.bf16.mxu0 0
    %843 = vmatpush1.bf16.msra.mxu0 %v824
    %844 = vmatprep.subr.bf16.mxu0 0
    %845 = vmatpush1.bf16.msra.mxu0 %v825
    %846 = vmatprep.subr.bf16.mxu0 0
    %847 = vmatpush1.bf16.msra.mxu0 %v826
    %848 = vmatprep.subr.bf16.mxu0 0
    %849 = vmatpush1.bf16.msra.mxu0 %v827
    %850 = vmatprep.subr.bf16.mxu0 0
    %851 = vmatpush1.bf16.msra.mxu0 %v828
    %852 = vmatprep.subr.bf16.mxu0 0
    %853 = vmatpush1.bf16.msra.mxu0 %v829
    %854 = vmatprep.subr.bf16.mxu0 0
    %855 = vmatpush1.bf16.msra.mxu0 0
    %856 = vmatprep.subr.bf16.mxu0 0
    %857 = vmatpush1.bf16.msra.mxu0 0
    %858 = vmatprep.subr.bf16.mxu0 0
    %859 = vmatpush1.bf16.msra.mxu0 0
    %860 = vmatprep.subr.bf16.mxu0 0
    %861 = vmatpush1.bf16.msra.mxu0 0
    %862 = vmatprep.subr.bf16.mxu0 0
    %863 = vmatpush1.bf16.msra.mxu0 0
    %864 = vmatprep.subr.bf16.mxu0 0
    %865 = vmatpush1.bf16.msra.mxu0 0
    %866 = vmatprep.subr.bf16.mxu0 0
    %867 = vmatpush1.bf16.msra.mxu0 0
    %868 = vmatprep.subr.bf16.mxu0 0
    %869 = vmatpush1.bf16.msra.mxu0 0
    %870 = vmatprep.mubr.bf16.mxu0 0
    %871 = vmatmul.mubr.bf16.gmra.mrb[0].mxu0 %v767
    %v872 = vpop.f32.mrb[0].mxu0
    %v873 = vadd.f32 %v789, %v872
    %v874 = vpop.f32.mrb[0].mxu0
    %v875 = vpop.f32.mrb[0].mxu0
    %v876 = vpop.f32.mrb[0].mxu0
    %877 = vdwg.mxu0
    %v878 = vmax.f32 %v873, 0.0
    %v879 = vpack.c.bf16 %v878, %v878
    %v880 = vld [vmem:[#allocation13] sm:$0xf]
    %v881 = vld [vmem:[#allocation13 + $0x4] sm:$0xf]
    %v882 = vld [vmem:[#allocation13 + $0x8] sm:$0xf]
    %v883 = vld [vmem:[#allocation13 + $0xc] sm:$0xf]
    %v884 = vld [vmem:[#allocation13 + $0x10] sm:$0xf]
    %v885 = vld [vmem:[#allocation13 + $0x14] sm:$0xf]
    %v886 = vld [vmem:[#allocation13 + $0x18] sm:$0xf]
    %v887 = vld [vmem:[#allocation13 + $0x1c] sm:$0xf]
    %v888 = vld [vmem:[#allocation13 + $0x20] sm:$0xf]
    %v889 = vld [vmem:[#allocation13 + $0x24] sm:$0xf]
    %v890 = vld [vmem:[#allocation13 + $0x28] sm:$0xf]
    %v891 = vld [vmem:[#allocation13 + $0x2c] sm:$0xf]
    %v892 = vld [vmem:[#allocation13 + $0x30] sm:$0xf]
    %v893 = vld [vmem:[#allocation13 + $0x34] sm:$0xf]
    %v894 = vld [vmem:[#allocation13 + $0x38] sm:$0xf]
    %v895 = vld [vmem:[#allocation13 + $0x3c] sm:$0xf]
    %v896 = vld [vmem:[%s14] sm:$0x1]
    %v897 = vunpack.c.l.bf16 %v896
    %v898 = vlaneseq
    %v899 = vshrl.u32 %v898, 7
    %v900 = vsub.s32 0, %v899
    %v901 = vrot.slane %v897, %v900
    %v918 = vunpack.c.l.b16 %v880
    %v919 = vunpack.c.l.b16 %v881
    %v920 = vunpack.c.l.b16 %v882
    %v921 = vunpack.c.l.b16 %v883
    %v922 = vunpack.c.l.b16 %v884
    %v923 = vunpack.c.l.b16 %v885
    %v924 = vunpack.c.l.b16 %v886
    %v925 = vunpack.c.l.b16 %v887
    %v926 = vunpack.c.l.b16 %v888
    %v927 = vunpack.c.l.b16 %v889
    %v928 = vunpack.c.l.b16 %v890
    %v929 = vunpack.c.l.b16 %v891
    %v930 = vunpack.c.l.b16 %v892
    %v931 = vunpack.c.l.b16 %v893
    %v932 = vunpack.c.l.b16 %v894
    %v933 = vunpack.c.l.b16 %v895
    %v934 = vpack.c.b16 %v919, %v918
    %v935 = vpack.c.b16 %v921, %v920
    %v936 = vpack.c.b16 %v923, %v922
    %v937 = vpack.c.b16 %v925, %v924
    %v938 = vpack.c.b16 %v927, %v926
    %v939 = vpack.c.b16 %v929, %v928
    %v940 = vpack.c.b16 %v931, %v930
    %v941 = vpack.c.b16 %v933, %v932
    %950 = vmatprep.subr.bf16.mxu0 0
    %951 = vmatpush1.bf16.msra.mxu0 %v934
    %952 = vmatprep.subr.bf16.mxu0 0
    %953 = vmatpush1.bf16.msra.mxu0 %v935
    %954 = vmatprep.subr.bf16.mxu0 0
    %955 = vmatpush1.bf16.msra.mxu0 %v936
    %956 = vmatprep.subr.bf16.mxu0 0
    %957 = vmatpush1.bf16.msra.mxu0 %v937
    %958 = vmatprep.subr.bf16.mxu0 0
    %959 = vmatpush1.bf16.msra.mxu0 %v938
    %960 = vmatprep.subr.bf16.mxu0 0
    %961 = vmatpush1.bf16.msra.mxu0 %v939
    %962 = vmatprep.subr.bf16.mxu0 0
    %963 = vmatpush1.bf16.msra.mxu0 %v940
    %964 = vmatprep.subr.bf16.mxu0 0
    %965 = vmatpush1.bf16.msra.mxu0 %v941
    %966 = vmatprep.subr.bf16.mxu0 0
    %967 = vmatpush1.bf16.msra.mxu0 0
    %968 = vmatprep.subr.bf16.mxu0 0
    %969 = vmatpush1.bf16.msra.mxu0 0
    %970 = vmatprep.subr.bf16.mxu0 0
    %971 = vmatpush1.bf16.msra.mxu0 0
    %972 = vmatprep.subr.bf16.mxu0 0
    %973 = vmatpush1.bf16.msra.mxu0 0
    %974 = vmatprep.subr.bf16.mxu0 0
    %975 = vmatpush1.bf16.msra.mxu0 0
    %976 = vmatprep.subr.bf16.mxu0 0
    %977 = vmatpush1.bf16.msra.mxu0 0
    %978 = vmatprep.subr.bf16.mxu0 0
    %979 = vmatpush1.bf16.msra.mxu0 0
    %980 = vmatprep.subr.bf16.mxu0 0
    %981 = vmatpush1.bf16.msra.mxu0 0
    %982 = vmatprep.mubr.bf16.mxu0 0
    %983 = vmatmul.mubr.bf16.gmra.mrb[0].mxu0 %v879
    %v984 = vpop.f32.mrb[0].mxu0
    %v985 = vadd.f32 %v901, %v984
    %v986 = vpop.f32.mrb[0].mxu0
    %v987 = vpop.f32.mrb[0].mxu0
    %v988 = vpop.f32.mrb[0].mxu0
    %989 = vdwg.mxu0
    %v990 = vmax.f32 %v985, 0.0
    %v991 = vpack.c.bf16 %v990, %v990
    %v992 = vld [vmem:[#allocation14] sm:$0xf]
    %v993 = vld [vmem:[#allocation14 + $0x4] sm:$0xf]
    %v994 = vld [vmem:[#allocation14 + $0x8] sm:$0xf]
    %v995 = vld [vmem:[#allocation14 + $0xc] sm:$0xf]
    %v996 = vld [vmem:[#allocation14 + $0x10] sm:$0xf]
    %v997 = vld [vmem:[#allocation14 + $0x14] sm:$0xf]
    %v998 = vld [vmem:[#allocation14 + $0x18] sm:$0xf]
    %v999 = vld [vmem:[#allocation14 + $0x1c] sm:$0xf]
    %v1000 = vld [vmem:[#allocation14 + $0x20] sm:$0xf]
    %v1001 = vld [vmem:[#allocation14 + $0x24] sm:$0xf]
    %v1002 = vld [vmem:[#allocation14 + $0x28] sm:$0xf]
    %v1003 = vld [vmem:[#allocation14 + $0x2c] sm:$0xf]
    %v1004 = vld [vmem:[#allocation14 + $0x30] sm:$0xf]
    %v1005 = vld [vmem:[#allocation14 + $0x34] sm:$0xf]
    %v1006 = vld [vmem:[#allocation14 + $0x38] sm:$0xf]
    %v1007 = vld [vmem:[#allocation14 + $0x3c] sm:$0xf]
    %v1008 = vld [vmem:[%s16] sm:$0x1]
    %v1009 = vunpack.c.l.bf16 %v1008
    %v1010 = vlaneseq
    %v1011 = vshrl.u32 %v1010, 7
    %v1012 = vsub.s32 0, %v1011
    %v1013 = vrot.slane %v1009, %v1012
    %v1030 = vunpack.c.l.b16 %v992
    %v1031 = vunpack.c.l.b16 %v993
    %v1032 = vunpack.c.l.b16 %v994
    %v1033 = vunpack.c.l.b16 %v995
    %v1034 = vunpack.c.l.b16 %v996
    %v1035 = vunpack.c.l.b16 %v997
    %v1036 = vunpack.c.l.b16 %v998
    %v1037 = vunpack.c.l.b16 %v999
    %v1038 = vunpack.c.l.b16 %v1000
    %v1039 = vunpack.c.l.b16 %v1001
    %v1040 = vunpack.c.l.b16 %v1002
    %v1041 = vunpack.c.l.b16 %v1003
    %v1042 = vunpack.c.l.b16 %v1004
    %v1043 = vunpack.c.l.b16 %v1005
    %v1044 = vunpack.c.l.b16 %v1006
    %v1045 = vunpack.c.l.b16 %v1007
    %v1046 = vpack.c.b16 %v1031, %v1030
    %v1047 = vpack.c.b16 %v1033, %v1032
    %v1048 = vpack.c.b16 %v1035, %v1034
    %v1049 = vpack.c.b16 %v1037, %v1036
    %v1050 = vpack.c.b16 %v1039, %v1038
    %v1051 = vpack.c.b16 %v1041, %v1040
    %v1052 = vpack.c.b16 %v1043, %v1042
    %v1053 = vpack.c.b16 %v1045, %v1044
    %1062 = vmatprep.subr.bf16.mxu0 0
    %1063 = vmatpush1.bf16.msra.mxu0 %v1046
    %1064 = vmatprep.subr.bf16.mxu0 0
    %1065 = vmatpush1.bf16.msra.mxu0 %v1047
    %1066 = vmatprep.subr.bf16.mxu0 0
    %1067 = vmatpush1.bf16.msra.mxu0 %v1048
    %1068 = vmatprep.subr.bf16.mxu0 0
    %1069 = vmatpush1.bf16.msra.mxu0 %v1049
    %1070 = vmatprep.subr.bf16.mxu0 0
    %1071 = vmatpush1.bf16.msra.mxu0 %v1050
    %1072 = vmatprep.subr.bf16.mxu0 0
    %1073 = vmatpush1.bf16.msra.mxu0 %v1051
    %1074 = vmatprep.subr.bf16.mxu0 0
    %1075 = vmatpush1.bf16.msra.mxu0 %v1052
    %1076 = vmatprep.subr.bf16.mxu0 0
    %1077 = vmatpush1.bf16.msra.mxu0 %v1053
    %1078 = vmatprep.subr.bf16.mxu0 0
    %1079 = vmatpush1.bf16.msra.mxu0 0
    %1080 = vmatprep.subr.bf16.mxu0 0
    %1081 = vmatpush1.bf16.msra.mxu0 0
    %1082 = vmatprep.subr.bf16.mxu0 0
    %1083 = vmatpush1.bf16.msra.mxu0 0
    %1084 = vmatprep.subr.bf16.mxu0 0
    %1085 = vmatpush1.bf16.msra.mxu0 0
    %1086 = vmatprep.subr.bf16.mxu0 0
    %1087 = vmatpush1.bf16.msra.mxu0 0
    %1088 = vmatprep.subr.bf16.mxu0 0
    %1089 = vmatpush1.bf16.msra.mxu0 0
    %1090 = vmatprep.subr.bf16.mxu0 0
    %1091 = vmatpush1.bf16.msra.mxu0 0
    %1092 = vmatprep.subr.bf16.mxu0 0
    %1093 = vmatpush1.bf16.msra.mxu0 0
    %1094 = vmatprep.mubr.bf16.mxu0 0
    %1095 = vmatmul.mubr.bf16.gmra.mrb[0].mxu0 %v991
    %v1096 = vpop.f32.mrb[0].mxu0
    %v1097 = vadd.f32 %v1013, %v1096
    %v1098 = vpop.f32.mrb[0].mxu0
    %v1099 = vpop.f32.mrb[0].mxu0
    %v1100 = vpop.f32.mrb[0].mxu0
    %1101 = vdwg.mxu0
    %v1102 = vmax.f32 %v1097, 0.0
    %v1103 = vpack.c.bf16 %v1102, %v1102
    %v1104 = vld [vmem:[#allocation16] sm:$0xf]
    %v1105 = vld [vmem:[#allocation16 + $0x4] sm:$0xf]
    %v1106 = vld [vmem:[#allocation16 + $0x8] sm:$0xf]
    %v1107 = vld [vmem:[#allocation16 + $0xc] sm:$0xf]
    %v1108 = vld [vmem:[#allocation16 + $0x10] sm:$0xf]
    %v1109 = vld [vmem:[#allocation16 + $0x14] sm:$0xf]
    %v1110 = vld [vmem:[#allocation16 + $0x18] sm:$0xf]
    %v1111 = vld [vmem:[#allocation16 + $0x1c] sm:$0xf]
    %v1112 = vld [vmem:[#allocation16 + $0x20] sm:$0xf]
    %v1113 = vld [vmem:[#allocation16 + $0x24] sm:$0xf]
    %v1114 = vld [vmem:[#allocation16 + $0x28] sm:$0xf]
    %v1115 = vld [vmem:[#allocation16 + $0x2c] sm:$0xf]
    %v1116 = vld [vmem:[#allocation16 + $0x30] sm:$0xf]
    %v1117 = vld [vmem:[#allocation16 + $0x34] sm:$0xf]
    %v1118 = vld [vmem:[#allocation16 + $0x38] sm:$0xf]
    %v1119 = vld [vmem:[#allocation16 + $0x3c] sm:$0xf]
    %v1120 = vld [vmem:[%s18] sm:$0x1]
    %v1121 = vunpack.c.l.bf16 %v1120
    %v1122 = vlaneseq
    %v1123 = vshrl.u32 %v1122, 7
    %v1124 = vsub.s32 0, %v1123
    %v1125 = vrot.slane %v1121, %v1124
    %v1142 = vunpack.c.l.b16 %v1104
    %v1143 = vunpack.c.l.b16 %v1105
    %v1144 = vunpack.c.l.b16 %v1106
    %v1145 = vunpack.c.l.b16 %v1107
    %v1146 = vunpack.c.l.b16 %v1108
    %v1147 = vunpack.c.l.b16 %v1109
    %v1148 = vunpack.c.l.b16 %v1110
    %v1149 = vunpack.c.l.b16 %v1111
    %v1150 = vunpack.c.l.b16 %v1112
    %v1151 = vunpack.c.l.b16 %v1113
    %v1152 = vunpack.c.l.b16 %v1114
    %v1153 = vunpack.c.l.b16 %v1115
    %v1154 = vunpack.c.l.b16 %v1116
    %v1155 = vunpack.c.l.b16 %v1117
    %v1156 = vunpack.c.l.b16 %v1118
    %v1157 = vunpack.c.l.b16 %v1119
    %v1158 = vpack.c.b16 %v1143, %v1142
    %v1159 = vpack.c.b16 %v1145, %v1144
    %v1160 = vpack.c.b16 %v1147, %v1146
    %v1161 = vpack.c.b16 %v1149, %v1148
    %v1162 = vpack.c.b16 %v1151, %v1150
    %v1163 = vpack.c.b16 %v1153, %v1152
    %v1164 = vpack.c.b16 %v1155, %v1154
    %v1165 = vpack.c.b16 %v1157, %v1156
    %1174 = vmatprep.subr.bf16.mxu0 0
    %1175 = vmatpush1.bf16.msra.mxu0 %v1158
    %1176 = vmatprep.subr.bf16.mxu0 0
    %1177 = vmatpush1.bf16.msra.mxu0 %v1159
    %1178 = vmatprep.subr.bf16.mxu0 0
    %1179 = vmatpush1.bf16.msra.mxu0 %v1160
    %1180 = vmatprep.subr.bf16.mxu0 0
    %1181 = vmatpush1.bf16.msra.mxu0 %v1161
    %1182 = vmatprep.subr.bf16.mxu0 0
    %1183 = vmatpush1.bf16.msra.mxu0 %v1162
    %1184 = vmatprep.subr.bf16.mxu0 0
    %1185 = vmatpush1.bf16.msra.mxu0 %v1163
    %1186 = vmatprep.subr.bf16.mxu0 0
    %1187 = vmatpush1.bf16.msra.mxu0 %v1164
    %1188 = vmatprep.subr.bf16.mxu0 0
    %1189 = vmatpush1.bf16.msra.mxu0 %v1165
    %1190 = vmatprep.subr.bf16.mxu0 0
    %1191 = vmatpush1.bf16.msra.mxu0 0
    %1192 = vmatprep.subr.bf16.mxu0 0
    %1193 = vmatpush1.bf16.msra.mxu0 0
    %1194 = vmatprep.subr.bf16.mxu0 0
    %1195 = vmatpush1.bf16.msra.mxu0 0
    %1196 = vmatprep.subr.bf16.mxu0 0
    %1197 = vmatpush1.bf16.msra.mxu0 0
    %1198 = vmatprep.subr.bf16.mxu0 0
    %1199 = vmatpush1.bf16.msra.mxu0 0
    %1200 = vmatprep.subr.bf16.mxu0 0
    %1201 = vmatpush1.bf16.msra.mxu0 0
    %1202 = vmatprep.subr.bf16.mxu0 0
    %1203 = vmatpush1.bf16.msra.mxu0 0
    %1204 = vmatprep.subr.bf16.mxu0 0
    %1205 = vmatpush1.bf16.msra.mxu0 0
    %1206 = vmatprep.mubr.bf16.mxu0 0
    %1207 = vmatmul.mubr.bf16.gmra.mrb[0].mxu0 %v1103
    %v1208 = vpop.f32.mrb[0].mxu0
    %v1209 = vadd.f32 %v1125, %v1208
    %v1210 = vpop.f32.mrb[0].mxu0
    %v1211 = vpop.f32.mrb[0].mxu0
    %v1212 = vpop.f32.mrb[0].mxu0
    %1213 = vdwg.mxu0
    %v1214 = vmax.f32 %v1209, 0.0
    %v1215 = vpack.c.bf16 %v1214, %v1214
    %v1216 = vld [vmem:[#allocation17] sm:$0xf]
    %v1217 = vld [vmem:[#allocation17 + $0x4] sm:$0xf]
    %v1218 = vld [vmem:[#allocation17 + $0x8] sm:$0xf]
    %v1219 = vld [vmem:[#allocation17 + $0xc] sm:$0xf]
    %v1220 = vld [vmem:[#allocation17 + $0x10] sm:$0xf]
    %v1221 = vld [vmem:[#allocation17 + $0x14] sm:$0xf]
    %v1222 = vld [vmem:[#allocation17 + $0x18] sm:$0xf]
    %v1223 = vld [vmem:[#allocation17 + $0x1c] sm:$0xf]
    %v1224 = vld [vmem:[#allocation17 + $0x20] sm:$0xf]
    %v1225 = vld [vmem:[#allocation17 + $0x24] sm:$0xf]
    %v1226 = vld [vmem:[#allocation17 + $0x28] sm:$0xf]
    %v1227 = vld [vmem:[#allocation17 + $0x2c] sm:$0xf]
    %v1228 = vld [vmem:[#allocation17 + $0x30] sm:$0xf]
    %v1229 = vld [vmem:[#allocation17 + $0x34] sm:$0xf]
    %v1230 = vld [vmem:[#allocation17 + $0x38] sm:$0xf]
    %v1231 = vld [vmem:[#allocation17 + $0x3c] sm:$0xf]
    %v1232 = vld [vmem:[%s20] sm:$0x1]
    %v1233 = vunpack.c.l.bf16 %v1232
    %v1234 = vlaneseq
    %v1235 = vshrl.u32 %v1234, 7
    %v1236 = vsub.s32 0, %v1235
    %v1237 = vrot.slane %v1233, %v1236
    %v1254 = vunpack.c.l.b16 %v1216
    %v1255 = vunpack.c.l.b16 %v1217
    %v1256 = vunpack.c.l.b16 %v1218
    %v1257 = vunpack.c.l.b16 %v1219
    %v1258 = vunpack.c.l.b16 %v1220
    %v1259 = vunpack.c.l.b16 %v1221
    %v1260 = vunpack.c.l.b16 %v1222
    %v1261 = vunpack.c.l.b16 %v1223
    %v1262 = vunpack.c.l.b16 %v1224
    %v1263 = vunpack.c.l.b16 %v1225
    %v1264 = vunpack.c.l.b16 %v1226
    %v1265 = vunpack.c.l.b16 %v1227
    %v1266 = vunpack.c.l.b16 %v1228
    %v1267 = vunpack.c.l.b16 %v1229
    %v1268 = vunpack.c.l.b16 %v1230
    %v1269 = vunpack.c.l.b16 %v1231
    %v1270 = vpack.c.b16 %v1255, %v1254
    %v1271 = vpack.c.b16 %v1257, %v1256
    %v1272 = vpack.c.b16 %v1259, %v1258
    %v1273 = vpack.c.b16 %v1261, %v1260
    %v1274 = vpack.c.b16 %v1263, %v1262
    %v1275 = vpack.c.b16 %v1265, %v1264
    %v1276 = vpack.c.b16 %v1267, %v1266
    %v1277 = vpack.c.b16 %v1269, %v1268
    %1286 = vmatprep.subr.bf16.mxu0 0
    %1287 = vmatpush1.bf16.msra.mxu0 %v1270
    %1288 = vmatprep.subr.bf16.mxu0 0
    %1289 = vmatpush1.bf16.msra.mxu0 %v1271
    %1290 = vmatprep.subr.bf16.mxu0 0
    %1291 = vmatpush1.bf16.msra.mxu0 %v1272
    %1292 = vmatprep.subr.bf16.mxu0 0
    %1293 = vmatpush1.bf16.msra.mxu0 %v1273
    %1294 = vmatprep.subr.bf16.mxu0 0
    %1295 = vmatpush1.bf16.msra.mxu0 %v1274
    %1296 = vmatprep.subr.bf16.mxu0 0
    %1297 = vmatpush1.bf16.msra.mxu0 %v1275
    %1298 = vmatprep.subr.bf16.mxu0 0
    %1299 = vmatpush1.bf16.msra.mxu0 %v1276
    %1300 = vmatprep.subr.bf16.mxu0 0
    %1301 = vmatpush1.bf16.msra.mxu0 %v1277
    %1302 = vmatprep.subr.bf16.mxu0 0
    %1303 = vmatpush1.bf16.msra.mxu0 0
    %1304 = vmatprep.subr.bf16.mxu0 0
    %1305 = vmatpush1.bf16.msra.mxu0 0
    %1306 = vmatprep.subr.bf16.mxu0 0
    %1307 = vmatpush1.bf16.msra.mxu0 0
    %1308 = vmatprep.subr.bf16.mxu0 0
    %1309 = vmatpush1.bf16.msra.mxu0 0
    %1310 = vmatprep.subr.bf16.mxu0 0
    %1311 = vmatpush1.bf16.msra.mxu0 0
    %1312 = vmatprep.subr.bf16.mxu0 0
    %1313 = vmatpush1.bf16.msra.mxu0 0
    %1314 = vmatprep.subr.bf16.mxu0 0
    %1315 = vmatpush1.bf16.msra.mxu0 0
    %1316 = vmatprep.subr.bf16.mxu0 0
    %1317 = vmatpush1.bf16.msra.mxu0 0
    %1318 = vmatprep.mubr.bf16.mxu0 0
    %1319 = vmatmul.mubr.bf16.gmra.mrb[0].mxu0 %v1215
    %v1320 = vpop.f32.mrb[0].mxu0
    %v1321 = vadd.f32 %v1237, %v1320
    %v1322 = vpop.f32.mrb[0].mxu0
    %v1323 = vpop.f32.mrb[0].mxu0
    %v1324 = vpop.f32.mrb[0].mxu0
    %1325 = vdwg.mxu0
    %1326 = vst [vmem:[#allocation19] sm:$0xff] %v1321
    // Predicated region
    $region126: #{fnn_forward.1} parent=1 // pred_check
      _
    $region127: #{fnn_forward.1} parent=1 // pred_check_branch
      %1328 = sbr.rel (0) target = $region129
    $region128: #{fnn_forward.1} parent=1 // pred_region
      %s1330 = ssub.s32 128, 128
      %1331 = vsyncadd [#allocation4], %s1330
      %s1333 = sshll.u32 [#allocation19], 4
      %s1334 = int_to_ptr.vmem [resolvable:$true] %s1333
      %1336 = dma.vmem_to_hbm [thread:$0]  %s1334, 128, %s21, [#allocation4]
    $region129: #{fnn_forward.1} parent=1 // pred_fallthru
      _
    // Predicated region
    $region130: #{fnn_forward.1} parent=1 // pred_check
      _
    $region131: #{fnn_forward.1} parent=1 // pred_check_branch
      %1338 = sbr.rel (0) target = $region133
    $region132: #{fnn_forward.1} parent=1 // pred_region
      %1339 = dma.done [#allocation4], 128
    $region133: #{fnn_forward.1} parent=1 // pred_fallthru
      _
    %1340 = vsyncpa [#allocation3], 1
    %1341 = vsyncpa [#allocation6], 1
    %1342 = vsyncpa [#allocation9], 1
    %1343 = vsyncpa [#allocation12], 1
    %1344 = vsyncpa [#allocation15], 1
    %1345 = vsyncpa [#allocation18], 1
    %1346 = vsyncpa [#allocation4], 1

// kernel: fnn_forward.1
$region0: #{fnn_forward.1}
  #allocation0 [shape = 'u32[]', space=smem, size = 0x4, offset = 0x4, fixed_abs, tag = 'smem constant byte address 0x4 - core index']
  #allocation1 [shape = 'u32[144,128]{1,0:T(1,128)}', space=vmem, size = 0x12000, scoped, tag = 'internal scratch']
  %s0 = inlined_call_operand.vmem [shape: f32[8,128], index: 0, kind: input, shape index: {}]
  %s1 = inlined_call_operand.hbm [shape: bf16[128,128], index: 1, kind: input, shape index: {}]
  %s2 = inlined_call_operand.vmem [shape: bf16[1,128], index: 2, kind: input, shape index: {}]
  %s3 = inlined_call_operand.hbm [shape: bf16[128,128], index: 3, kind: input, shape index: {}]
  %s4 = inlined_call_operand.vmem [shape: bf16[1,128], index: 4, kind: input, shape index: {}]
  %s5 = inlined_call_operand.hbm [shape: bf16[128,128], index: 5, kind: input, shape index: {}]
  %s6 = inlined_call_operand.vmem [shape: bf16[1,128], index: 6, kind: input, shape index: {}]
  %s7 = inlined_call_operand.hbm [shape: bf16[128,128], index: 7, kind: input, shape index: {}]
  %s8 = inlined_call_operand.vmem [shape: bf16[1,128], index: 8, kind: input, shape index: {}]
  %s9 = inlined_call_operand.hbm [shape: bf16[128,128], index: 9, kind: input, shape index: {}]
  %s10 = inlined_call_operand.vmem [shape: bf16[1,128], index: 10, kind: input, shape index: {}]
  %s11 = inlined_call_operand.hbm [shape: bf16[128,128], index: 11, kind: input, shape index: {}]
  %s12 = inlined_call_operand.vmem [shape: bf16[1,128], index: 12, kind: input, shape index: {}]
  %s13 = inlined_call_operand.hbm [shape: bf16[128,128], index: 13, kind: input, shape index: {}]
  %s14 = inlined_call_operand.vmem [shape: bf16[1,128], index: 14, kind: input, shape index: {}]
  %s15 = inlined_call_operand.hbm [shape: bf16[128,128], index: 15, kind: input, shape index: {}]
  %s16 = inlined_call_operand.vmem [shape: bf16[1,128], index: 16, kind: input, shape index: {}]
  %s17 = inlined_call_operand.hbm [shape: bf16[128,128], index: 17, kind: input, shape index: {}]
  %s18 = inlined_call_operand.vmem [shape: bf16[1,128], index: 18, kind: input, shape index: {}]
  %s19 = inlined_call_operand.hbm [shape: bf16[128,128], index: 19, kind: input, shape index: {}]
  %s20 = inlined_call_operand.vmem [shape: bf16[1,128], index: 20, kind: input, shape index: {}]
  %s21 = inlined_call_operand.hbm [shape: f32[8,128], index: 21, kind: output, shape index: {}]
  %s22 = sld [smem:[#allocation0]]
  $region134: #{fnn_forward.1} parent=0
    _
  %s24 = ssub.s32 1, %s22
  %s25 = scalar_select 0, %s24, %s22
  $region1: #{fnn_forward.1} parent=0
    #allocation2 [shape = 'u8[32768]{0}', space=vmem, size = 0x8000, scoped, tag = 'input window, operand 1, single buffered']
    #allocation3 [shape = 's32[1]{0}', space=sflag, size = 0x4, scoped, tag = 'scoped memory for fnn_forward.1']
    #allocation4 [shape = 's32[1]{0}', space=sflag, size = 0x4, scoped, tag = 'scoped memory for fnn_forward.1']
    #allocation5 [shape = 'u8[32768]{0}', space=vmem, size = 0x8000, scoped, tag = 'input window, operand 3, single buffered']
    #allocation6 [shape = 's32[1]{0}', space=sflag, size = 0x4, scoped, tag = 'scoped memory for fnn_forward.1']
    #allocation7 [shape = 'u8[32768]{0}', space=vmem, size = 0x8000, scoped, tag = 'input window, operand 5, single buffered']
    #allocation8 [shape = 'u8[32768]{0}', space=vmem, size = 0x8000, scoped, tag = 'input window, operand 7, single buffered']
    #allocation9 [shape = 's32[1]{0}', space=sflag, size = 0x4, scoped, tag = 'scoped memory for fnn_forward.1']
    #allocation10 [shape = 'u8[32768]{0}', space=vmem, size = 0x8000, scoped, tag = 'input window, operand 9, single buffered']
    #allocation11 [shape = 'u8[32768]{0}', space=vmem, size = 0x8000, scoped, tag = 'input window, operand 11, single buffered']
    #allocation12 [shape = 's32[1]{0}', space=sflag, size = 0x4, scoped, tag = 'scoped memory for fnn_forward.1']
    #allocation13 [shape = 'u8[32768]{0}', space=vmem, size = 0x8000, scoped, tag = 'input window, operand 13, single buffered']
    #allocation14 [shape = 'u8[32768]{0}', space=vmem, size = 0x8000, scoped, tag = 'input window, operand 15, single buffered']
    #allocation15 [shape = 's32[1]{0}', space=sflag, size = 0x4, scoped, tag = 'scoped memory for fnn_forward.1']
    #allocation16 [shape = 'u8[32768]{0}', space=vmem, size = 0x8000, scoped, tag = 'input window, operand 17, single buffered']
    #allocation17 [shape = 'u8[32768]{0}', space=vmem, size = 0x8000, scoped, tag = 'input window, operand 19, single buffered']
    #allocation18 [shape = 's32[1]{0}', space=sflag, size = 0x4, scoped, tag = 'scoped memory for fnn_forward.1']
    #allocation19 [shape = 'u8[4096]{0}', space=vmem, size = 0x1000, scoped, tag = 'output window, operand 0, single buffered']
    %26 = vsyncpa [#allocation3], 0
    %27 = vsyncpa [#allocation6], 0
    %28 = vsyncpa [#allocation9], 0
    %29 = vsyncpa [#allocation12], 0
    %30 = vsyncpa [#allocation15], 0
    %31 = vsyncpa [#allocation18], 0
    %32 = vsyncpa [#allocation4], 0
    // Predicated region
    $region2: #{fnn_forward.1} parent=1 // pred_check
      _
    $region3: #{fnn_forward.1} parent=1 // pred_check_branch
      %34 = sbr.rel (0) target = $region5
    $region4: #{fnn_forward.1} parent=1 // pred_region
      _
    $region5: #{fnn_forward.1} parent=1 // pred_fallthru
      _
    // Predicated region
    $region6: #{fnn_forward.1} parent=1 // pred_check
      _
    $region7: #{fnn_forward.1} parent=1 // pred_check_branch
      %36 = sbr.rel (0) target = $region9
    $region8: #{fnn_forward.1} parent=1 // pred_region
      %s38 = ssub.s32 1024, 1024
      %39 = vsyncadd [#allocation3], %s38
      %s40 = sshll.u32 [#allocation2], 4
      %s41 = int_to_ptr.vmem [resolvable:$true] %s40
      %46 = dma.hbm_to_vmem [thread:$0]  %s1, 1024, %s41, [#allocation3], 64, 64, 4
    $region9: #{fnn_forward.1} parent=1 // pred_fallthru
      _
    // Predicated region
    $region10: #{fnn_forward.1} parent=1 // pred_check
      _
    $region11: #{fnn_forward.1} parent=1 // pred_check_branch
      %48 = sbr.rel (0) target = $region13
    $region12: #{fnn_forward.1} parent=1 // pred_region
      _
    $region13: #{fnn_forward.1} parent=1 // pred_fallthru
      _
    // Predicated region
    $region14: #{fnn_forward.1} parent=1 // pred_check
      _
    $region15: #{fnn_forward.1} parent=1 // pred_check_branch
      %50 = sbr.rel (0) target = $region17
    $region16: #{fnn_forward.1} parent=1 // pred_region
      %s52 = ssub.s32 1024, 1024
      %53 = vsyncadd [#allocation6], %s52
      %s54 = sshll.u32 [#allocation5], 4
      %s55 = int_to_ptr.vmem [resolvable:$true] %s54
      %60 = dma.hbm_to_vmem [thread:$0]  %s3, 1024, %s55, [#allocation6], 64, 64, 4
    $region17: #{fnn_forward.1} parent=1 // pred_fallthru
      _
    // Predicated region
    $region18: #{fnn_forward.1} parent=1 // pred_check
      _
    $region19: #{fnn_forward.1} parent=1 // pred_check_branch
      %62 = sbr.rel (0) target = $region21
    $region20: #{fnn_forward.1} parent=1 // pred_region
      _
    $region21: #{fnn_forward.1} parent=1 // pred_fallthru
      _
    // Predicated region
    $region22: #{fnn_forward.1} parent=1 // pred_check
      _
    $region23: #{fnn_forward.1} parent=1 // pred_check_branch
      %64 = sbr.rel (0) target = $region25
    $region24: #{fnn_forward.1} parent=1 // pred_region
      %s66 = ssub.s32 1024, 1024
      %67 = vsyncadd [#allocation6], %s66
      %s68 = sshll.u32 [#allocation7], 4
      %s69 = int_to_ptr.vmem [resolvable:$true] %s68
      %74 = dma.hbm_to_vmem [thread:$0]  %s5, 1024, %s69, [#allocation6], 64, 64, 4
    $region25: #{fnn_forward.1} parent=1 // pred_fallthru
      _
    // Predicated region
    $region26: #{fnn_forward.1} parent=1 // pred_check
      _
    $region27: #{fnn_forward.1} parent=1 // pred_check_branch
      %76 = sbr.rel (0) target = $region29
    $region28: #{fnn_forward.1} parent=1 // pred_region
      _
    $region29: #{fnn_forward.1} parent=1 // pred_fallthru
      _
    // Predicated region
    $region30: #{fnn_forward.1} parent=1 // pred_check
      _
    $region31: #{fnn_forward.1} parent=1 // pred_check_branch
      %78 = sbr.rel (0) target = $region33
    $region32: #{fnn_forward.1} parent=1 // pred_region
      %s80 = ssub.s32 1024, 1024
      %81 = vsyncadd [#allocation9], %s80
      %s82 = sshll.u32 [#allocation8], 4
      %s83 = int_to_ptr.vmem [resolvable:$true] %s82
      %88 = dma.hbm_to_vmem [thread:$0]  %s7, 1024, %s83, [#allocation9], 64, 64, 4
    $region33: #{fnn_forward.1} parent=1 // pred_fallthru
      _
    // Predicated region
    $region34: #{fnn_forward.1} parent=1 // pred_check
      _
    $region35: #{fnn_forward.1} parent=1 // pred_check_branch
      %90 = sbr.rel (0) target = $region37
    $region36: #{fnn_forward.1} parent=1 // pred_region
      _
    $region37: #{fnn_forward.1} parent=1 // pred_fallthru
      _
    // Predicated region
    $region38: #{fnn_forward.1} parent=1 // pred_check
      _
    $region39: #{fnn_forward.1} parent=1 // pred_check_branch
      %92 = sbr.rel (0) target = $region41
    $region40: #{fnn_forward.1} parent=1 // pred_region
      %s94 = ssub.s32 1024, 1024
      %95 = vsyncadd [#allocation9], %s94
      %s96 = sshll.u32 [#allocation10], 4
      %s97 = int_to_ptr.vmem [resolvable:$true] %s96
      %102 = dma.hbm_to_vmem [thread:$0]  %s9, 1024, %s97, [#allocation9], 64, 64, 4
    $region41: #{fnn_forward.1} parent=1 // pred_fallthru
      _
    // Predicated region
    $region42: #{fnn_forward.1} parent=1 // pred_check
      _
    $region43: #{fnn_forward.1} parent=1 // pred_check_branch
      %104 = sbr.rel (0) target = $region45
    $region44: #{fnn_forward.1} parent=1 // pred_region
      _
    $region45: #{fnn_forward.1} parent=1 // pred_fallthru
      _
    // Predicated region
    $region46: #{fnn_forward.1} parent=1 // pred_check
      _
    $region47: #{fnn_forward.1} parent=1 // pred_check_branch
      %106 = sbr.rel (0) target = $region49
    $region48: #{fnn_forward.1} parent=1 // pred_region
      %s108 = ssub.s32 1024, 1024
      %109 = vsyncadd [#allocation12], %s108
      %s110 = sshll.u32 [#allocation11], 4
      %s111 = int_to_ptr.vmem [resolvable:$true] %s110
      %116 = dma.hbm_to_vmem [thread:$0]  %s11, 1024, %s111, [#allocation12], 64, 64, 4
    $region49: #{fnn_forward.1} parent=1 // pred_fallthru
      _
    // Predicated region
    $region50: #{fnn_forward.1} parent=1 // pred_check
      _
    $region51: #{fnn_forward.1} parent=1 // pred_check_branch
      %118 = sbr.rel (0) target = $region53
    $region52: #{fnn_forward.1} parent=1 // pred_region
      _
    $region53: #{fnn_forward.1} parent=1 // pred_fallthru
      _
    // Predicated region
    $region54: #{fnn_forward.1} parent=1 // pred_check
      _
    $region55: #{fnn_forward.1} parent=1 // pred_check_branch
      %120 = sbr.rel (0) target = $region57
    $region56: #{fnn_forward.1} parent=1 // pred_region
      %s122 = ssub.s32 1024, 1024
      %123 = vsyncadd [#allocation12], %s122
      %s124 = sshll.u32 [#allocation13], 4
      %s125 = int_to_ptr.vmem [resolvable:$true] %s124
      %130 = dma.hbm_to_vmem [thread:$0]  %s13, 1024, %s125, [#allocation12], 64, 64, 4
    $region57: #{fnn_forward.1} parent=1 // pred_fallthru
      _
    // Predicated region
    $region58: #{fnn_forward.1} parent=1 // pred_check
      _
    $region59: #{fnn_forward.1} parent=1 // pred_check_branch
      %132 = sbr.rel (0) target = $region61
    $region60: #{fnn_forward.1} parent=1 // pred_region
      _
    $region61: #{fnn_forward.1} parent=1 // pred_fallthru
      _
    // Predicated region
    $region62: #{fnn_forward.1} parent=1 // pred_check
      _
    $region63: #{fnn_forward.1} parent=1 // pred_check_branch
      %134 = sbr.rel (0) target = $region65
    $region64: #{fnn_forward.1} parent=1 // pred_region
      %s136 = ssub.s32 1024, 1024
      %137 = vsyncadd [#allocation15], %s136
      %s138 = sshll.u32 [#allocation14], 4
      %s139 = int_to_ptr.vmem [resolvable:$true] %s138
      %144 = dma.hbm_to_vmem [thread:$0]  %s15, 1024, %s139, [#allocation15], 64, 64, 4
    $region65: #{fnn_forward.1} parent=1 // pred_fallthru
      _
    // Predicated region
    $region66: #{fnn_forward.1} parent=1 // pred_check
      _
    $region67: #{fnn_forward.1} parent=1 // pred_check_branch
      %146 = sbr.rel (0) target = $region69
    $region68: #{fnn_forward.1} parent=1 // pred_region
      _
    $region69: #{fnn_forward.1} parent=1 // pred_fallthru
      _
    // Predicated region
    $region70: #{fnn_forward.1} parent=1 // pred_check
      _
    $region71: #{fnn_forward.1} parent=1 // pred_check_branch
      %148 = sbr.rel (0) target = $region73
    $region72: #{fnn_forward.1} parent=1 // pred_region
      %s150 = ssub.s32 1024, 1024
      %151 = vsyncadd [#allocation15], %s150
      %s152 = sshll.u32 [#allocation16], 4
      %s153 = int_to_ptr.vmem [resolvable:$true] %s152
      %158 = dma.hbm_to_vmem [thread:$0]  %s17, 1024, %s153, [#allocation15], 64, 64, 4
    $region73: #{fnn_forward.1} parent=1 // pred_fallthru
      _
    // Predicated region
    $region74: #{fnn_forward.1} parent=1 // pred_check
      _
    $region75: #{fnn_forward.1} parent=1 // pred_check_branch
      %160 = sbr.rel (0) target = $region77
    $region76: #{fnn_forward.1} parent=1 // pred_region
      _
    $region77: #{fnn_forward.1} parent=1 // pred_fallthru
      _
    // Predicated region
    $region78: #{fnn_forward.1} parent=1 // pred_check
      _
    $region79: #{fnn_forward.1} parent=1 // pred_check_branch
      %162 = sbr.rel (0) target = $region81
    $region80: #{fnn_forward.1} parent=1 // pred_region
      %s164 = ssub.s32 1024, 1024
      %165 = vsyncadd [#allocation18], %s164
      %s166 = sshll.u32 [#allocation17], 4
      %s167 = int_to_ptr.vmem [resolvable:$true] %s166
      %172 = dma.hbm_to_vmem [thread:$0]  %s19, 1024, %s167, [#allocation18], 64, 64, 4
    $region81: #{fnn_forward.1} parent=1 // pred_fallthru
      _
    // Predicated region
    $region82: #{fnn_forward.1} parent=1 // pred_check
      _
    $region83: #{fnn_forward.1} parent=1 // pred_check_branch
      %174 = sbr.rel (0) target = $region85
    $region84: #{fnn_forward.1} parent=1 // pred_region
      _
    $region85: #{fnn_forward.1} parent=1 // pred_fallthru
      _
    // Predicated region
    $region86: #{fnn_forward.1} parent=1 // pred_check
      _
    $region87: #{fnn_forward.1} parent=1 // pred_check_branch
      %176 = sbr.rel (0) target = $region89
    $region88: #{fnn_forward.1} parent=1 // pred_region
      %177 = dma.done [#allocation3], 1024
    $region89: #{fnn_forward.1} parent=1 // pred_fallthru
      _
    // Predicated region
    $region90: #{fnn_forward.1} parent=1 // pred_check
      _
    $region91: #{fnn_forward.1} parent=1 // pred_check_branch
      %179 = sbr.rel (0) target = $region93
    $region92: #{fnn_forward.1} parent=1 // pred_region
      %180 = dma.done [#allocation6], 1024
    $region93: #{fnn_forward.1} parent=1 // pred_fallthru
      _
    // Predicated region
    $region94: #{fnn_forward.1} parent=1 // pred_check
      _
    $region95: #{fnn_forward.1} parent=1 // pred_check_branch
      %182 = sbr.rel (0) target = $region97
    $region96: #{fnn_forward.1} parent=1 // pred_region
      %183 = dma.done [#allocation6], 1024
    $region97: #{fnn_forward.1} parent=1 // pred_fallthru
      _
    // Predicated region
    $region98: #{fnn_forward.1} parent=1 // pred_check
      _
    $region99: #{fnn_forward.1} parent=1 // pred_check_branch
      %185 = sbr.rel (0) target = $region101
    $region100: #{fnn_forward.1} parent=1 // pred_region
      %186 = dma.done [#allocation9], 1024
    $region101: #{fnn_forward.1} parent=1 // pred_fallthru
      _
    // Predicated region
    $region102: #{fnn_forward.1} parent=1 // pred_check
      _
    $region103: #{fnn_forward.1} parent=1 // pred_check_branch
      %188 = sbr.rel (0) target = $region105
    $region104: #{fnn_forward.1} parent=1 // pred_region
      %189 = dma.done [#allocation9], 1024
    $region105: #{fnn_forward.1} parent=1 // pred_fallthru
      _
    // Predicated region
    $region106: #{fnn_forward.1} parent=1 // pred_check
      _
    $region107: #{fnn_forward.1} parent=1 // pred_check_branch
      %191 = sbr.rel (0) target = $region109
    $region108: #{fnn_forward.1} parent=1 // pred_region
      %192 = dma.done [#allocation12], 1024
    $region109: #{fnn_forward.1} parent=1 // pred_fallthru
      _
    // Predicated region
    $region110: #{fnn_forward.1} parent=1 // pred_check
      _
    $region111: #{fnn_forward.1} parent=1 // pred_check_branch
      %194 = sbr.rel (0) target = $region113
    $region112: #{fnn_forward.1} parent=1 // pred_region
      %195 = dma.done [#allocation12], 1024
    $region113: #{fnn_forward.1} parent=1 // pred_fallthru
      _
    // Predicated region
    $region114: #{fnn_forward.1} parent=1 // pred_check
      _
    $region115: #{fnn_forward.1} parent=1 // pred_check_branch
      %197 = sbr.rel (0) target = $region117
    $region116: #{fnn_forward.1} parent=1 // pred_region
      %198 = dma.done [#allocation15], 1024
    $region117: #{fnn_forward.1} parent=1 // pred_fallthru
      _
    // Predicated region
    $region118: #{fnn_forward.1} parent=1 // pred_check
      _
    $region119: #{fnn_forward.1} parent=1 // pred_check_branch
      %200 = sbr.rel (0) target = $region121
    $region120: #{fnn_forward.1} parent=1 // pred_region
      %201 = dma.done [#allocation15], 1024
    $region121: #{fnn_forward.1} parent=1 // pred_fallthru
      _
    // Predicated region
    $region122: #{fnn_forward.1} parent=1 // pred_check
      _
    $region123: #{fnn_forward.1} parent=1 // pred_check_branch
      %203 = sbr.rel (0) target = $region125
    $region124: #{fnn_forward.1} parent=1 // pred_region
      %204 = dma.done [#allocation18], 1024
    $region125: #{fnn_forward.1} parent=1 // pred_fallthru
      _
    %v206 = vld [vmem:[%s0] sm:$0xff]
    %v207 = vpack.c.bf16 %v206, %v206
    %v208 = vld [vmem:[#allocation2] sm:$0xf]
    %v209 = vld [vmem:[#allocation2 + $0x4] sm:$0xf]
    %v210 = vld [vmem:[#allocation2 + $0x8] sm:$0xf]
    %v211 = vld [vmem:[#allocation2 + $0xc] sm:$0xf]
    %v212 = vld [vmem:[#allocation2 + $0x10] sm:$0xf]
    %v213 = vld [vmem:[#allocation2 + $0x14] sm:$0xf]
    %v214 = vld [vmem:[#allocation2 + $0x18] sm:$0xf]
    %v215 = vld [vmem:[#allocation2 + $0x1c] sm:$0xf]
    %v216 = vld [vmem:[#allocation2 + $0x20] sm:$0xf]
    %v217 = vld [vmem:[#allocation2 + $0x24] sm:$0xf]
    %v218 = vld [vmem:[#allocation2 + $0x28] sm:$0xf]
    %v219 = vld [vmem:[#allocation2 + $0x2c] sm:$0xf]
    %v220 = vld [vmem:[#allocation2 + $0x30] sm:$0xf]
    %v221 = vld [vmem:[#allocation2 + $0x34] sm:$0xf]
    %v222 = vld [vmem:[#allocation2 + $0x38] sm:$0xf]
    %v223 = vld [vmem:[#allocation2 + $0x3c] sm:$0xf]
    %v224 = vld [vmem:[%s2] sm:$0x1]
    %v225 = vunpack.c.l.bf16 %v224
    %v226 = vlaneseq
    %v227 = vshrl.u32 %v226, 7
    %v228 = vsub.s32 0, %v227
    %v229 = vrot.slane %v225, %v228
    %v246 = vunpack.c.l.b16 %v208
    %v247 = vunpack.c.l.b16 %v209
    %v248 = vunpack.c.l.b16 %v210
    %v249 = vunpack.c.l.b16 %v211
    %v250 = vunpack.c.l.b16 %v212
    %v251 = vunpack.c.l.b16 %v213
    %v252 = vunpack.c.l.b16 %v214
    %v253 = vunpack.c.l.b16 %v215
    %v254 = vunpack.c.l.b16 %v216
    %v255 = vunpack.c.l.b16 %v217
    %v256 = vunpack.c.l.b16 %v218
    %v257 = vunpack.c.l.b16 %v219
    %v258 = vunpack.c.l.b16 %v220
    %v259 = vunpack.c.l.b16 %v221
    %v260 = vunpack.c.l.b16 %v222
    %v261 = vunpack.c.l.b16 %v223
    %v262 = vpack.c.b16 %v247, %v246
    %v263 = vpack.c.b16 %v249, %v248
    %v264 = vpack.c.b16 %v251, %v250
    %v265 = vpack.c.b16 %v253, %v252
    %v266 = vpack.c.b16 %v255, %v254
    %v267 = vpack.c.b16 %v257, %v256
    %v268 = vpack.c.b16 %v259, %v258
    %v269 = vpack.c.b16 %v261, %v260
    %278 = vmatprep.subr.bf16.mxu0 0
    %279 = vmatpush1.bf16.msra.mxu0 %v262
    %280 = vmatprep.subr.bf16.mxu0 0
    %281 = vmatpush1.bf16.msra.mxu0 %v263
    %282 = vmatprep.subr.bf16.mxu0 0
    %283 = vmatpush1.bf16.msra.mxu0 %v264
    %284 = vmatprep.subr.bf16.mxu0 0
    %285 = vmatpush1.bf16.msra.mxu0 %v265
    %286 = vmatprep.subr.bf16.mxu0 0
    %287 = vmatpush1.bf16.msra.mxu0 %v266
    %288 = vmatprep.subr.bf16.mxu0 0
    %289 = vmatpush1.bf16.msra.mxu0 %v267
    %290 = vmatprep.subr.bf16.mxu0 0
    %291 = vmatpush1.bf16.msra.mxu0 %v268
    %292 = vmatprep.subr.bf16.mxu0 0
    %293 = vmatpush1.bf16.msra.mxu0 %v269
    %294 = vmatprep.subr.bf16.mxu0 0
    %295 = vmatpush1.bf16.msra.mxu0 0
    %296 = vmatprep.subr.bf16.mxu0 0
    %297 = vmatpush1.bf16.msra.mxu0 0
    %298 = vmatprep.subr.bf16.mxu0 0
    %299 = vmatpush1.bf16.msra.mxu0 0
    %300 = vmatprep.subr.bf16.mxu0 0
    %301 = vmatpush1.bf16.msra.mxu0 0
    %302 = vmatprep.subr.bf16.mxu0 0
    %303 = vmatpush1.bf16.msra.mxu0 0
    %304 = vmatprep.subr.bf16.mxu0 0
    %305 = vmatpush1.bf16.msra.mxu0 0
    %306 = vmatprep.subr.bf16.mxu0 0
    %307 = vmatpush1.bf16.msra.mxu0 0
    %308 = vmatprep.subr.bf16.mxu0 0
    %309 = vmatpush1.bf16.msra.mxu0 0
    %310 = vmatprep.mubr.bf16.mxu0 0
    %311 = vmatmul.mubr.bf16.gmra.mrb[0].mxu0 %v207
    %v312 = vpop.f32.mrb[0].mxu0
    %v313 = vadd.f32 %v229, %v312
    %v314 = vpop.f32.mrb[0].mxu0
    %v315 = vpop.f32.mrb[0].mxu0
    %v316 = vpop.f32.mrb[0].mxu0
    %317 = vdwg.mxu0
    %v318 = vmax.f32 %v313, 0.0
    %v319 = vpack.c.bf16 %v318, %v318
    %v320 = vld [vmem:[#allocation5] sm:$0xf]
    %v321 = vld [vmem:[#allocation5 + $0x4] sm:$0xf]
    %v322 = vld [vmem:[#allocation5 + $0x8] sm:$0xf]
    %v323 = vld [vmem:[#allocation5 + $0xc] sm:$0xf]
    %v324 = vld [vmem:[#allocation5 + $0x10] sm:$0xf]
    %v325 = vld [vmem:[#allocation5 + $0x14] sm:$0xf]
    %v326 = vld [vmem:[#allocation5 + $0x18] sm:$0xf]
    %v327 = vld [vmem:[#allocation5 + $0x1c] sm:$0xf]
    %v328 = vld [vmem:[#allocation5 + $0x20] sm:$0xf]
    %v329 = vld [vmem:[#allocation5 + $0x24] sm:$0xf]
    %v330 = vld [vmem:[#allocation5 + $0x28] sm:$0xf]
    %v331 = vld [vmem:[#allocation5 + $0x2c] sm:$0xf]
    %v332 = vld [vmem:[#allocation5 + $0x30] sm:$0xf]
    %v333 = vld [vmem:[#allocation5 + $0x34] sm:$0xf]
    %v334 = vld [vmem:[#allocation5 + $0x38] sm:$0xf]
    %v335 = vld [vmem:[#allocation5 + $0x3c] sm:$0xf]
    %v336 = vld [vmem:[%s4] sm:$0x1]
    %v337 = vunpack.c.l.bf16 %v336
    %v338 = vlaneseq
    %v339 = vshrl.u32 %v338, 7
    %v340 = vsub.s32 0, %v339
    %v341 = vrot.slane %v337, %v340
    %v358 = vunpack.c.l.b16 %v320
    %v359 = vunpack.c.l.b16 %v321
    %v360 = vunpack.c.l.b16 %v322
    %v361 = vunpack.c.l.b16 %v323
    %v362 = vunpack.c.l.b16 %v324
    %v363 = vunpack.c.l.b16 %v325
    %v364 = vunpack.c.l.b16 %v326
    %v365 = vunpack.c.l.b16 %v327
    %v366 = vunpack.c.l.b16 %v328
    %v367 = vunpack.c.l.b16 %v329
    %v368 = vunpack.c.l.b16 %v330
    %v369 = vunpack.c.l.b16 %v331
    %v370 = vunpack.c.l.b16 %v332
    %v371 = vunpack.c.l.b16 %v333
    %v372 = vunpack.c.l.b16 %v334
    %v373 = vunpack.c.l.b16 %v335
    %v374 = vpack.c.b16 %v359, %v358
    %v375 = vpack.c.b16 %v361, %v360
    %v376 = vpack.c.b16 %v363, %v362
    %v377 = vpack.c.b16 %v365, %v364
    %v378 = vpack.c.b16 %v367, %v366
    %v379 = vpack.c.b16 %v369, %v368
    %v380 = vpack.c.b16 %v371, %v370
    %v381 = vpack.c.b16 %v373, %v372
    %390 = vmatprep.subr.bf16.mxu0 0
    %391 = vmatpush1.bf16.msra.mxu0 %v374
    %392 = vmatprep.subr.bf16.mxu0 0
    %393 = vmatpush1.bf16.msra.mxu0 %v375
    %394 = vmatprep.subr.bf16.mxu0 0
    %395 = vmatpush1.bf16.msra.mxu0 %v376
    %396 = vmatprep.subr.bf16.mxu0 0
    %397 = vmatpush1.bf16.msra.mxu0 %v377
    %398 = vmatprep.subr.bf16.mxu0 0
    %399 = vmatpush1.bf16.msra.mxu0 %v378
    %400 = vmatprep.subr.bf16.mxu0 0
    %401 = vmatpush1.bf16.msra.mxu0 %v379
    %402 = vmatprep.subr.bf16.mxu0 0
    %403 = vmatpush1.bf16.msra.mxu0 %v380
    %404 = vmatprep.subr.bf16.mxu0 0
    %405 = vmatpush1.bf16.msra.mxu0 %v381
    %406 = vmatprep.subr.bf16.mxu0 0
    %407 = vmatpush1.bf16.msra.mxu0 0
    %408 = vmatprep.subr.bf16.mxu0 0
    %409 = vmatpush1.bf16.msra.mxu0 0
    %410 = vmatprep.subr.bf16.mxu0 0
    %411 = vmatpush1.bf16.msra.mxu0 0
    %412 = vmatprep.subr.bf16.mxu0 0
    %413 = vmatpush1.bf16.msra.mxu0 0
    %414 = vmatprep.subr.bf16.mxu0 0
    %415 = vmatpush1.bf16.msra.mxu0 0
    %416 = vmatprep.subr.bf16.mxu0 0
    %417 = vmatpush1.bf16.msra.mxu0 0
    %418 = vmatprep.subr.bf16.mxu0 0
    %419 = vmatpush1.bf16.msra.mxu0 0
    %420 = vmatprep.subr.bf16.mxu0 0
    %421 = vmatpush1.bf16.msra.mxu0 0
    %422 = vmatprep.mubr.bf16.mxu0 0
    %423 = vmatmul.mubr.bf16.gmra.mrb[0].mxu0 %v319
    %v424 = vpop.f32.mrb[0].mxu0
    %v425 = vadd.f32 %v341, %v424
    %v426 = vpop.f32.mrb[0].mxu0
    %v427 = vpop.f32.mrb[0].mxu0
    %v428 = vpop.f32.mrb[0].mxu0
    %429 = vdwg.mxu0
    %v430 = vmax.f32 %v425, 0.0
    %v431 = vpack.c.bf16 %v430, %v430
    %v432 = vld [vmem:[#allocation7] sm:$0xf]
    %v433 = vld [vmem:[#allocation7 + $0x4] sm:$0xf]
    %v434 = vld [vmem:[#allocation7 + $0x8] sm:$0xf]
    %v435 = vld [vmem:[#allocation7 + $0xc] sm:$0xf]
    %v436 = vld [vmem:[#allocation7 + $0x10] sm:$0xf]
    %v437 = vld [vmem:[#allocation7 + $0x14] sm:$0xf]
    %v438 = vld [vmem:[#allocation7 + $0x18] sm:$0xf]
    %v439 = vld [vmem:[#allocation7 + $0x1c] sm:$0xf]
    %v440 = vld [vmem:[#allocation7 + $0x20] sm:$0xf]
    %v441 = vld [vmem:[#allocation7 + $0x24] sm:$0xf]
    %v442 = vld [vmem:[#allocation7 + $0x28] sm:$0xf]
    %v443 = vld [vmem:[#allocation7 + $0x2c] sm:$0xf]
    %v444 = vld [vmem:[#allocation7 + $0x30] sm:$0xf]
    %v445 = vld [vmem:[#allocation7 + $0x34] sm:$0xf]
    %v446 = vld [vmem:[#allocation7 + $0x38] sm:$0xf]
    %v447 = vld [vmem:[#allocation7 + $0x3c] sm:$0xf]
    %v448 = vld [vmem:[%s6] sm:$0x1]
    %v449 = vunpack.c.l.bf16 %v448
    %v450 = vlaneseq
    %v451 = vshrl.u32 %v450, 7
    %v452 = vsub.s32 0, %v451
    %v453 = vrot.slane %v449, %v452
    %v470 = vunpack.c.l.b16 %v432
    %v471 = vunpack.c.l.b16 %v433
    %v472 = vunpack.c.l.b16 %v434
    %v473 = vunpack.c.l.b16 %v435
    %v474 = vunpack.c.l.b16 %v436
    %v475 = vunpack.c.l.b16 %v437
    %v476 = vunpack.c.l.b16 %v438
    %v477 = vunpack.c.l.b16 %v439
    %v478 = vunpack.c.l.b16 %v440
    %v479 = vunpack.c.l.b16 %v441
    %v480 = vunpack.c.l.b16 %v442
    %v481 = vunpack.c.l.b16 %v443
    %v482 = vunpack.c.l.b16 %v444
    %v483 = vunpack.c.l.b16 %v445
    %v484 = vunpack.c.l.b16 %v446
    %v485 = vunpack.c.l.b16 %v447
    %v486 = vpack.c.b16 %v471, %v470
    %v487 = vpack.c.b16 %v473, %v472
    %v488 = vpack.c.b16 %v475, %v474
    %v489 = vpack.c.b16 %v477, %v476
    %v490 = vpack.c.b16 %v479, %v478
    %v491 = vpack.c.b16 %v481, %v480
    %v492 = vpack.c.b16 %v483, %v482
    %v493 = vpack.c.b16 %v485, %v484
    %502 = vmatprep.subr.bf16.mxu0 0
    %503 = vmatpush1.bf16.msra.mxu0 %v486
    %504 = vmatprep.subr.bf16.mxu0 0
    %505 = vmatpush1.bf16.msra.mxu0 %v487
    %506 = vmatprep.subr.bf16.mxu0 0
    %507 = vmatpush1.bf16.msra.mxu0 %v488
    %508 = vmatprep.subr.bf16.mxu0 0
    %509 = vmatpush1.bf16.msra.mxu0 %v489
    %510 = vmatprep.subr.bf16.mxu0 0
    %511 = vmatpush1.bf16.msra.mxu0 %v490
    %512 = vmatprep.subr.bf16.mxu0 0
    %513 = vmatpush1.bf16.msra.mxu0 %v491
    %514 = vmatprep.subr.bf16.mxu0 0
    %515 = vmatpush1.bf16.msra.mxu0 %v492
    %516 = vmatprep.subr.bf16.mxu0 0
    %517 = vmatpush1.bf16.msra.mxu0 %v493
    %518 = vmatprep.subr.bf16.mxu0 0
    %519 = vmatpush1.bf16.msra.mxu0 0
    %520 = vmatprep.subr.bf16.mxu0 0
    %521 = vmatpush1.bf16.msra.mxu0 0
    %522 = vmatprep.subr.bf16.mxu0 0
    %523 = vmatpush1.bf16.msra.mxu0 0
    %524 = vmatprep.subr.bf16.mxu0 0
    %525 = vmatpush1.bf16.msra.mxu0 0
    %526 = vmatprep.subr.bf16.mxu0 0
    %527 = vmatpush1.bf16.msra.mxu0 0
    %528 = vmatprep.subr.bf16.mxu0 0
    %529 = vmatpush1.bf16.msra.mxu0 0
    %530 = vmatprep.subr.bf16.mxu0 0
    %531 = vmatpush1.bf16.msra.mxu0 0
    %532 = vmatprep.subr.bf16.mxu0 0
    %533 = vmatpush1.bf16.msra.mxu0 0
    %534 = vmatprep.mubr.bf16.mxu0 0
    %535 = vmatmul.mubr.bf16.gmra.mrb[0].mxu0 %v431
    %v536 = vpop.f32.mrb[0].mxu0
    %v537 = vadd.f32 %v453, %v536
    %v538 = vpop.f32.mrb[0].mxu0
    %v539 = vpop.f32.mrb[0].mxu0
    %v540 = vpop.f32.mrb[0].mxu0
    %541 = vdwg.mxu0
    %v542 = vmax.f32 %v537, 0.0
    %v543 = vpack.c.bf16 %v542, %v542
    %v544 = vld [vmem:[#allocation8] sm:$0xf]
    %v545 = vld [vmem:[#allocation8 + $0x4] sm:$0xf]
    %v546 = vld [vmem:[#allocation8 + $0x8] sm:$0xf]
    %v547 = vld [vmem:[#allocation8 + $0xc] sm:$0xf]
    %v548 = vld [vmem:[#allocation8 + $0x10] sm:$0xf]
    %v549 = vld [vmem:[#allocation8 + $0x14] sm:$0xf]
    %v550 = vld [vmem:[#allocation8 + $0x18] sm:$0xf]
    %v551 = vld [vmem:[#allocation8 + $0x1c] sm:$0xf]
    %v552 = vld [vmem:[#allocation8 + $0x20] sm:$0xf]
    %v553 = vld [vmem:[#allocation8 + $0x24] sm:$0xf]
    %v554 = vld [vmem:[#allocation8 + $0x28] sm:$0xf]
    %v555 = vld [vmem:[#allocation8 + $0x2c] sm:$0xf]
    %v556 = vld [vmem:[#allocation8 + $0x30] sm:$0xf]
    %v557 = vld [vmem:[#allocation8 + $0x34] sm:$0xf]
    %v558 = vld [vmem:[#allocation8 + $0x38] sm:$0xf]
    %v559 = vld [vmem:[#allocation8 + $0x3c] sm:$0xf]
    %v560 = vld [vmem:[%s8] sm:$0x1]
    %v561 = vunpack.c.l.bf16 %v560
    %v562 = vlaneseq
    %v563 = vshrl.u32 %v562, 7
    %v564 = vsub.s32 0, %v563
    %v565 = vrot.slane %v561, %v564
    %v582 = vunpack.c.l.b16 %v544
    %v583 = vunpack.c.l.b16 %v545
    %v584 = vunpack.c.l.b16 %v546
    %v585 = vunpack.c.l.b16 %v547
    %v586 = vunpack.c.l.b16 %v548
    %v587 = vunpack.c.l.b16 %v549
    %v588 = vunpack.c.l.b16 %v550
    %v589 = vunpack.c.l.b16 %v551
    %v590 = vunpack.c.l.b16 %v552
    %v591 = vunpack.c.l.b16 %v553
    %v592 = vunpack.c.l.b16 %v554
    %v593 = vunpack.c.l.b16 %v555
    %v594 = vunpack.c.l.b16 %v556
    %v595 = vunpack.c.l.b16 %v557
    %v596 = vunpack.c.l.b16 %v558
    %v597 = vunpack.c.l.b16 %v559
    %v598 = vpack.c.b16 %v583, %v582
    %v599 = vpack.c.b16 %v585, %v584
    %v600 = vpack.c.b16 %v587, %v586
    %v601 = vpack.c.b16 %v589, %v588
    %v602 = vpack.c.b16 %v591, %v590
    %v603 = vpack.c.b16 %v593, %v592
    %v604 = vpack.c.b16 %v595, %v594
    %v605 = vpack.c.b16 %v597, %v596
    %614 = vmatprep.subr.bf16.mxu0 0
    %615 = vmatpush1.bf16.msra.mxu0 %v598
    %616 = vmatprep.subr.bf16.mxu0 0
    %617 = vmatpush1.bf16.msra.mxu0 %v599
    %618 = vmatprep.subr.bf16.mxu0 0
    %619 = vmatpush1.bf16.msra.mxu0 %v600
    %620 = vmatprep.subr.bf16.mxu0 0
    %621 = vmatpush1.bf16.msra.mxu0 %v601
    %622 = vmatprep.subr.bf16.mxu0 0
    %623 = vmatpush1.bf16.msra.mxu0 %v602
    %624 = vmatprep.subr.bf16.mxu0 0
    %625 = vmatpush1.bf16.msra.mxu0 %v603
    %626 = vmatprep.subr.bf16.mxu0 0
    %627 = vmatpush1.bf16.msra.mxu0 %v604
    %628 = vmatprep.subr.bf16.mxu0 0
    %629 = vmatpush1.bf16.msra.mxu0 %v605
    %630 = vmatprep.subr.bf16.mxu0 0
    %631 = vmatpush1.bf16.msra.mxu0 0
    %632 = vmatprep.subr.bf16.mxu0 0
    %633 = vmatpush1.bf16.msra.mxu0 0
    %634 = vmatprep.subr.bf16.mxu0 0
    %635 = vmatpush1.bf16.msra.mxu0 0
    %636 = vmatprep.subr.bf16.mxu0 0
    %637 = vmatpush1.bf16.msra.mxu0 0
    %638 = vmatprep.subr.bf16.mxu0 0
    %639 = vmatpush1.bf16.msra.mxu0 0
    %640 = vmatprep.subr.bf16.mxu0 0
    %641 = vmatpush1.bf16.msra.mxu0 0
    %642 = vmatprep.subr.bf16.mxu0 0
    %643 = vmatpush1.bf16.msra.mxu0 0
    %644 = vmatprep.subr.bf16.mxu0 0
    %645 = vmatpush1.bf16.msra.mxu0 0
    %646 = vmatprep.mubr.bf16.mxu0 0
    %647 = vmatmul.mubr.bf16.gmra.mrb[0].mxu0 %v543
    %v648 = vpop.f32.mrb[0].mxu0
    %v649 = vadd.f32 %v565, %v648
    %v650 = vpop.f32.mrb[0].mxu0
    %v651 = vpop.f32.mrb[0].mxu0
    %v652 = vpop.f32.mrb[0].mxu0
    %653 = vdwg.mxu0
    %v654 = vmax.f32 %v649, 0.0
    %v655 = vpack.c.bf16 %v654, %v654
    %v656 = vld [vmem:[#allocation10] sm:$0xf]
    %v657 = vld [vmem:[#allocation10 + $0x4] sm:$0xf]
    %v658 = vld [vmem:[#allocation10 + $0x8] sm:$0xf]
    %v659 = vld [vmem:[#allocation10 + $0xc] sm:$0xf]
    %v660 = vld [vmem:[#allocation10 + $0x10] sm:$0xf]
    %v661 = vld [vmem:[#allocation10 + $0x14] sm:$0xf]
    %v662 = vld [vmem:[#allocation10 + $0x18] sm:$0xf]
    %v663 = vld [vmem:[#allocation10 + $0x1c] sm:$0xf]
    %v664 = vld [vmem:[#allocation10 + $0x20] sm:$0xf]
    %v665 = vld [vmem:[#allocation10 + $0x24] sm:$0xf]
    %v666 = vld [vmem:[#allocation10 + $0x28] sm:$0xf]
    %v667 = vld [vmem:[#allocation10 + $0x2c] sm:$0xf]
    %v668 = vld [vmem:[#allocation10 + $0x30] sm:$0xf]
    %v669 = vld [vmem:[#allocation10 + $0x34] sm:$0xf]
    %v670 = vld [vmem:[#allocation10 + $0x38] sm:$0xf]
    %v671 = vld [vmem:[#allocation10 + $0x3c] sm:$0xf]
    %v672 = vld [vmem:[%s10] sm:$0x1]
    %v673 = vunpack.c.l.bf16 %v672
    %v674 = vlaneseq
    %v675 = vshrl.u32 %v674, 7
    %v676 = vsub.s32 0, %v675
    %v677 = vrot.slane %v673, %v676
    %v694 = vunpack.c.l.b16 %v656
    %v695 = vunpack.c.l.b16 %v657
    %v696 = vunpack.c.l.b16 %v658
    %v697 = vunpack.c.l.b16 %v659
    %v698 = vunpack.c.l.b16 %v660
    %v699 = vunpack.c.l.b16 %v661
    %v700 = vunpack.c.l.b16 %v662
    %v701 = vunpack.c.l.b16 %v663
    %v702 = vunpack.c.l.b16 %v664
    %v703 = vunpack.c.l.b16 %v665
    %v704 = vunpack.c.l.b16 %v666
    %v705 = vunpack.c.l.b16 %v667
    %v706 = vunpack.c.l.b16 %v668
    %v707 = vunpack.c.l.b16 %v669
    %v708 = vunpack.c.l.b16 %v670
    %v709 = vunpack.c.l.b16 %v671
    %v710 = vpack.c.b16 %v695, %v694
    %v711 = vpack.c.b16 %v697, %v696
    %v712 = vpack.c.b16 %v699, %v698
    %v713 = vpack.c.b16 %v701, %v700
    %v714 = vpack.c.b16 %v703, %v702
    %v715 = vpack.c.b16 %v705, %v704
    %v716 = vpack.c.b16 %v707, %v706
    %v717 = vpack.c.b16 %v709, %v708
    %726 = vmatprep.subr.bf16.mxu0 0
    %727 = vmatpush1.bf16.msra.mxu0 %v710
    %728 = vmatprep.subr.bf16.mxu0 0
    %729 = vmatpush1.bf16.msra.mxu0 %v711
    %730 = vmatprep.subr.bf16.mxu0 0
    %731 = vmatpush1.bf16.msra.mxu0 %v712
    %732 = vmatprep.subr.bf16.mxu0 0
    %733 = vmatpush1.bf16.msra.mxu0 %v713
    %734 = vmatprep.subr.bf16.mxu0 0
    %735 = vmatpush1.bf16.msra.mxu0 %v714
    %736 = vmatprep.subr.bf16.mxu0 0
    %737 = vmatpush1.bf16.msra.mxu0 %v715
    %738 = vmatprep.subr.bf16.mxu0 0
    %739 = vmatpush1.bf16.msra.mxu0 %v716
    %740 = vmatprep.subr.bf16.mxu0 0
    %741 = vmatpush1.bf16.msra.mxu0 %v717
    %742 = vmatprep.subr.bf16.mxu0 0
    %743 = vmatpush1.bf16.msra.mxu0 0
    %744 = vmatprep.subr.bf16.mxu0 0
    %745 = vmatpush1.bf16.msra.mxu0 0
    %746 = vmatprep.subr.bf16.mxu0 0
    %747 = vmatpush1.bf16.msra.mxu0 0
    %748 = vmatprep.subr.bf16.mxu0 0
    %749 = vmatpush1.bf16.msra.mxu0 0
    %750 = vmatprep.subr.bf16.mxu0 0
    %751 = vmatpush1.bf16.msra.mxu0 0
    %752 = vmatprep.subr.bf16.mxu0 0
    %753 = vmatpush1.bf16.msra.mxu0 0
    %754 = vmatprep.subr.bf16.mxu0 0
    %755 = vmatpush1.bf16.msra.mxu0 0
    %756 = vmatprep.subr.bf16.mxu0 0
    %757 = vmatpush1.bf16.msra.mxu0 0
    %758 = vmatprep.mubr.bf16.mxu0 0
    %759 = vmatmul.mubr.bf16.gmra.mrb[0].mxu0 %v655
    %v760 = vpop.f32.mrb[0].mxu0
    %v761 = vadd.f32 %v677, %v760
    %v762 = vpop.f32.mrb[0].mxu0
    %v763 = vpop.f32.mrb[0].mxu0
    %v764 = vpop.f32.mrb[0].mxu0
    %765 = vdwg.mxu0
    %v766 = vmax.f32 %v761, 0.0
    %v767 = vpack.c.bf16 %v766, %v766
    %v768 = vld [vmem:[#allocation11] sm:$0xf]
    %v769 = vld [vmem:[#allocation11 + $0x4] sm:$0xf]
    %v770 = vld [vmem:[#allocation11 + $0x8] sm:$0xf]
    %v771 = vld [vmem:[#allocation11 + $0xc] sm:$0xf]
    %v772 = vld [vmem:[#allocation11 + $0x10] sm:$0xf]
    %v773 = vld [vmem:[#allocation11 + $0x14] sm:$0xf]
    %v774 = vld [vmem:[#allocation11 + $0x18] sm:$0xf]
    %v775 = vld [vmem:[#allocation11 + $0x1c] sm:$0xf]
    %v776 = vld [vmem:[#allocation11 + $0x20] sm:$0xf]
    %v777 = vld [vmem:[#allocation11 + $0x24] sm:$0xf]
    %v778 = vld [vmem:[#allocation11 + $0x28] sm:$0xf]
    %v779 = vld [vmem:[#allocation11 + $0x2c] sm:$0xf]
    %v780 = vld [vmem:[#allocation11 + $0x30] sm:$0xf]
    %v781 = vld [vmem:[#allocation11 + $0x34] sm:$0xf]
    %v782 = vld [vmem:[#allocation11 + $0x38] sm:$0xf]
    %v783 = vld [vmem:[#allocation11 + $0x3c] sm:$0xf]
    %v784 = vld [vmem:[%s12] sm:$0x1]
    %v785 = vunpack.c.l.bf16 %v784
    %v786 = vlaneseq
    %v787 = vshrl.u32 %v786, 7
    %v788 = vsub.s32 0, %v787
    %v789 = vrot.slane %v785, %v788
    %v806 = vunpack.c.l.b16 %v768
    %v807 = vunpack.c.l.b16 %v769
    %v808 = vunpack.c.l.b16 %v770
    %v809 = vunpack.c.l.b16 %v771
    %v810 = vunpack.c.l.b16 %v772
    %v811 = vunpack.c.l.b16 %v773
    %v812 = vunpack.c.l.b16 %v774
    %v813 = vunpack.c.l.b16 %v775
    %v814 = vunpack.c.l.b16 %v776
    %v815 = vunpack.c.l.b16 %v777
    %v816 = vunpack.c.l.b16 %v778
    %v817 = vunpack.c.l.b16 %v779
    %v818 = vunpack.c.l.b16 %v780
    %v819 = vunpack.c.l.b16 %v781
    %v820 = vunpack.c.l.b16 %v782
    %v821 = vunpack.c.l.b16 %v783
    %v822 = vpack.c.b16 %v807, %v806
    %v823 = vpack.c.b16 %v809, %v808
    %v824 = vpack.c.b16 %v811, %v810
    %v825 = vpack.c.b16 %v813, %v812
    %v826 = vpack.c.b16 %v815, %v814
    %v827 = vpack.c.b16 %v817, %v816
    %v828 = vpack.c.b16 %v819, %v818
    %v829 = vpack.c.b16 %v821, %v820
    %838 = vmatprep.subr.bf16.mxu0 0
    %839 = vmatpush1.bf16.msra.mxu0 %v822
    %840 = vmatprep.subr.bf16.mxu0 0
    %841 = vmatpush1.bf16.msra.mxu0 %v823
    %842 = vmatprep.subr.bf16.mxu0 0
    %843 = vmatpush1.bf16.msra.mxu0 %v824
    %844 = vmatprep.subr.bf16.mxu0 0
    %845 = vmatpush1.bf16.msra.mxu0 %v825
    %846 = vmatprep.subr.bf16.mxu0 0
    %847 = vmatpush1.bf16.msra.mxu0 %v826
    %848 = vmatprep.subr.bf16.mxu0 0
    %849 = vmatpush1.bf16.msra.mxu0 %v827
    %850 = vmatprep.subr.bf16.mxu0 0
    %851 = vmatpush1.bf16.msra.mxu0 %v828
    %852 = vmatprep.subr.bf16.mxu0 0
    %853 = vmatpush1.bf16.msra.mxu0 %v829
    %854 = vmatprep.subr.bf16.mxu0 0
    %855 = vmatpush1.bf16.msra.mxu0 0
    %856 = vmatprep.subr.bf16.mxu0 0
    %857 = vmatpush1.bf16.msra.mxu0 0
    %858 = vmatprep.subr.bf16.mxu0 0
    %859 = vmatpush1.bf16.msra.mxu0 0
    %860 = vmatprep.subr.bf16.mxu0 0
    %861 = vmatpush1.bf16.msra.mxu0 0
    %862 = vmatprep.subr.bf16.mxu0 0
    %863 = vmatpush1.bf16.msra.mxu0 0
    %864 = vmatprep.subr.bf16.mxu0 0
    %865 = vmatpush1.bf16.msra.mxu0 0
    %866 = vmatprep.subr.bf16.mxu0 0
    %867 = vmatpush1.bf16.msra.mxu0 0
    %868 = vmatprep.subr.bf16.mxu0 0
    %869 = vmatpush1.bf16.msra.mxu0 0
    %870 = vmatprep.mubr.bf16.mxu0 0
    %871 = vmatmul.mubr.bf16.gmra.mrb[0].mxu0 %v767
    %v872 = vpop.f32.mrb[0].mxu0
    %v873 = vadd.f32 %v789, %v872
    %v874 = vpop.f32.mrb[0].mxu0
    %v875 = vpop.f32.mrb[0].mxu0
    %v876 = vpop.f32.mrb[0].mxu0
    %877 = vdwg.mxu0
    %v878 = vmax.f32 %v873, 0.0
    %v879 = vpack.c.bf16 %v878, %v878
    %v880 = vld [vmem:[#allocation13] sm:$0xf]
    %v881 = vld [vmem:[#allocation13 + $0x4] sm:$0xf]
    %v882 = vld [vmem:[#allocation13 + $0x8] sm:$0xf]
    %v883 = vld [vmem:[#allocation13 + $0xc] sm:$0xf]
    %v884 = vld [vmem:[#allocation13 + $0x10] sm:$0xf]
    %v885 = vld [vmem:[#allocation13 + $0x14] sm:$0xf]
    %v886 = vld [vmem:[#allocation13 + $0x18] sm:$0xf]
    %v887 = vld [vmem:[#allocation13 + $0x1c] sm:$0xf]
    %v888 = vld [vmem:[#allocation13 + $0x20] sm:$0xf]
    %v889 = vld [vmem:[#allocation13 + $0x24] sm:$0xf]
    %v890 = vld [vmem:[#allocation13 + $0x28] sm:$0xf]
    %v891 = vld [vmem:[#allocation13 + $0x2c] sm:$0xf]
    %v892 = vld [vmem:[#allocation13 + $0x30] sm:$0xf]
    %v893 = vld [vmem:[#allocation13 + $0x34] sm:$0xf]
    %v894 = vld [vmem:[#allocation13 + $0x38] sm:$0xf]
    %v895 = vld [vmem:[#allocation13 + $0x3c] sm:$0xf]
    %v896 = vld [vmem:[%s14] sm:$0x1]
    %v897 = vunpack.c.l.bf16 %v896
    %v898 = vlaneseq
    %v899 = vshrl.u32 %v898, 7
    %v900 = vsub.s32 0, %v899
    %v901 = vrot.slane %v897, %v900
    %v918 = vunpack.c.l.b16 %v880
    %v919 = vunpack.c.l.b16 %v881
    %v920 = vunpack.c.l.b16 %v882
    %v921 = vunpack.c.l.b16 %v883
    %v922 = vunpack.c.l.b16 %v884
    %v923 = vunpack.c.l.b16 %v885
    %v924 = vunpack.c.l.b16 %v886
    %v925 = vunpack.c.l.b16 %v887
    %v926 = vunpack.c.l.b16 %v888
    %v927 = vunpack.c.l.b16 %v889
    %v928 = vunpack.c.l.b16 %v890
    %v929 = vunpack.c.l.b16 %v891
    %v930 = vunpack.c.l.b16 %v892
    %v931 = vunpack.c.l.b16 %v893
    %v932 = vunpack.c.l.b16 %v894
    %v933 = vunpack.c.l.b16 %v895
    %v934 = vpack.c.b16 %v919, %v918
    %v935 = vpack.c.b16 %v921, %v920
    %v936 = vpack.c.b16 %v923, %v922
    %v937 = vpack.c.b16 %v925, %v924
    %v938 = vpack.c.b16 %v927, %v926
    %v939 = vpack.c.b16 %v929, %v928
    %v940 = vpack.c.b16 %v931, %v930
    %v941 = vpack.c.b16 %v933, %v932
    %950 = vmatprep.subr.bf16.mxu0 0
    %951 = vmatpush1.bf16.msra.mxu0 %v934
    %952 = vmatprep.subr.bf16.mxu0 0
    %953 = vmatpush1.bf16.msra.mxu0 %v935
    %954 = vmatprep.subr.bf16.mxu0 0
    %955 = vmatpush1.bf16.msra.mxu0 %v936
    %956 = vmatprep.subr.bf16.mxu0 0
    %957 = vmatpush1.bf16.msra.mxu0 %v937
    %958 = vmatprep.subr.bf16.mxu0 0
    %959 = vmatpush1.bf16.msra.mxu0 %v938
    %960 = vmatprep.subr.bf16.mxu0 0
    %961 = vmatpush1.bf16.msra.mxu0 %v939
    %962 = vmatprep.subr.bf16.mxu0 0
    %963 = vmatpush1.bf16.msra.mxu0 %v940
    %964 = vmatprep.subr.bf16.mxu0 0
    %965 = vmatpush1.bf16.msra.mxu0 %v941
    %966 = vmatprep.subr.bf16.mxu0 0
    %967 = vmatpush1.bf16.msra.mxu0 0
    %968 = vmatprep.subr.bf16.mxu0 0
    %969 = vmatpush1.bf16.msra.mxu0 0
    %970 = vmatprep.subr.bf16.mxu0 0
    %971 = vmatpush1.bf16.msra.mxu0 0
    %972 = vmatprep.subr.bf16.mxu0 0
    %973 = vmatpush1.bf16.msra.mxu0 0
    %974 = vmatprep.subr.bf16.mxu0 0
    %975 = vmatpush1.bf16.msra.mxu0 0
    %976 = vmatprep.subr.bf16.mxu0 0
    %977 = vmatpush1.bf16.msra.mxu0 0
    %978 = vmatprep.subr.bf16.mxu0 0
    %979 = vmatpush1.bf16.msra.mxu0 0
    %980 = vmatprep.subr.bf16.mxu0 0
    %981 = vmatpush1.bf16.msra.mxu0 0
    %982 = vmatprep.mubr.bf16.mxu0 0
    %983 = vmatmul.mubr.bf16.gmra.mrb[0].mxu0 %v879
    %v984 = vpop.f32.mrb[0].mxu0
    %v985 = vadd.f32 %v901, %v984
    %v986 = vpop.f32.mrb[0].mxu0
    %v987 = vpop.f32.mrb[0].mxu0
    %v988 = vpop.f32.mrb[0].mxu0
    %989 = vdwg.mxu0
    %v990 = vmax.f32 %v985, 0.0
    %v991 = vpack.c.bf16 %v990, %v990
    %v992 = vld [vmem:[#allocation14] sm:$0xf]
    %v993 = vld [vmem:[#allocation14 + $0x4] sm:$0xf]
    %v994 = vld [vmem:[#allocation14 + $0x8] sm:$0xf]
    %v995 = vld [vmem:[#allocation14 + $0xc] sm:$0xf]
    %v996 = vld [vmem:[#allocation14 + $0x10] sm:$0xf]
    %v997 = vld [vmem:[#allocation14 + $0x14] sm:$0xf]
    %v998 = vld [vmem:[#allocation14 + $0x18] sm:$0xf]
    %v999 = vld [vmem:[#allocation14 + $0x1c] sm:$0xf]
    %v1000 = vld [vmem:[#allocation14 + $0x20] sm:$0xf]
    %v1001 = vld [vmem:[#allocation14 + $0x24] sm:$0xf]
    %v1002 = vld [vmem:[#allocation14 + $0x28] sm:$0xf]
    %v1003 = vld [vmem:[#allocation14 + $0x2c] sm:$0xf]
    %v1004 = vld [vmem:[#allocation14 + $0x30] sm:$0xf]
    %v1005 = vld [vmem:[#allocation14 + $0x34] sm:$0xf]
    %v1006 = vld [vmem:[#allocation14 + $0x38] sm:$0xf]
    %v1007 = vld [vmem:[#allocation14 + $0x3c] sm:$0xf]
    %v1008 = vld [vmem:[%s16] sm:$0x1]
    %v1009 = vunpack.c.l.bf16 %v1008
    %v1010 = vlaneseq
    %v1011 = vshrl.u32 %v1010, 7
    %v1012 = vsub.s32 0, %v1011
    %v1013 = vrot.slane %v1009, %v1012
    %v1030 = vunpack.c.l.b16 %v992
    %v1031 = vunpack.c.l.b16 %v993
    %v1032 = vunpack.c.l.b16 %v994
    %v1033 = vunpack.c.l.b16 %v995
    %v1034 = vunpack.c.l.b16 %v996
    %v1035 = vunpack.c.l.b16 %v997
    %v1036 = vunpack.c.l.b16 %v998
    %v1037 = vunpack.c.l.b16 %v999
    %v1038 = vunpack.c.l.b16 %v1000
    %v1039 = vunpack.c.l.b16 %v1001
    %v1040 = vunpack.c.l.b16 %v1002
    %v1041 = vunpack.c.l.b16 %v1003
    %v1042 = vunpack.c.l.b16 %v1004
    %v1043 = vunpack.c.l.b16 %v1005
    %v1044 = vunpack.c.l.b16 %v1006
    %v1045 = vunpack.c.l.b16 %v1007
    %v1046 = vpack.c.b16 %v1031, %v1030
    %v1047 = vpack.c.b16 %v1033, %v1032
    %v1048 = vpack.c.b16 %v1035, %v1034
    %v1049 = vpack.c.b16 %v1037, %v1036
    %v1050 = vpack.c.b16 %v1039, %v1038
    %v1051 = vpack.c.b16 %v1041, %v1040
    %v1052 = vpack.c.b16 %v1043, %v1042
    %v1053 = vpack.c.b16 %v1045, %v1044
    %1062 = vmatprep.subr.bf16.mxu0 0
    %1063 = vmatpush1.bf16.msra.mxu0 %v1046
    %1064 = vmatprep.subr.bf16.mxu0 0
    %1065 = vmatpush1.bf16.msra.mxu0 %v1047
    %1066 = vmatprep.subr.bf16.mxu0 0
    %1067 = vmatpush1.bf16.msra.mxu0 %v1048
    %1068 = vmatprep.subr.bf16.mxu0 0
    %1069 = vmatpush1.bf16.msra.mxu0 %v1049
    %1070 = vmatprep.subr.bf16.mxu0 0
    %1071 = vmatpush1.bf16.msra.mxu0 %v1050
    %1072 = vmatprep.subr.bf16.mxu0 0
    %1073 = vmatpush1.bf16.msra.mxu0 %v1051
    %1074 = vmatprep.subr.bf16.mxu0 0
    %1075 = vmatpush1.bf16.msra.mxu0 %v1052
    %1076 = vmatprep.subr.bf16.mxu0 0
    %1077 = vmatpush1.bf16.msra.mxu0 %v1053
    %1078 = vmatprep.subr.bf16.mxu0 0
    %1079 = vmatpush1.bf16.msra.mxu0 0
    %1080 = vmatprep.subr.bf16.mxu0 0
    %1081 = vmatpush1.bf16.msra.mxu0 0
    %1082 = vmatprep.subr.bf16.mxu0 0
    %1083 = vmatpush1.bf16.msra.mxu0 0
    %1084 = vmatprep.subr.bf16.mxu0 0
    %1085 = vmatpush1.bf16.msra.mxu0 0
    %1086 = vmatprep.subr.bf16.mxu0 0
    %1087 = vmatpush1.bf16.msra.mxu0 0
    %1088 = vmatprep.subr.bf16.mxu0 0
    %1089 = vmatpush1.bf16.msra.mxu0 0
    %1090 = vmatprep.subr.bf16.mxu0 0
    %1091 = vmatpush1.bf16.msra.mxu0 0
    %1092 = vmatprep.subr.bf16.mxu0 0
    %1093 = vmatpush1.bf16.msra.mxu0 0
    %1094 = vmatprep.mubr.bf16.mxu0 0
    %1095 = vmatmul.mubr.bf16.gmra.mrb[0].mxu0 %v991
    %v1096 = vpop.f32.mrb[0].mxu0
    %v1097 = vadd.f32 %v1013, %v1096
    %v1098 = vpop.f32.mrb[0].mxu0
    %v1099 = vpop.f32.mrb[0].mxu0
    %v1100 = vpop.f32.mrb[0].mxu0
    %1101 = vdwg.mxu0
    %v1102 = vmax.f32 %v1097, 0.0
    %v1103 = vpack.c.bf16 %v1102, %v1102
    %v1104 = vld [vmem:[#allocation16] sm:$0xf]
    %v1105 = vld [vmem:[#allocation16 + $0x4] sm:$0xf]
    %v1106 = vld [vmem:[#allocation16 + $0x8] sm:$0xf]
    %v1107 = vld [vmem:[#allocation16 + $0xc] sm:$0xf]
    %v1108 = vld [vmem:[#allocation16 + $0x10] sm:$0xf]
    %v1109 = vld [vmem:[#allocation16 + $0x14] sm:$0xf]
    %v1110 = vld [vmem:[#allocation16 + $0x18] sm:$0xf]
    %v1111 = vld [vmem:[#allocation16 + $0x1c] sm:$0xf]
    %v1112 = vld [vmem:[#allocation16 + $0x20] sm:$0xf]
    %v1113 = vld [vmem:[#allocation16 + $0x24] sm:$0xf]
    %v1114 = vld [vmem:[#allocation16 + $0x28] sm:$0xf]
    %v1115 = vld [vmem:[#allocation16 + $0x2c] sm:$0xf]
    %v1116 = vld [vmem:[#allocation16 + $0x30] sm:$0xf]
    %v1117 = vld [vmem:[#allocation16 + $0x34] sm:$0xf]
    %v1118 = vld [vmem:[#allocation16 + $0x38] sm:$0xf]
    %v1119 = vld [vmem:[#allocation16 + $0x3c] sm:$0xf]
    %v1120 = vld [vmem:[%s18] sm:$0x1]
    %v1121 = vunpack.c.l.bf16 %v1120
    %v1122 = vlaneseq
    %v1123 = vshrl.u32 %v1122, 7
    %v1124 = vsub.s32 0, %v1123
    %v1125 = vrot.slane %v1121, %v1124
    %v1142 = vunpack.c.l.b16 %v1104
    %v1143 = vunpack.c.l.b16 %v1105
    %v1144 = vunpack.c.l.b16 %v1106
    %v1145 = vunpack.c.l.b16 %v1107
    %v1146 = vunpack.c.l.b16 %v1108
    %v1147 = vunpack.c.l.b16 %v1109
    %v1148 = vunpack.c.l.b16 %v1110
    %v1149 = vunpack.c.l.b16 %v1111
    %v1150 = vunpack.c.l.b16 %v1112
    %v1151 = vunpack.c.l.b16 %v1113
    %v1152 = vunpack.c.l.b16 %v1114
    %v1153 = vunpack.c.l.b16 %v1115
    %v1154 = vunpack.c.l.b16 %v1116
    %v1155 = vunpack.c.l.b16 %v1117
    %v1156 = vunpack.c.l.b16 %v1118
    %v1157 = vunpack.c.l.b16 %v1119
    %v1158 = vpack.c.b16 %v1143, %v1142
    %v1159 = vpack.c.b16 %v1145, %v1144
    %v1160 = vpack.c.b16 %v1147, %v1146
    %v1161 = vpack.c.b16 %v1149, %v1148
    %v1162 = vpack.c.b16 %v1151, %v1150
    %v1163 = vpack.c.b16 %v1153, %v1152
    %v1164 = vpack.c.b16 %v1155, %v1154
    %v1165 = vpack.c.b16 %v1157, %v1156
    %1174 = vmatprep.subr.bf16.mxu0 0
    %1175 = vmatpush1.bf16.msra.mxu0 %v1158
    %1176 = vmatprep.subr.bf16.mxu0 0
    %1177 = vmatpush1.bf16.msra.mxu0 %v1159
    %1178 = vmatprep.subr.bf16.mxu0 0
    %1179 = vmatpush1.bf16.msra.mxu0 %v1160
    %1180 = vmatprep.subr.bf16.mxu0 0
    %1181 = vmatpush1.bf16.msra.mxu0 %v1161
    %1182 = vmatprep.subr.bf16.mxu0 0
    %1183 = vmatpush1.bf16.msra.mxu0 %v1162
    %1184 = vmatprep.subr.bf16.mxu0 0
    %1185 = vmatpush1.bf16.msra.mxu0 %v1163
    %1186 = vmatprep.subr.bf16.mxu0 0
    %1187 = vmatpush1.bf16.msra.mxu0 %v1164
    %1188 = vmatprep.subr.bf16.mxu0 0
    %1189 = vmatpush1.bf16.msra.mxu0 %v1165
    %1190 = vmatprep.subr.bf16.mxu0 0
    %1191 = vmatpush1.bf16.msra.mxu0 0
    %1192 = vmatprep.subr.bf16.mxu0 0
    %1193 = vmatpush1.bf16.msra.mxu0 0
    %1194 = vmatprep.subr.bf16.mxu0 0
    %1195 = vmatpush1.bf16.msra.mxu0 0
    %1196 = vmatprep.subr.bf16.mxu0 0
    %1197 = vmatpush1.bf16.msra.mxu0 0
    %1198 = vmatprep.subr.bf16.mxu0 0
    %1199 = vmatpush1.bf16.msra.mxu0 0
    %1200 = vmatprep.subr.bf16.mxu0 0
    %1201 = vmatpush1.bf16.msra.mxu0 0
    %1202 = vmatprep.subr.bf16.mxu0 0
    %1203 = vmatpush1.bf16.msra.mxu0 0
    %1204 = vmatprep.subr.bf16.mxu0 0
    %1205 = vmatpush1.bf16.msra.mxu0 0
    %1206 = vmatprep.mubr.bf16.mxu0 0
    %1207 = vmatmul.mubr.bf16.gmra.mrb[0].mxu0 %v1103
    %v1208 = vpop.f32.mrb[0].mxu0
    %v1209 = vadd.f32 %v1125, %v1208
    %v1210 = vpop.f32.mrb[0].mxu0
    %v1211 = vpop.f32.mrb[0].mxu0
    %v1212 = vpop.f32.mrb[0].mxu0
    %1213 = vdwg.mxu0
    %v1214 = vmax.f32 %v1209, 0.0
    %v1215 = vpack.c.bf16 %v1214, %v1214
    %v1216 = vld [vmem:[#allocation17] sm:$0xf]
    %v1217 = vld [vmem:[#allocation17 + $0x4] sm:$0xf]
    %v1218 = vld [vmem:[#allocation17 + $0x8] sm:$0xf]
    %v1219 = vld [vmem:[#allocation17 + $0xc] sm:$0xf]
    %v1220 = vld [vmem:[#allocation17 + $0x10] sm:$0xf]
    %v1221 = vld [vmem:[#allocation17 + $0x14] sm:$0xf]
    %v1222 = vld [vmem:[#allocation17 + $0x18] sm:$0xf]
    %v1223 = vld [vmem:[#allocation17 + $0x1c] sm:$0xf]
    %v1224 = vld [vmem:[#allocation17 + $0x20] sm:$0xf]
    %v1225 = vld [vmem:[#allocation17 + $0x24] sm:$0xf]
    %v1226 = vld [vmem:[#allocation17 + $0x28] sm:$0xf]
    %v1227 = vld [vmem:[#allocation17 + $0x2c] sm:$0xf]
    %v1228 = vld [vmem:[#allocation17 + $0x30] sm:$0xf]
    %v1229 = vld [vmem:[#allocation17 + $0x34] sm:$0xf]
    %v1230 = vld [vmem:[#allocation17 + $0x38] sm:$0xf]
    %v1231 = vld [vmem:[#allocation17 + $0x3c] sm:$0xf]
    %v1232 = vld [vmem:[%s20] sm:$0x1]
    %v1233 = vunpack.c.l.bf16 %v1232
    %v1234 = vlaneseq
    %v1235 = vshrl.u32 %v1234, 7
    %v1236 = vsub.s32 0, %v1235
    %v1237 = vrot.slane %v1233, %v1236
    %v1254 = vunpack.c.l.b16 %v1216
    %v1255 = vunpack.c.l.b16 %v1217
    %v1256 = vunpack.c.l.b16 %v1218
    %v1257 = vunpack.c.l.b16 %v1219
    %v1258 = vunpack.c.l.b16 %v1220
    %v1259 = vunpack.c.l.b16 %v1221
    %v1260 = vunpack.c.l.b16 %v1222
    %v1261 = vunpack.c.l.b16 %v1223
    %v1262 = vunpack.c.l.b16 %v1224
    %v1263 = vunpack.c.l.b16 %v1225
    %v1264 = vunpack.c.l.b16 %v1226
    %v1265 = vunpack.c.l.b16 %v1227
    %v1266 = vunpack.c.l.b16 %v1228
    %v1267 = vunpack.c.l.b16 %v1229
    %v1268 = vunpack.c.l.b16 %v1230
    %v1269 = vunpack.c.l.b16 %v1231
    %v1270 = vpack.c.b16 %v1255, %v1254
    %v1271 = vpack.c.b16 %v1257, %v1256
    %v1272 = vpack.c.b16 %v1259, %v1258
    %v1273 = vpack.c.b16 %v1261, %v1260
    %v1274 = vpack.c.b16 %v1263, %v1262
    %v1275 = vpack.c.b16 %v1265, %v1264
    %v1276 = vpack.c.b16 %v1267, %v1266
    %v1277 = vpack.c.b16 %v1269, %v1268
    %1286 = vmatprep.subr.bf16.mxu0 0
    %1287 = vmatpush1.bf16.msra.mxu0 %v1270
    %1288 = vmatprep.subr.bf16.mxu0 0
    %1289 = vmatpush1.bf16.msra.mxu0 %v1271
    %1290 = vmatprep.subr.bf16.mxu0 0
    %1291 = vmatpush1.bf16.msra.mxu0 %v1272
    %1292 = vmatprep.subr.bf16.mxu0 0
    %1293 = vmatpush1.bf16.msra.mxu0 %v1273
    %1294 = vmatprep.subr.bf16.mxu0 0
    %1295 = vmatpush1.bf16.msra.mxu0 %v1274
    %1296 = vmatprep.subr.bf16.mxu0 0
    %1297 = vmatpush1.bf16.msra.mxu0 %v1275
    %1298 = vmatprep.subr.bf16.mxu0 0
    %1299 = vmatpush1.bf16.msra.mxu0 %v1276
    %1300 = vmatprep.subr.bf16.mxu0 0
    %1301 = vmatpush1.bf16.msra.mxu0 %v1277
    %1302 = vmatprep.subr.bf16.mxu0 0
    %1303 = vmatpush1.bf16.msra.mxu0 0
    %1304 = vmatprep.subr.bf16.mxu0 0
    %1305 = vmatpush1.bf16.msra.mxu0 0
    %1306 = vmatprep.subr.bf16.mxu0 0
    %1307 = vmatpush1.bf16.msra.mxu0 0
    %1308 = vmatprep.subr.bf16.mxu0 0
    %1309 = vmatpush1.bf16.msra.mxu0 0
    %1310 = vmatprep.subr.bf16.mxu0 0
    %1311 = vmatpush1.bf16.msra.mxu0 0
    %1312 = vmatprep.subr.bf16.mxu0 0
    %1313 = vmatpush1.bf16.msra.mxu0 0
    %1314 = vmatprep.subr.bf16.mxu0 0
    %1315 = vmatpush1.bf16.msra.mxu0 0
    %1316 = vmatprep.subr.bf16.mxu0 0
    %1317 = vmatpush1.bf16.msra.mxu0 0
    %1318 = vmatprep.mubr.bf16.mxu0 0
    %1319 = vmatmul.mubr.bf16.gmra.mrb[0].mxu0 %v1215
    %v1320 = vpop.f32.mrb[0].mxu0
    %v1321 = vadd.f32 %v1237, %v1320
    %v1322 = vpop.f32.mrb[0].mxu0
    %v1323 = vpop.f32.mrb[0].mxu0
    %v1324 = vpop.f32.mrb[0].mxu0
    %1325 = vdwg.mxu0
    %1326 = vst [vmem:[#allocation19] sm:$0xff] %v1321
    // Predicated region
    $region126: #{fnn_forward.1} parent=1 // pred_check
      _
    $region127: #{fnn_forward.1} parent=1 // pred_check_branch
      %1328 = sbr.rel (0) target = $region129
    $region128: #{fnn_forward.1} parent=1 // pred_region
      %s1330 = ssub.s32 128, 128
      %1331 = vsyncadd [#allocation4], %s1330
      %s1333 = sshll.u32 [#allocation19], 4
      %s1334 = int_to_ptr.vmem [resolvable:$true] %s1333
      %1336 = dma.vmem_to_hbm [thread:$0]  %s1334, 128, %s21, [#allocation4]
    $region129: #{fnn_forward.1} parent=1 // pred_fallthru
      _
    // Predicated region
    $region130: #{fnn_forward.1} parent=1 // pred_check
      _
    $region131: #{fnn_forward.1} parent=1 // pred_check_branch
      %1338 = sbr.rel (0) target = $region133
    $region132: #{fnn_forward.1} parent=1 // pred_region
      %1339 = dma.done [#allocation4], 128
    $region133: #{fnn_forward.1} parent=1 // pred_fallthru
      _
    %1340 = vsyncpa [#allocation3], 1
    %1341 = vsyncpa [#allocation6], 1
    %1342 = vsyncpa [#allocation9], 1
    %1343 = vsyncpa [#allocation12], 1
    %1344 = vsyncpa [#allocation15], 1
    %1345 = vsyncpa [#allocation18], 1
    %1346 = vsyncpa [#allocation4], 1

</llo_original>
